<compile_context>
chip_gen: v7x
topology: tpu7x:2x2x1
jax: 0.10.0
libtpu: 0.0.40
codegen_flags: <defaults>
</compile_context>

<pallas_src>
import functools

import jax
import jax.numpy as jnp
from jax import lax
from jax.experimental import pallas as pl
from jax.experimental.pallas import tpu as pltpu

EPS_LN = 1e-5      # torch.nn.LayerNorm default
EPS_ATTN = 1e-8    # Attention.eps


def _layer_norm(x, w, b):
    mu = jnp.mean(x, axis=-1, keepdims=True)
    var = jnp.mean((x - mu) ** 2, axis=-1, keepdims=True)
    return (x - mu) * lax.rsqrt(var + EPS_LN) * w + b


def _gelu_exact(x):
    # F.gelu default (erf-based)
    return 0.5 * x * (1.0 + lax.erf(x * (2.0 ** -0.5)))


# ---------------------------------------------------------------------------
# Fused kernel: whole forward pass for one tile of `tile_b` batch elements.
# Grid = (batch_tiles, num_layers); the layer axis carries the residual stream
# in the `act_ref` VMEM scratch (accumulator pattern).
# ---------------------------------------------------------------------------
def fused_forward_kernel(alpha_ref,                       # SMEM (L*H,) f32
                         x_ref,                           # (1, TBN, C)
                         pre_w_ref, pre_b_ref,            # (1, 1, C) x2  f32
                         qkv_w_ref,                       # (1, C, 3C)    bf16
                         proj_w_ref, proj_b_ref,          # (1, C, C) bf16, (1, 1, C) f32
                         n1_w_ref, n1_b_ref,              # (1, 1, C) x2  f32
                         l1_w_ref, l1_b_ref,              # (1, C, F) bf16, (1, 1, F) f32
                         l2_w_ref, l2_b_ref,              # (1, F, C) bf16, (1, 1, C) f32
                         norm_w_ref, norm_b_ref,          # (1, C) x2     f32
                         pool_w_ref, pool_b_ref,          # (1, C), (1, 1) f32
                         feat_ref, pooled_ref,            # (1, TBN, C), (1, TB, C)
                         act_ref, head_ref,               # VMEM scratch (TBN, C) f32 x2
                         *, num_heads, tile_b, seq_len):
    l = pl.program_id(1)
    num_layers = pl.num_programs(1)

    TBN, C = act_ref.shape
    N = seq_len
    H = num_heads
    hd = C // H
    scale = hd ** -0.5
    inv_n = 1.0 / N
    bf16 = jnp.bfloat16

    # --- first layer: load input tile (pos-emb already added in wrapper) ------
    @pl.when(l == 0)
    def _init():
        act_ref[...] = x_ref[0].astype(jnp.float32)

    x = act_ref[...]                                       # (TBN, C), f32

    # --- encoder layer l ------------------------------------------------------
    xn = _layer_norm(x, pre_w_ref[0, 0], pre_b_ref[0, 0])
    qkv = jnp.dot(xn.astype(bf16), qkv_w_ref[0],
                  preferred_element_type=jnp.float32)      # (TBN, 3C) f32
    # Row-axis split only (N is a sublane multiple) -> layout preserving.
    qkv3 = qkv.reshape(tile_b, N, 3 * C)

    # Attention: batched over tile_b (single batch-dim einsums), small static
    # unroll over heads; per-head result stored into the head slab so live
    # ranges stay bounded and the output projection is a single matmul.
    for h in range(H):
        c0 = h * hd
        q = qkv3[:, :, c0:c0 + hd] * scale                 # scale folded into q
        k = qkv3[:, :, C + c0:C + c0 + hd]
        v = qkv3[:, :, 2 * C + c0:2 * C + c0 + hd]
        s = jnp.einsum('bnd,bmd->bnm', q.astype(bf16), k.astype(bf16),
                       preferred_element_type=jnp.float32)   # (tile_b, N, N)
        scal = s * inv_n                                     # attn / attn.size(3)
        a = jnp.maximum(s, 0.0)                              # ReLU attention
        a = a / (jnp.sum(a, axis=-1, keepdims=True) + EPS_ATTN)   # exact divide
        alpha = alpha_ref[l * H + h]                         # scalar from SMEM
        blend = alpha * a + (1.0 - alpha) * scal
        hv = jnp.einsum('bnm,bmd->bnd', blend.astype(bf16), v.astype(bf16),
                        preferred_element_type=jnp.float32)  # (tile_b, N, hd)
        head_ref[:, c0:c0 + hd] = hv.reshape(TBN, hd)

    # Single output-projection matmul over the full C contraction.
    attn_out = jnp.dot(head_ref[...].astype(bf16), proj_w_ref[0],
                       preferred_element_type=jnp.float32) + proj_b_ref[0, 0]

    src = x + attn_out
    src = _layer_norm(src, n1_w_ref[0, 0], n1_b_ref[0, 0])
    h1 = jnp.dot(src.astype(bf16), l1_w_ref[0],
                 preferred_element_type=jnp.float32) + l1_b_ref[0, 0]
    h1 = _gelu_exact(h1)
    src2 = jnp.dot(h1.astype(bf16), l2_w_ref[0],
                   preferred_element_type=jnp.float32) + l2_b_ref[0, 0]
    act_ref[...] = src + src2

    # --- final LayerNorm + sequence-pool head (last layer only) ---------------
    @pl.when(l == num_layers - 1)
    def _head():
        xf = act_ref[...]
        xn_f = _layer_norm(xf, norm_w_ref[0], norm_b_ref[0])
        feat_ref[0] = xn_f.astype(feat_ref.dtype)
        xn3 = xn_f.reshape(tile_b, N, C)
        # VPU logits (no 1-column MXU matmul).
        lg = jnp.sum(xn3 * pool_w_ref[0], axis=-1, keepdims=True) + pool_b_ref[0, 0]
        m = jnp.max(lg, axis=1, keepdims=True)
        w = jnp.exp(lg - m)
        w = w / jnp.sum(w, axis=1, keepdims=True)            # softmax over sequence
        pooled = jnp.sum(w * xn3, axis=1)                     # (tile_b, C)
        pooled_ref[0] = pooled.astype(pooled_ref.dtype)


# ---------------------------------------------------------------------------
# Wrapper: one pallas_call for the whole model.
# ---------------------------------------------------------------------------
def transformer_classifier(x, params, num_heads, tile_b=1):
    B, N, C = x.shape
    L = params["qkv_w"].shape[0]
    Fdim = params["l1_w"].shape[2]
    assert C % num_heads == 0, "embedding_dim must be divisible by num_heads"
    assert N % 8 == 0, "sequence length must be a sublane (8) multiple"
    assert B % tile_b == 0, "tile_b must divide batch"
    TBN = tile_b * N
    n_tiles = B // tile_b

    # Wrapper-side layout plumbing (done once, outside the kernel):
    # positional-embedding add fused here; batch grouped into tiles.
    xg = (x + params["pos_emb"]).reshape(n_tiles, TBN, C)

    layer_spec3 = lambda shape: pl.BlockSpec(shape, lambda g, l: (l, 0, 0))
    shared2 = lambda shape: pl.BlockSpec(shape, lambda g, l: (0, 0))

    in_specs = [
        pl.BlockSpec(memory_space=pltpu.MemorySpace.SMEM),   # alpha (L*H,)
        pl.BlockSpec((1, TBN, C), lambda g, l: (g, 0, 0)),   # x (batch tiles)
        layer_spec3((1, 1, C)), layer_spec3((1, 1, C)),      # pre_norm w, b
        layer_spec3((1, C, 3 * C)),                          # qkv weight (bf16)
        layer_spec3((1, C, C)), layer_spec3((1, 1, C)),      # proj w (bf16), b
        layer_spec3((1, 1, C)), layer_spec3((1, 1, C)),      # norm1 w, b
        layer_spec3((1, C, Fdim)), layer_spec3((1, 1, Fdim)),  # linear1 w (bf16), b
        layer_spec3((1, Fdim, C)), layer_spec3((1, 1, C)),   # linear2 w (bf16), b
        shared2((1, C)), shared2((1, C)),                    # final norm w, b
        shared2((1, C)), shared2((1, 1)),                    # attention_pool w, b
    ]

    # ----- VMEM budget (bf16 weights double-buffered + f32 scratch/IO) --------
    wbytes_layer = (C * 3 * C + C * C + C * Fdim + Fdim * C) * 2          # bf16
    pbytes_layer = (6 * C + Fdim) * 4                                     # f32 ln/bias
    scratch_bytes = 2 * TBN * C * 4                                       # act + head slab
    io_bytes = 2 * (TBN * C * 4) + 2 * (TBN * C + tile_b * C) * 4
    vmem_limit = 2 * (wbytes_layer + pbytes_layer) + scratch_bytes + io_bytes + (4 << 20)
    vmem_limit = int(min(vmem_limit, 64 << 20))   # stay within v7x physical VMEM

    # ----- advisory cost estimate ---------------------------------------------
    flops = int(L * (B * N * (2 * C * 3 * C + 2 * C * C + 4 * C * Fdim)
                     + B * 4 * N * N * C))
    transcendentals = int(L * B * N * Fdim + B * N)
    bytes_accessed = int(n_tiles * L * (wbytes_layer + pbytes_layer) + 3 * B * N * C * 4)

    feat, pooled = pl.pallas_call(
        functools.partial(fused_forward_kernel,
                          num_heads=num_heads, tile_b=tile_b, seq_len=N),
        grid=(n_tiles, L),
        in_specs=in_specs,
        out_specs=(
            pl.BlockSpec((1, TBN, C), lambda g, l: (g, 0, 0)),
            pl.BlockSpec((1, tile_b, C), lambda g, l: (g, 0, 0)),
        ),
        out_shape=(
            jax.ShapeDtypeStruct((n_tiles, TBN, C), x.dtype),
            jax.ShapeDtypeStruct((n_tiles, tile_b, C), x.dtype),
        ),
        scratch_shapes=[pltpu.VMEM((TBN, C), jnp.float32),   # residual stream
                        pltpu.VMEM((TBN, C), jnp.float32)],  # per-head output slab
        compiler_params=pltpu.CompilerParams(
            dimension_semantics=("parallel", "arbitrary"),
            vmem_limit_bytes=vmem_limit),
        cost_estimate=pl.CostEstimate(flops=flops,
                                      transcendentals=transcendentals,
                                      bytes_accessed=bytes_accessed),
    )(params["alpha"], xg,
      params["pre_w"], params["pre_b"], params["qkv_w"],
      params["proj_w"], params["proj_b"], params["n1_w"], params["n1_b"],
      params["l1_w"], params["l1_b"], params["l2_w"], params["l2_b"],
      params["norm_w"], params["norm_b"], params["pool_w"], params["pool_b"])

    return pooled.reshape(B, C), [feat.reshape(B, N, C)]


# ---------------------------------------------------------------------------
# Deterministic parameter init (shapes per TransformerClassifier.__init__),
# stored stacked per layer as (L, ...); matmul weights kept in bf16 for the MXU.
# ---------------------------------------------------------------------------
def _trunc(key, shape, std):
    return (jax.random.truncated_normal(key, -2.0, 2.0, shape) * std).astype(jnp.float32)


def init_params(key, *, num_layers, C, H, Fdim, N):
    ki = iter(jax.random.split(key, 4 * num_layers + 2))
    bf16 = jnp.bfloat16
    qkv_w = jnp.stack([_trunc(next(ki), (C, 3 * C), 0.02) for _ in range(num_layers)]).astype(bf16)
    proj_w = jnp.stack([_trunc(next(ki), (C, C), 0.02) for _ in range(num_layers)]).astype(bf16)
    l1_w = jnp.stack([_trunc(next(ki), (C, Fdim), 0.02) for _ in range(num_layers)]).astype(bf16)
    l2_w = jnp.stack([_trunc(next(ki), (Fdim, C), 0.02) for _ in range(num_layers)]).astype(bf16)
    params = {
        "pos_emb": _trunc(next(ki), (1, N, C), 0.2),
        # module init is alpha=1.0; use non-trivial values here so the
        # relu-attention / scaled-attention blend path is numerically exercised.
        "alpha": jnp.linspace(0.5, 1.0, num_layers * H).astype(jnp.float32),
        "pre_w": jnp.ones((num_layers, 1, C), jnp.float32),
        "pre_b": jnp.zeros((num_layers, 1, C), jnp.float32),
        "qkv_w": qkv_w,
        "proj_w": proj_w,
        "proj_b": jnp.zeros((num_layers, 1, C), jnp.float32),
        "n1_w": jnp.ones((num_layers, 1, C), jnp.float32),
        "n1_b": jnp.zeros((num_layers, 1, C), jnp.float32),
        "l1_w": l1_w,
        "l1_b": jnp.zeros((num_layers, 1, Fdim), jnp.float32),
        "l2_w": l2_w,
        "l2_b": jnp.zeros((num_layers, 1, C), jnp.float32),
        "norm_w": jnp.ones((1, C), jnp.float32),
        "norm_b": jnp.zeros((1, C), jnp.float32),
        "pool_w": _trunc(next(ki), (1, C), 0.02),
        "pool_b": jnp.zeros((1, 1), jnp.float32),
    }
    # TODO(synk): Attention.E (Linformer projection) and self.fc are unused in the
    # seq_pool=True forward path and are intentionally not materialized.
    return params


# ---------------------------------------------------------------------------
# Pure-JAX f32 reference (mirrors the PyTorch forward, eval mode)
# ---------------------------------------------------------------------------
def reference(x, params, num_heads):
    f32 = jnp.float32
    x = x + params["pos_emb"]
    B, N, C = x.shape
    hd = C // num_heads
    L = params["qkv_w"].shape[0]
    for li in range(L):
        xn = _layer_norm(x, params["pre_w"][li, 0], params["pre_b"][li, 0])
        qkv = (xn @ params["qkv_w"][li].astype(f32)).reshape(
            B, N, 3, num_heads, hd).transpose(2, 0, 3, 1, 4)
        q, k, v = qkv[0], qkv[1], qkv[2]
        s = jnp.einsum("bhnd,bhmd->bhnm", q, k) * hd ** -0.5
        scal = s / N
        a = jnp.maximum(s, 0.0)
        a = a / (jnp.sum(a, axis=-1, keepdims=True) + EPS_ATTN)
        alpha = params["alpha"][li * num_heads:(li + 1) * num_heads].reshape(1, num_heads, 1, 1)
        a = alpha * a + (1.0 - alpha) * scal
        o = jnp.einsum("bhnm,bhmd->bhnd", a, v).transpose(0, 2, 1, 3).reshape(B, N, C)
        o = o @ params["proj_w"][li].astype(f32) + params["proj_b"][li, 0]
        src = x + o
        src = _layer_norm(src, params["n1_w"][li, 0], params["n1_b"][li, 0])
        h1 = _gelu_exact(src @ params["l1_w"][li].astype(f32) + params["l1_b"][li, 0])
        x = src + (h1 @ params["l2_w"][li].astype(f32) + params["l2_b"][li, 0])
    xn = _layer_norm(x, params["norm_w"][0], params["norm_b"][0])
    logits = xn @ params["pool_w"].T + params["pool_b"]
    w = jax.nn.softmax(logits, axis=1)
    pooled = jnp.einsum("bnk,bnc->bkc", w, xn)[:, 0, :]
    return pooled, xn


if __name__ == "__main__":
    B, N, C, H, num_layers = 4, 8, 32, 4, 2
    Fdim = int(C * 2.0)   # mlp_ratio = 2.0

    key = jax.random.PRNGKey(0)
    kx, kp = jax.random.split(key)
    x = jax.random.normal(kx, (B, N, C), jnp.float32)
    params = init_params(kp, num_layers=num_layers, C=C, H=H, Fdim=Fdim, N=N)

    # tile_b=2: two batch elements per grid step (flattened M = tile_b*N rows),
    # while keeping n_tiles=2 "parallel" batch-tile steps (even -> megacore/v7x).
    pooled, feats = transformer_classifier(x, params, num_heads=H, tile_b=2)
    pooled = jax.block_until_ready(pooled)
    feat = jax.block_until_ready(feats[0])

    ref_pooled, ref_feat = reference(x, params, num_heads=H)
    assert pooled.shape == (B, C) and feat.shape == (B, N, C)
    # Tolerance accounts for bf16 MXU operands (f32 accumulation, f32 residual
    # stream, f32 reference math); weights themselves are bf16 in both paths.
    assert jnp.allclose(pooled, ref_pooled, rtol=2e-2, atol=2e-2), "pooled output mismatch"
    assert jnp.allclose(feat, ref_feat, rtol=2e-2, atol=2e-2), "feature output mismatch"

    print("KERNEL_OK")
</pallas_src>

<mosaic_0001>
module attributes {stable_mosaic.version = 11 : i64} {
  func.func @fused_forward_kernel(%arg0: i32, %arg1: i32, %arg2: memref<8xf32, #tpu.memory_space<smem>>, %arg3: memref<1x16x32xf32, #tpu.memory_space<vmem>>, %arg4: memref<1x1x32xf32, #tpu.memory_space<vmem>>, %arg5: memref<1x1x32xf32, #tpu.memory_space<vmem>>, %arg6: memref<1x32x96xbf16, #tpu.memory_space<vmem>>, %arg7: memref<1x32x32xbf16, #tpu.memory_space<vmem>>, %arg8: memref<1x1x32xf32, #tpu.memory_space<vmem>>, %arg9: memref<1x1x32xf32, #tpu.memory_space<vmem>>, %arg10: memref<1x1x32xf32, #tpu.memory_space<vmem>>, %arg11: memref<1x32x64xbf16, #tpu.memory_space<vmem>>, %arg12: memref<1x1x64xf32, #tpu.memory_space<vmem>>, %arg13: memref<1x64x32xbf16, #tpu.memory_space<vmem>>, %arg14: memref<1x1x32xf32, #tpu.memory_space<vmem>>, %arg15: memref<1x32xf32, #tpu.memory_space<vmem>>, %arg16: memref<1x32xf32, #tpu.memory_space<vmem>>, %arg17: memref<1x32xf32, #tpu.memory_space<vmem>>, %arg18: memref<1x1xf32, #tpu.memory_space<vmem>>, %arg19: memref<1x16x32xf32, #tpu.memory_space<vmem>>, %arg20: memref<1x2x32xf32, #tpu.memory_space<vmem>>, %arg21: memref<16x32xf32, #tpu.memory_space<vmem>>, %arg22: memref<16x32xf32, #tpu.memory_space<vmem>>) attributes {dimension_semantics = [#tpu.dimension_semantics<parallel>, #tpu.dimension_semantics<arbitrary>], iteration_bounds = array<i64: 2, 2>, scalar_prefetch = 0 : i64, scratch_operands = 2 : i64, tpu.core_type = #tpu.core_type<tc>, window_params = [{transform_indices = @transform_0, window_bounds = array<i64: 8>}, {transform_indices = @transform_1, window_bounds = array<i64: 1, 16, 32>}, {transform_indices = @transform_2, window_bounds = array<i64: 1, 1, 32>}, {transform_indices = @transform_3, window_bounds = array<i64: 1, 1, 32>}, {transform_indices = @transform_4, window_bounds = array<i64: 1, 32, 96>}, {transform_indices = @transform_5, window_bounds = array<i64: 1, 32, 32>}, {transform_indices = @transform_6, window_bounds = array<i64: 1, 1, 32>}, {transform_indices = @transform_7, window_bounds = array<i64: 1, 1, 32>}, {transform_indices = @transform_8, window_bounds = array<i64: 1, 1, 32>}, {transform_indices = @transform_9, window_bounds = array<i64: 1, 32, 64>}, {transform_indices = @transform_10, window_bounds = array<i64: 1, 1, 64>}, {transform_indices = @transform_11, window_bounds = array<i64: 1, 64, 32>}, {transform_indices = @transform_12, window_bounds = array<i64: 1, 1, 32>}, {pipeline_mode = #tpu.pipeline_mode<synchronous>, transform_indices = @transform_13, window_bounds = array<i64: 1, 32>}, {pipeline_mode = #tpu.pipeline_mode<synchronous>, transform_indices = @transform_14, window_bounds = array<i64: 1, 32>}, {pipeline_mode = #tpu.pipeline_mode<synchronous>, transform_indices = @transform_15, window_bounds = array<i64: 1, 32>}, {pipeline_mode = #tpu.pipeline_mode<synchronous>, transform_indices = @transform_16, window_bounds = array<i64: 1, 1>}, {transform_indices = @transform_17, window_bounds = array<i64: 1, 16, 32>}, {transform_indices = @transform_18, window_bounds = array<i64: 1, 2, 32>}]} {
    %c0_i32 = arith.constant 0 : i32
    %0 = arith.cmpi eq, %arg1, %c0_i32 : i32
    %1 = arith.extui %0 : i1 to i32
    %c0_i32_0 = arith.constant 0 : i32
    %2 = arith.cmpi ne, %1, %c0_i32_0 : i32
    scf.if %2 {
      %c0_98 = arith.constant 0 : index
      %c0_99 = arith.constant 0 : index
      %c0_100 = arith.constant 0 : index
      %239 = vector.load %arg3[%c0_98, %c0_99, %c0_100] : memref<1x16x32xf32, #tpu.memory_space<vmem>>, vector<1x16x32xf32>
      %240 = vector.shape_cast %239 : vector<1x16x32xf32> to vector<16x32xf32>
      %c0_101 = arith.constant 0 : index
      %c0_102 = arith.constant 0 : index
      %241 = vector.load %arg21[%c0_101, %c0_102] : memref<16x32xf32, #tpu.memory_space<vmem>>, vector<16x32xf32>
      tpu.vector_store %arg21[%c0_101, %c0_102], %240 {strides = array<i32>} : memref<16x32xf32, #tpu.memory_space<vmem>>, vector<16x32xf32>,
    } else {
    }
    %c0 = arith.constant 0 : index
    %c0_1 = arith.constant 0 : index
    %3 = vector.load %arg21[%c0, %c0_1] : memref<16x32xf32, #tpu.memory_space<vmem>>, vector<16x32xf32>
    %c0_2 = arith.constant 0 : index
    %c0_3 = arith.constant 0 : index
    %c0_4 = arith.constant 0 : index
    %4 = vector.load %arg4[%c0_2, %c0_3, %c0_4] : memref<1x1x32xf32, #tpu.memory_space<vmem>>, vector<1x1x32xf32>
    %5 = vector.shape_cast %4 : vector<1x1x32xf32> to vector<32xf32>
    %c0_5 = arith.constant 0 : index
    %c0_6 = arith.constant 0 : index
    %c0_7 = arith.constant 0 : index
    %6 = vector.load %arg5[%c0_5, %c0_6, %c0_7] : memref<1x1x32xf32, #tpu.memory_space<vmem>>, vector<1x1x32xf32>
    %7 = vector.shape_cast %6 : vector<1x1x32xf32> to vector<32xf32>
    %cst = arith.constant dense<0.000000e+00> : vector<16xf32>
    %8 = vector.multi_reduction <add>, %3, %cst [1] : vector<16x32xf32> to vector<16xf32>
    %9 = vector.shape_cast %8 : vector<16xf32> to vector<16x1xf32>
    %cst_8 = arith.constant 3.200000e+01 : f32
    %10 = vector.broadcast %cst_8 : f32 to vector<16x1xf32>
    %11 = arith.divf %9, %10 : vector<16x1xf32>
    %12 = vector.broadcast %11 : vector<16x1xf32> to vector<16x32xf32>
    %13 = arith.subf %3, %12 : vector<16x32xf32>
    %14 = arith.mulf %13, %13 : vector<16x32xf32>
    %cst_9 = arith.constant dense<0.000000e+00> : vector<16xf32>
    %15 = vector.multi_reduction <add>, %14, %cst_9 [1] : vector<16x32xf32> to vector<16xf32>
    %16 = vector.shape_cast %15 : vector<16xf32> to vector<16x1xf32>
    %cst_10 = arith.constant 3.200000e+01 : f32
    %17 = vector.broadcast %cst_10 : f32 to vector<16x1xf32>
    %18 = arith.divf %16, %17 : vector<16x1xf32>
    %19 = vector.broadcast %11 : vector<16x1xf32> to vector<16x32xf32>
    %20 = arith.subf %3, %19 : vector<16x32xf32>
    %cst_11 = arith.constant 9.99999974E-6 : f32
    %21 = vector.broadcast %cst_11 : f32 to vector<16x1xf32>
    %22 = arith.addf %18, %21 : vector<16x1xf32>
    %23 = math.rsqrt %22 : vector<16x1xf32>
    %24 = vector.broadcast %23 : vector<16x1xf32> to vector<16x32xf32>
    %25 = arith.mulf %20, %24 : vector<16x32xf32>
    %26 = vector.shape_cast %5 : vector<32xf32> to vector<1x32xf32>
    %27 = vector.broadcast %26 : vector<1x32xf32> to vector<16x32xf32>
    %28 = arith.mulf %25, %27 : vector<16x32xf32>
    %29 = vector.shape_cast %7 : vector<32xf32> to vector<1x32xf32>
    %30 = vector.broadcast %29 : vector<1x32xf32> to vector<16x32xf32>
    %31 = arith.addf %28, %30 : vector<16x32xf32>
    %32 = arith.truncf %31 : vector<16x32xf32> to vector<16x32xbf16>
    %c0_12 = arith.constant 0 : index
    %c0_13 = arith.constant 0 : index
    %c0_14 = arith.constant 0 : index
    %33 = vector.load %arg6[%c0_12, %c0_13, %c0_14] : memref<1x32x96xbf16, #tpu.memory_space<vmem>>, vector<1x32x96xbf16>
    %34 = vector.shape_cast %33 : vector<1x32x96xbf16> to vector<32x96xbf16>
    %cst_15 = arith.constant dense<0.000000e+00> : vector<16x96xf32>
    %35 = tpu.matmul %32, %34, %cst_15 {dimension_numbers = #tpu.dot_dimension_numbers<[1], [0], [0], [1], [0, 0, 1, 1], [], []>} : vector<16x32xbf16>, vector<32x96xbf16>, vector<16x96xf32> -> vector<16x96xf32>
    %36 = vector.shape_cast %35 : vector<16x96xf32> to vector<2x8x96xf32>
    %37 = vector.extract_strided_slice %36 {offsets = [0, 0, 0], sizes = [2, 8, 8], strides = [1, 1, 1]} : vector<2x8x96xf32> to vector<2x8x8xf32>
    %cst_16 = arith.constant 0.353553385 : f32
    %38 = vector.broadcast %cst_16 : f32 to vector<2x8x8xf32>
    %39 = arith.mulf %37, %38 : vector<2x8x8xf32>
    %40 = vector.extract_strided_slice %36 {offsets = [0, 0, 32], sizes = [2, 8, 8], strides = [1, 1, 1]} : vector<2x8x96xf32> to vector<2x8x8xf32>
    %41 = vector.extract_strided_slice %36 {offsets = [0, 0, 64], sizes = [2, 8, 8], strides = [1, 1, 1]} : vector<2x8x96xf32> to vector<2x8x8xf32>
    %42 = arith.truncf %39 : vector<2x8x8xf32> to vector<2x8x8xbf16>
    %43 = arith.truncf %40 : vector<2x8x8xf32> to vector<2x8x8xbf16>
    "tpu.trace_start"() <{level = 10 : i32, message = "bnd,bmd->bnm"}> : () -> ()
    %cst_17 = arith.constant dense<0.000000e+00> : vector<2x8x8xf32>
    %44 = tpu.matmul %42, %43, %cst_17 {dimension_numbers = #tpu.dot_dimension_numbers<[2], [2], [1], [1], [0, 0, 0, 1, 1, 1], [0], [0]>} : vector<2x8x8xbf16>, vector<2x8x8xbf16>, vector<2x8x8xf32> -> vector<2x8x8xf32>
    "tpu.trace_stop"() : () -> ()
    %cst_18 = arith.constant 1.250000e-01 : f32
    %45 = vector.broadcast %cst_18 : f32 to vector<2x8x8xf32>
    %46 = arith.mulf %44, %45 : vector<2x8x8xf32>
    %cst_19 = arith.constant 0.000000e+00 : f32
    %47 = vector.broadcast %cst_19 : f32 to vector<2x8x8xf32>
    %48 = arith.maximumf %44, %47 : vector<2x8x8xf32>
    %cst_20 = arith.constant dense<0.000000e+00> : vector<2x8xf32>
    %49 = vector.multi_reduction <add>, %48, %cst_20 [2] : vector<2x8x8xf32> to vector<2x8xf32>
    %50 = vector.shape_cast %49 : vector<2x8xf32> to vector<2x8x1xf32>
    %cst_21 = arith.constant 9.99999993E-9 : f32
    %51 = vector.broadcast %cst_21 : f32 to vector<2x8x1xf32>
    %52 = arith.addf %50, %51 : vector<2x8x1xf32>
    %53 = vector.broadcast %52 : vector<2x8x1xf32> to vector<2x8x8xf32>
    %54 = arith.divf %48, %53 : vector<2x8x8xf32>
    %c4_i32 = arith.constant 4 : i32
    %55 = arith.muli %arg1, %c4_i32 : i32
    %c0_i32_22 = arith.constant 0 : i32
    %56 = arith.addi %55, %c0_i32_22 : i32
    %57 = arith.index_cast %56 : i32 to index
    %58 = memref.load %arg2[%57] : memref<8xf32, #tpu.memory_space<smem>>
    %59 = vector.broadcast %58 : f32 to vector<2x8x8xf32>
    %60 = arith.mulf %59, %54 : vector<2x8x8xf32>
    %cst_23 = arith.constant 1.000000e+00 : f32
    %61 = arith.subf %cst_23, %58 : f32
    %62 = vector.broadcast %61 : f32 to vector<2x8x8xf32>
    %63 = arith.mulf %62, %46 : vector<2x8x8xf32>
    %64 = arith.addf %60, %63 : vector<2x8x8xf32>
    %65 = arith.truncf %64 : vector<2x8x8xf32> to vector<2x8x8xbf16>
    %66 = arith.truncf %41 : vector<2x8x8xf32> to vector<2x8x8xbf16>
    "tpu.trace_start"() <{level = 10 : i32, message = "bnm,bmd->bnd"}> : () -> ()
    %cst_24 = arith.constant dense<0.000000e+00> : vector<2x8x8xf32>
    %67 = tpu.matmul %65, %66, %cst_24 {dimension_numbers = #tpu.dot_dimension_numbers<[2], [1], [1], [2], [0, 0, 0, 1, 1, 2], [0], [0]>} : vector<2x8x8xbf16>, vector<2x8x8xbf16>, vector<2x8x8xf32> -> vector<2x8x8xf32>
    "tpu.trace_stop"() : () -> ()
    %68 = vector.shape_cast %67 : vector<2x8x8xf32> to vector<16x8xf32>
    %c0_25 = arith.constant 0 : index
    %c0_26 = arith.constant 0 : index
    %69 = vector.load %arg22[%c0_25, %c0_26] : memref<16x32xf32, #tpu.memory_space<vmem>>, vector<16x8xf32>
    tpu.vector_store %arg22[%c0_25, %c0_26], %68 {strides = array<i32>} : memref<16x32xf32, #tpu.memory_space<vmem>>, vector<16x8xf32>,
    %70 = vector.extract_strided_slice %36 {offsets = [0, 0, 8], sizes = [2, 8, 8], strides = [1, 1, 1]} : vector<2x8x96xf32> to vector<2x8x8xf32>
    %cst_27 = arith.constant 0.353553385 : f32
    %71 = vector.broadcast %cst_27 : f32 to vector<2x8x8xf32>
    %72 = arith.mulf %70, %71 : vector<2x8x8xf32>
    %73 = vector.extract_strided_slice %36 {offsets = [0, 0, 40], sizes = [2, 8, 8], strides = [1, 1, 1]} : vector<2x8x96xf32> to vector<2x8x8xf32>
    %74 = vector.extract_strided_slice %36 {offsets = [0, 0, 72], sizes = [2, 8, 8], strides = [1, 1, 1]} : vector<2x8x96xf32> to vector<2x8x8xf32>
    %75 = arith.truncf %72 : vector<2x8x8xf32> to vector<2x8x8xbf16>
    %76 = arith.truncf %73 : vector<2x8x8xf32> to vector<2x8x8xbf16>
    "tpu.trace_start"() <{level = 10 : i32, message = "bnd,bmd->bnm"}> : () -> ()
    %cst_28 = arith.constant dense<0.000000e+00> : vector<2x8x8xf32>
    %77 = tpu.matmul %75, %76, %cst_28 {dimension_numbers = #tpu.dot_dimension_numbers<[2], [2], [1], [1], [0, 0, 0, 1, 1, 1], [0], [0]>} : vector<2x8x8xbf16>, vector<2x8x8xbf16>, vector<2x8x8xf32> -> vector<2x8x8xf32>
    "tpu.trace_stop"() : () -> ()
    %cst_29 = arith.constant 1.250000e-01 : f32
    %78 = vector.broadcast %cst_29 : f32 to vector<2x8x8xf32>
    %79 = arith.mulf %77, %78 : vector<2x8x8xf32>
    %cst_30 = arith.constant 0.000000e+00 : f32
    %80 = vector.broadcast %cst_30 : f32 to vector<2x8x8xf32>
    %81 = arith.maximumf %77, %80 : vector<2x8x8xf32>
    %cst_31 = arith.constant dense<0.000000e+00> : vector<2x8xf32>
    %82 = vector.multi_reduction <add>, %81, %cst_31 [2] : vector<2x8x8xf32> to vector<2x8xf32>
    %83 = vector.shape_cast %82 : vector<2x8xf32> to vector<2x8x1xf32>
    %cst_32 = arith.constant 9.99999993E-9 : f32
    %84 = vector.broadcast %cst_32 : f32 to vector<2x8x1xf32>
    %85 = arith.addf %83, %84 : vector<2x8x1xf32>
    %86 = vector.broadcast %85 : vector<2x8x1xf32> to vector<2x8x8xf32>
    %87 = arith.divf %81, %86 : vector<2x8x8xf32>
    %c4_i32_33 = arith.constant 4 : i32
    %88 = arith.muli %arg1, %c4_i32_33 : i32
    %c1_i32 = arith.constant 1 : i32
    %89 = arith.addi %88, %c1_i32 : i32
    %90 = arith.index_cast %89 : i32 to index
    %91 = memref.load %arg2[%90] : memref<8xf32, #tpu.memory_space<smem>>
    %92 = vector.broadcast %91 : f32 to vector<2x8x8xf32>
    %93 = arith.mulf %92, %87 : vector<2x8x8xf32>
    %cst_34 = arith.constant 1.000000e+00 : f32
    %94 = arith.subf %cst_34, %91 : f32
    %95 = vector.broadcast %94 : f32 to vector<2x8x8xf32>
    %96 = arith.mulf %95, %79 : vector<2x8x8xf32>
    %97 = arith.addf %93, %96 : vector<2x8x8xf32>
    %98 = arith.truncf %97 : vector<2x8x8xf32> to vector<2x8x8xbf16>
    %99 = arith.truncf %74 : vector<2x8x8xf32> to vector<2x8x8xbf16>
    "tpu.trace_start"() <{level = 10 : i32, message = "bnm,bmd->bnd"}> : () -> ()
    %cst_35 = arith.constant dense<0.000000e+00> : vector<2x8x8xf32>
    %100 = tpu.matmul %98, %99, %cst_35 {dimension_numbers = #tpu.dot_dimension_numbers<[2], [1], [1], [2], [0, 0, 0, 1, 1, 2], [0], [0]>} : vector<2x8x8xbf16>, vector<2x8x8xbf16>, vector<2x8x8xf32> -> vector<2x8x8xf32>
    "tpu.trace_stop"() : () -> ()
    %101 = vector.shape_cast %100 : vector<2x8x8xf32> to vector<16x8xf32>
    %c0_36 = arith.constant 0 : index
    %c8 = arith.constant 8 : index
    %102 = vector.load %arg22[%c0_36, %c8] : memref<16x32xf32, #tpu.memory_space<vmem>>, vector<16x8xf32>
    tpu.vector_store %arg22[%c0_36, %c8], %101 {strides = array<i32>} : memref<16x32xf32, #tpu.memory_space<vmem>>, vector<16x8xf32>,
    %103 = vector.extract_strided_slice %36 {offsets = [0, 0, 16], sizes = [2, 8, 8], strides = [1, 1, 1]} : vector<2x8x96xf32> to vector<2x8x8xf32>
    %cst_37 = arith.constant 0.353553385 : f32
    %104 = vector.broadcast %cst_37 : f32 to vector<2x8x8xf32>
    %105 = arith.mulf %103, %104 : vector<2x8x8xf32>
    %106 = vector.extract_strided_slice %36 {offsets = [0, 0, 48], sizes = [2, 8, 8], strides = [1, 1, 1]} : vector<2x8x96xf32> to vector<2x8x8xf32>
    %107 = vector.extract_strided_slice %36 {offsets = [0, 0, 80], sizes = [2, 8, 8], strides = [1, 1, 1]} : vector<2x8x96xf32> to vector<2x8x8xf32>
    %108 = arith.truncf %105 : vector<2x8x8xf32> to vector<2x8x8xbf16>
    %109 = arith.truncf %106 : vector<2x8x8xf32> to vector<2x8x8xbf16>
    "tpu.trace_start"() <{level = 10 : i32, message = "bnd,bmd->bnm"}> : () -> ()
    %cst_38 = arith.constant dense<0.000000e+00> : vector<2x8x8xf32>
    %110 = tpu.matmul %108, %109, %cst_38 {dimension_numbers = #tpu.dot_dimension_numbers<[2], [2], [1], [1], [0, 0, 0, 1, 1, 1], [0], [0]>} : vector<2x8x8xbf16>, vector<2x8x8xbf16>, vector<2x8x8xf32> -> vector<2x8x8xf32>
    "tpu.trace_stop"() : () -> ()
    %cst_39 = arith.constant 1.250000e-01 : f32
    %111 = vector.broadcast %cst_39 : f32 to vector<2x8x8xf32>
    %112 = arith.mulf %110, %111 : vector<2x8x8xf32>
    %cst_40 = arith.constant 0.000000e+00 : f32
    %113 = vector.broadcast %cst_40 : f32 to vector<2x8x8xf32>
    %114 = arith.maximumf %110, %113 : vector<2x8x8xf32>
    %cst_41 = arith.constant dense<0.000000e+00> : vector<2x8xf32>
    %115 = vector.multi_reduction <add>, %114, %cst_41 [2] : vector<2x8x8xf32> to vector<2x8xf32>
    %116 = vector.shape_cast %115 : vector<2x8xf32> to vector<2x8x1xf32>
    %cst_42 = arith.constant 9.99999993E-9 : f32
    %117 = vector.broadcast %cst_42 : f32 to vector<2x8x1xf32>
    %118 = arith.addf %116, %117 : vector<2x8x1xf32>
    %119 = vector.broadcast %118 : vector<2x8x1xf32> to vector<2x8x8xf32>
    %120 = arith.divf %114, %119 : vector<2x8x8xf32>
    %c4_i32_43 = arith.constant 4 : i32
    %121 = arith.muli %arg1, %c4_i32_43 : i32
    %c2_i32 = arith.constant 2 : i32
    %122 = arith.addi %121, %c2_i32 : i32
    %123 = arith.index_cast %122 : i32 to index
    %124 = memref.load %arg2[%123] : memref<8xf32, #tpu.memory_space<smem>>
    %125 = vector.broadcast %124 : f32 to vector<2x8x8xf32>
    %126 = arith.mulf %125, %120 : vector<2x8x8xf32>
    %cst_44 = arith.constant 1.000000e+00 : f32
    %127 = arith.subf %cst_44, %124 : f32
    %128 = vector.broadcast %127 : f32 to vector<2x8x8xf32>
    %129 = arith.mulf %128, %112 : vector<2x8x8xf32>
    %130 = arith.addf %126, %129 : vector<2x8x8xf32>
    %131 = arith.truncf %130 : vector<2x8x8xf32> to vector<2x8x8xbf16>
    %132 = arith.truncf %107 : vector<2x8x8xf32> to vector<2x8x8xbf16>
    "tpu.trace_start"() <{level = 10 : i32, message = "bnm,bmd->bnd"}> : () -> ()
    %cst_45 = arith.constant dense<0.000000e+00> : vector<2x8x8xf32>
    %133 = tpu.matmul %131, %132, %cst_45 {dimension_numbers = #tpu.dot_dimension_numbers<[2], [1], [1], [2], [0, 0, 0, 1, 1, 2], [0], [0]>} : vector<2x8x8xbf16>, vector<2x8x8xbf16>, vector<2x8x8xf32> -> vector<2x8x8xf32>
    "tpu.trace_stop"() : () -> ()
    %134 = vector.shape_cast %133 : vector<2x8x8xf32> to vector<16x8xf32>
    %c0_46 = arith.constant 0 : index
    %c16 = arith.constant 16 : index
    %135 = vector.load %arg22[%c0_46, %c16] : memref<16x32xf32, #tpu.memory_space<vmem>>, vector<16x8xf32>
    tpu.vector_store %arg22[%c0_46, %c16], %134 {strides = array<i32>} : memref<16x32xf32, #tpu.memory_space<vmem>>, vector<16x8xf32>,
    %136 = vector.extract_strided_slice %36 {offsets = [0, 0, 24], sizes = [2, 8, 8], strides = [1, 1, 1]} : vector<2x8x96xf32> to vector<2x8x8xf32>
    %cst_47 = arith.constant 0.353553385 : f32
    %137 = vector.broadcast %cst_47 : f32 to vector<2x8x8xf32>
    %138 = arith.mulf %136, %137 : vector<2x8x8xf32>
    %139 = vector.extract_strided_slice %36 {offsets = [0, 0, 56], sizes = [2, 8, 8], strides = [1, 1, 1]} : vector<2x8x96xf32> to vector<2x8x8xf32>
    %140 = vector.extract_strided_slice %36 {offsets = [0, 0, 88], sizes = [2, 8, 8], strides = [1, 1, 1]} : vector<2x8x96xf32> to vector<2x8x8xf32>
    %141 = arith.truncf %138 : vector<2x8x8xf32> to vector<2x8x8xbf16>
    %142 = arith.truncf %139 : vector<2x8x8xf32> to vector<2x8x8xbf16>
    "tpu.trace_start"() <{level = 10 : i32, message = "bnd,bmd->bnm"}> : () -> ()
    %cst_48 = arith.constant dense<0.000000e+00> : vector<2x8x8xf32>
    %143 = tpu.matmul %141, %142, %cst_48 {dimension_numbers = #tpu.dot_dimension_numbers<[2], [2], [1], [1], [0, 0, 0, 1, 1, 1], [0], [0]>} : vector<2x8x8xbf16>, vector<2x8x8xbf16>, vector<2x8x8xf32> -> vector<2x8x8xf32>
    "tpu.trace_stop"() : () -> ()
    %cst_49 = arith.constant 1.250000e-01 : f32
    %144 = vector.broadcast %cst_49 : f32 to vector<2x8x8xf32>
    %145 = arith.mulf %143, %144 : vector<2x8x8xf32>
    %cst_50 = arith.constant 0.000000e+00 : f32
    %146 = vector.broadcast %cst_50 : f32 to vector<2x8x8xf32>
    %147 = arith.maximumf %143, %146 : vector<2x8x8xf32>
    %cst_51 = arith.constant dense<0.000000e+00> : vector<2x8xf32>
    %148 = vector.multi_reduction <add>, %147, %cst_51 [2] : vector<2x8x8xf32> to vector<2x8xf32>
    %149 = vector.shape_cast %148 : vector<2x8xf32> to vector<2x8x1xf32>
    %cst_52 = arith.constant 9.99999993E-9 : f32
    %150 = vector.broadcast %cst_52 : f32 to vector<2x8x1xf32>
    %151 = arith.addf %149, %150 : vector<2x8x1xf32>
    %152 = vector.broadcast %151 : vector<2x8x1xf32> to vector<2x8x8xf32>
    %153 = arith.divf %147, %152 : vector<2x8x8xf32>
    %c4_i32_53 = arith.constant 4 : i32
    %154 = arith.muli %arg1, %c4_i32_53 : i32
    %c3_i32 = arith.constant 3 : i32
    %155 = arith.addi %154, %c3_i32 : i32
    %156 = arith.index_cast %155 : i32 to index
    %157 = memref.load %arg2[%156] : memref<8xf32, #tpu.memory_space<smem>>
    %158 = vector.broadcast %157 : f32 to vector<2x8x8xf32>
    %159 = arith.mulf %158, %153 : vector<2x8x8xf32>
    %cst_54 = arith.constant 1.000000e+00 : f32
    %160 = arith.subf %cst_54, %157 : f32
    %161 = vector.broadcast %160 : f32 to vector<2x8x8xf32>
    %162 = arith.mulf %161, %145 : vector<2x8x8xf32>
    %163 = arith.addf %159, %162 : vector<2x8x8xf32>
    %164 = arith.truncf %163 : vector<2x8x8xf32> to vector<2x8x8xbf16>
    %165 = arith.truncf %140 : vector<2x8x8xf32> to vector<2x8x8xbf16>
    "tpu.trace_start"() <{level = 10 : i32, message = "bnm,bmd->bnd"}> : () -> ()
    %cst_55 = arith.constant dense<0.000000e+00> : vector<2x8x8xf32>
    %166 = tpu.matmul %164, %165, %cst_55 {dimension_numbers = #tpu.dot_dimension_numbers<[2], [1], [1], [2], [0, 0, 0, 1, 1, 2], [0], [0]>} : vector<2x8x8xbf16>, vector<2x8x8xbf16>, vector<2x8x8xf32> -> vector<2x8x8xf32>
    "tpu.trace_stop"() : () -> ()
    %167 = vector.shape_cast %166 : vector<2x8x8xf32> to vector<16x8xf32>
    %c0_56 = arith.constant 0 : index
    %c24 = arith.constant 24 : index
    %168 = vector.load %arg22[%c0_56, %c24] : memref<16x32xf32, #tpu.memory_space<vmem>>, vector<16x8xf32>
    tpu.vector_store %arg22[%c0_56, %c24], %167 {strides = array<i32>} : memref<16x32xf32, #tpu.memory_space<vmem>>, vector<16x8xf32>,
    %c0_57 = arith.constant 0 : index
    %c0_58 = arith.constant 0 : index
    %169 = vector.load %arg22[%c0_57, %c0_58] : memref<16x32xf32, #tpu.memory_space<vmem>>, vector<16x32xf32>
    %170 = arith.truncf %169 : vector<16x32xf32> to vector<16x32xbf16>
    %c0_59 = arith.constant 0 : index
    %c0_60 = arith.constant 0 : index
    %c0_61 = arith.constant 0 : index
    %171 = vector.load %arg7[%c0_59, %c0_60, %c0_61] : memref<1x32x32xbf16, #tpu.memory_space<vmem>>, vector<1x32x32xbf16>
    %172 = vector.shape_cast %171 : vector<1x32x32xbf16> to vector<32x32xbf16>
    %cst_62 = arith.constant dense<0.000000e+00> : vector<16x32xf32>
    %173 = tpu.matmul %170, %172, %cst_62 {dimension_numbers = #tpu.dot_dimension_numbers<[1], [0], [0], [1], [0, 0, 1, 1], [], []>} : vector<16x32xbf16>, vector<32x32xbf16>, vector<16x32xf32> -> vector<16x32xf32>
    %c0_63 = arith.constant 0 : index
    %c0_64 = arith.constant 0 : index
    %c0_65 = arith.constant 0 : index
    %174 = vector.load %arg8[%c0_63, %c0_64, %c0_65] : memref<1x1x32xf32, #tpu.memory_space<vmem>>, vector<1x1x32xf32>
    %175 = vector.shape_cast %174 : vector<1x1x32xf32> to vector<32xf32>
    %176 = vector.shape_cast %175 : vector<32xf32> to vector<1x32xf32>
    %177 = vector.broadcast %176 : vector<1x32xf32> to vector<16x32xf32>
    %178 = arith.addf %173, %177 : vector<16x32xf32>
    %179 = arith.addf %3, %178 : vector<16x32xf32>
    %c0_66 = arith.constant 0 : index
    %c0_67 = arith.constant 0 : index
    %c0_68 = arith.constant 0 : index
    %180 = vector.load %arg9[%c0_66, %c0_67, %c0_68] : memref<1x1x32xf32, #tpu.memory_space<vmem>>, vector<1x1x32xf32>
    %181 = vector.shape_cast %180 : vector<1x1x32xf32> to vector<32xf32>
    %c0_69 = arith.constant 0 : index
    %c0_70 = arith.constant 0 : index
    %c0_71 = arith.constant 0 : index
    %182 = vector.load %arg10[%c0_69, %c0_70, %c0_71] : memref<1x1x32xf32, #tpu.memory_space<vmem>>, vector<1x1x32xf32>
    %183 = vector.shape_cast %182 : vector<1x1x32xf32> to vector<32xf32>
    %cst_72 = arith.constant dense<0.000000e+00> : vector<16xf32>
    %184 = vector.multi_reduction <add>, %179, %cst_72 [1] : vector<16x32xf32> to vector<16xf32>
    %185 = vector.shape_cast %184 : vector<16xf32> to vector<16x1xf32>
    %cst_73 = arith.constant 3.200000e+01 : f32
    %186 = vector.broadcast %cst_73 : f32 to vector<16x1xf32>
    %187 = arith.divf %185, %186 : vector<16x1xf32>
    %188 = vector.broadcast %187 : vector<16x1xf32> to vector<16x32xf32>
    %189 = arith.subf %179, %188 : vector<16x32xf32>
    %190 = arith.mulf %189, %189 : vector<16x32xf32>
    %cst_74 = arith.constant dense<0.000000e+00> : vector<16xf32>
    %191 = vector.multi_reduction <add>, %190, %cst_74 [1] : vector<16x32xf32> to vector<16xf32>
    %192 = vector.shape_cast %191 : vector<16xf32> to vector<16x1xf32>
    %cst_75 = arith.constant 3.200000e+01 : f32
    %193 = vector.broadcast %cst_75 : f32 to vector<16x1xf32>
    %194 = arith.divf %192, %193 : vector<16x1xf32>
    %195 = vector.broadcast %187 : vector<16x1xf32> to vector<16x32xf32>
    %196 = arith.subf %179, %195 : vector<16x32xf32>
    %cst_76 = arith.constant 9.99999974E-6 : f32
    %197 = vector.broadcast %cst_76 : f32 to vector<16x1xf32>
    %198 = arith.addf %194, %197 : vector<16x1xf32>
    %199 = math.rsqrt %198 : vector<16x1xf32>
    %200 = vector.broadcast %199 : vector<16x1xf32> to vector<16x32xf32>
    %201 = arith.mulf %196, %200 : vector<16x32xf32>
    %202 = vector.shape_cast %181 : vector<32xf32> to vector<1x32xf32>
    %203 = vector.broadcast %202 : vector<1x32xf32> to vector<16x32xf32>
    %204 = arith.mulf %201, %203 : vector<16x32xf32>
    %205 = vector.shape_cast %183 : vector<32xf32> to vector<1x32xf32>
    %206 = vector.broadcast %205 : vector<1x32xf32> to vector<16x32xf32>
    %207 = arith.addf %204, %206 : vector<16x32xf32>
    %208 = arith.truncf %207 : vector<16x32xf32> to vector<16x32xbf16>
    %c0_77 = arith.constant 0 : index
    %c0_78 = arith.constant 0 : index
    %c0_79 = arith.constant 0 : index
    %209 = vector.load %arg11[%c0_77, %c0_78, %c0_79] : memref<1x32x64xbf16, #tpu.memory_space<vmem>>, vector<1x32x64xbf16>
    %210 = vector.shape_cast %209 : vector<1x32x64xbf16> to vector<32x64xbf16>
    %cst_80 = arith.constant dense<0.000000e+00> : vector<16x64xf32>
    %211 = tpu.matmul %208, %210, %cst_80 {dimension_numbers = #tpu.dot_dimension_numbers<[1], [0], [0], [1], [0, 0, 1, 1], [], []>} : vector<16x32xbf16>, vector<32x64xbf16>, vector<16x64xf32> -> vector<16x64xf32>
    %c0_81 = arith.constant 0 : index
    %c0_82 = arith.constant 0 : index
    %c0_83 = arith.constant 0 : index
    %212 = vector.load %arg12[%c0_81, %c0_82, %c0_83] : memref<1x1x64xf32, #tpu.memory_space<vmem>>, vector<1x1x64xf32>
    %213 = vector.shape_cast %212 : vector<1x1x64xf32> to vector<64xf32>
    %214 = vector.shape_cast %213 : vector<64xf32> to vector<1x64xf32>
    %215 = vector.broadcast %214 : vector<1x64xf32> to vector<16x64xf32>
    %216 = arith.addf %211, %215 : vector<16x64xf32>
    %cst_84 = arith.constant 5.000000e-01 : f32
    %217 = vector.broadcast %cst_84 : f32 to vector<16x64xf32>
    %218 = arith.mulf %217, %216 : vector<16x64xf32>
    %cst_85 = arith.constant 0.707106769 : f32
    %219 = vector.broadcast %cst_85 : f32 to vector<16x64xf32>
    %220 = arith.mulf %216, %219 : vector<16x64xf32>
    %221 = math.erf %220 : vector<16x64xf32>
    %cst_86 = arith.constant 1.000000e+00 : f32
    %222 = vector.broadcast %cst_86 : f32 to vector<16x64xf32>
    %223 = arith.addf %222, %221 : vector<16x64xf32>
    %224 = arith.mulf %218, %223 : vector<16x64xf32>
    %225 = arith.truncf %224 : vector<16x64xf32> to vector<16x64xbf16>
    %c0_87 = arith.constant 0 : index
    %c0_88 = arith.constant 0 : index
    %c0_89 = arith.constant 0 : index
    %226 = vector.load %arg13[%c0_87, %c0_88, %c0_89] : memref<1x64x32xbf16, #tpu.memory_space<vmem>>, vector<1x64x32xbf16>
    %227 = vector.shape_cast %226 : vector<1x64x32xbf16> to vector<64x32xbf16>
    %cst_90 = arith.constant dense<0.000000e+00> : vector<16x32xf32>
    %228 = tpu.matmul %225, %227, %cst_90 {dimension_numbers = #tpu.dot_dimension_numbers<[1], [0], [0], [1], [0, 0, 1, 1], [], []>} : vector<16x64xbf16>, vector<64x32xbf16>, vector<16x32xf32> -> vector<16x32xf32>
    %c0_91 = arith.constant 0 : index
    %c0_92 = arith.constant 0 : index
    %c0_93 = arith.constant 0 : index
    %229 = vector.load %arg14[%c0_91, %c0_92, %c0_93] : memref<1x1x32xf32, #tpu.memory_space<vmem>>, vector<1x1x32xf32>
    %230 = vector.shape_cast %229 : vector<1x1x32xf32> to vector<32xf32>
    %231 = vector.shape_cast %230 : vector<32xf32> to vector<1x32xf32>
    %232 = vector.broadcast %231 : vector<1x32xf32> to vector<16x32xf32>
    %233 = arith.addf %228, %232 : vector<16x32xf32>
    %234 = arith.addf %207, %233 : vector<16x32xf32>
    %c0_94 = arith.constant 0 : index
    %c0_95 = arith.constant 0 : index
    %235 = vector.load %arg21[%c0_94, %c0_95] : memref<16x32xf32, #tpu.memory_space<vmem>>, vector<16x32xf32>
    tpu.vector_store %arg21[%c0_94, %c0_95], %234 {strides = array<i32>} : memref<16x32xf32, #tpu.memory_space<vmem>>, vector<16x32xf32>,
    %c1_i32_96 = arith.constant 1 : i32
    %236 = arith.cmpi eq, %arg1, %c1_i32_96 : i32
    %237 = arith.extui %236 : i1 to i32
    %c0_i32_97 = arith.constant 0 : i32
    %238 = arith.cmpi ne, %237, %c0_i32_97 : i32
    scf.if %238 {
      %c0_98 = arith.constant 0 : index
      %c0_99 = arith.constant 0 : index
      %239 = vector.load %arg21[%c0_98, %c0_99] : memref<16x32xf32, #tpu.memory_space<vmem>>, vector<16x32xf32>
      %c0_100 = arith.constant 0 : index
      %c0_101 = arith.constant 0 : index
      %240 = vector.load %arg15[%c0_100, %c0_101] : memref<1x32xf32, #tpu.memory_space<vmem>>, vector<1x32xf32>
      %241 = vector.shape_cast %240 : vector<1x32xf32> to vector<32xf32>
      %c0_102 = arith.constant 0 : index
      %c0_103 = arith.constant 0 : index
      %242 = vector.load %arg16[%c0_102, %c0_103] : memref<1x32xf32, #tpu.memory_space<vmem>>, vector<1x32xf32>
      %243 = vector.shape_cast %242 : vector<1x32xf32> to vector<32xf32>
      %cst_104 = arith.constant dense<0.000000e+00> : vector<16xf32>
      %244 = vector.multi_reduction <add>, %239, %cst_104 [1] : vector<16x32xf32> to vector<16xf32>
      %245 = vector.shape_cast %244 : vector<16xf32> to vector<16x1xf32>
      %cst_105 = arith.constant 3.200000e+01 : f32
      %246 = vector.broadcast %cst_105 : f32 to vector<16x1xf32>
      %247 = arith.divf %245, %246 : vector<16x1xf32>
      %248 = vector.broadcast %247 : vector<16x1xf32> to vector<16x32xf32>
      %249 = arith.subf %239, %248 : vector<16x32xf32>
      %250 = arith.mulf %249, %249 : vector<16x32xf32>
      %cst_106 = arith.constant dense<0.000000e+00> : vector<16xf32>
      %251 = vector.multi_reduction <add>, %250, %cst_106 [1] : vector<16x32xf32> to vector<16xf32>
      %252 = vector.shape_cast %251 : vector<16xf32> to vector<16x1xf32>
      %cst_107 = arith.constant 3.200000e+01 : f32
      %253 = vector.broadcast %cst_107 : f32 to vector<16x1xf32>
      %254 = arith.divf %252, %253 : vector<16x1xf32>
      %255 = vector.broadcast %247 : vector<16x1xf32> to vector<16x32xf32>
      %256 = arith.subf %239, %255 : vector<16x32xf32>
      %cst_108 = arith.constant 9.99999974E-6 : f32
      %257 = vector.broadcast %cst_108 : f32 to vector<16x1xf32>
      %258 = arith.addf %254, %257 : vector<16x1xf32>
      %259 = math.rsqrt %258 : vector<16x1xf32>
      %260 = vector.broadcast %259 : vector<16x1xf32> to vector<16x32xf32>
      %261 = arith.mulf %256, %260 : vector<16x32xf32>
      %262 = vector.shape_cast %241 : vector<32xf32> to vector<1x32xf32>
      %263 = vector.broadcast %262 : vector<1x32xf32> to vector<16x32xf32>
      %264 = arith.mulf %261, %263 : vector<16x32xf32>
      %265 = vector.shape_cast %243 : vector<32xf32> to vector<1x32xf32>
      %266 = vector.broadcast %265 : vector<1x32xf32> to vector<16x32xf32>
      %267 = arith.addf %264, %266 : vector<16x32xf32>
      %c0_109 = arith.constant 0 : index
      %c0_110 = arith.constant 0 : index
      %c0_111 = arith.constant 0 : index
      %268 = vector.load %arg19[%c0_109, %c0_110, %c0_111] : memref<1x16x32xf32, #tpu.memory_space<vmem>>, vector<1x16x32xf32>
      %269 = vector.shape_cast %268 : vector<1x16x32xf32> to vector<16x32xf32>
      %270 = vector.shape_cast %267 : vector<16x32xf32> to vector<1x16x32xf32>
      tpu.vector_store %arg19[%c0_109, %c0_110, %c0_111], %270 {strides = array<i32>} : memref<1x16x32xf32, #tpu.memory_space<vmem>>, vector<1x16x32xf32>,
      %271 = vector.shape_cast %267 : vector<16x32xf32> to vector<2x8x32xf32>
      %c0_112 = arith.constant 0 : index
      %c0_113 = arith.constant 0 : index
      %272 = vector.load %arg17[%c0_112, %c0_113] : memref<1x32xf32, #tpu.memory_space<vmem>>, vector<1x32xf32>
      %273 = vector.shape_cast %272 : vector<1x32xf32> to vector<32xf32>
      %274 = vector.shape_cast %273 : vector<32xf32> to vector<1x1x32xf32>
      %275 = vector.broadcast %274 : vector<1x1x32xf32> to vector<2x8x32xf32>
      %276 = arith.mulf %271, %275 : vector<2x8x32xf32>
      %cst_114 = arith.constant dense<0.000000e+00> : vector<2x8xf32>
      %277 = vector.multi_reduction <add>, %276, %cst_114 [2] : vector<2x8x32xf32> to vector<2x8xf32>
      %278 = vector.shape_cast %277 : vector<2x8xf32> to vector<2x8x1xf32>
      %c0_115 = arith.constant 0 : index
      %c0_116 = arith.constant 0 : index
      %279 = vector.load %arg18[%c0_115, %c0_116] : memref<1x1xf32, #tpu.memory_space<vmem>>, vector<1x1xf32>
      %280 = vector.extract %279[0, 0] : f32 from vector<1x1xf32>
      %281 = vector.broadcast %280 : f32 to vector<2x8x1xf32>
      %282 = arith.addf %278, %281 : vector<2x8x1xf32>
      %cst_117 = arith.constant dense<0xFF800000> : vector<2x1xf32>
      %283 = vector.multi_reduction <maximumf>, %282, %cst_117 [1] : vector<2x8x1xf32> to vector<2x1xf32>
      %284 = vector.shape_cast %283 : vector<2x1xf32> to vector<2x1x1xf32>
      %285 = vector.broadcast %284 : vector<2x1x1xf32> to vector<2x8x1xf32>
      %286 = arith.subf %282, %285 : vector<2x8x1xf32>
      %287 = math.exp %286 : vector<2x8x1xf32>
      %cst_118 = arith.constant dense<0.000000e+00> : vector<2x1xf32>
      %288 = vector.multi_reduction <add>, %287, %cst_118 [1] : vector<2x8x1xf32> to vector<2x1xf32>
      %289 = vector.shape_cast %288 : vector<2x1xf32> to vector<2x1x1xf32>
      %290 = vector.broadcast %289 : vector<2x1x1xf32> to vector<2x8x1xf32>
      %291 = arith.divf %287, %290 : vector<2x8x1xf32>
      %292 = vector.broadcast %291 : vector<2x8x1xf32> to vector<2x8x32xf32>
      %293 = arith.mulf %292, %271 : vector<2x8x32xf32>
      %cst_119 = arith.constant dense<0.000000e+00> : vector<2x32xf32>
      %294 = vector.multi_reduction <add>, %293, %cst_119 [1] : vector<2x8x32xf32> to vector<2x32xf32>
      %c0_120 = arith.constant 0 : index
      %c0_121 = arith.constant 0 : index
      %c0_122 = arith.constant 0 : index
      %295 = vector.load %arg20[%c0_120, %c0_121, %c0_122] : memref<1x2x32xf32, #tpu.memory_space<vmem>>, vector<1x2x32xf32>
      %296 = vector.shape_cast %295 : vector<1x2x32xf32> to vector<2x32xf32>
      %297 = vector.shape_cast %294 : vector<2x32xf32> to vector<1x2x32xf32>
      tpu.vector_store %arg20[%c0_120, %c0_121, %c0_122], %297 {strides = array<i32>} : memref<1x2x32xf32, #tpu.memory_space<vmem>>, vector<1x2x32xf32>,
    } else {
    }
    return
  }
  func.func @transform_0(%arg0: i32, %arg1: i32) -> i32 {
    %c0_i32 = arith.constant 0 : i32
    %c0_i32_0 = arith.constant 0 : i32
    return %c0_i32 : i32
  }
  func.func @transform_1(%arg0: i32, %arg1: i32) -> (i32, i32, i32) {
    %c0_i32 = arith.constant 0 : i32
    %c0_i32_0 = arith.constant 0 : i32
    %c0_i32_1 = arith.constant 0 : i32
    return %arg0, %c0_i32, %c0_i32_0 : i32, i32, i32
  }
  func.func @transform_2(%arg0: i32, %arg1: i32) -> (i32, i32, i32) {
    %c0_i32 = arith.constant 0 : i32
    %c0_i32_0 = arith.constant 0 : i32
    %c0_i32_1 = arith.constant 0 : i32
    return %arg1, %c0_i32, %c0_i32_0 : i32, i32, i32
  }
  func.func @transform_3(%arg0: i32, %arg1: i32) -> (i32, i32, i32) {
    %c0_i32 = arith.constant 0 : i32
    %c0_i32_0 = arith.constant 0 : i32
    %c0_i32_1 = arith.constant 0 : i32
    return %arg1, %c0_i32, %c0_i32_0 : i32, i32, i32
  }
  func.func @transform_4(%arg0: i32, %arg1: i32) -> (i32, i32, i32) {
    %c0_i32 = arith.constant 0 : i32
    %c0_i32_0 = arith.constant 0 : i32
    %c0_i32_1 = arith.constant 0 : i32
    return %arg1, %c0_i32, %c0_i32_0 : i32, i32, i32
  }
  func.func @transform_5(%arg0: i32, %arg1: i32) -> (i32, i32, i32) {
    %c0_i32 = arith.constant 0 : i32
    %c0_i32_0 = arith.constant 0 : i32
    %c0_i32_1 = arith.constant 0 : i32
    return %arg1, %c0_i32, %c0_i32_0 : i32, i32, i32
  }
  func.func @transform_6(%arg0: i32, %arg1: i32) -> (i32, i32, i32) {
    %c0_i32 = arith.constant 0 : i32
    %c0_i32_0 = arith.constant 0 : i32
    %c0_i32_1 = arith.constant 0 : i32
    return %arg1, %c0_i32, %c0_i32_0 : i32, i32, i32
  }
  func.func @transform_7(%arg0: i32, %arg1: i32) -> (i32, i32, i32) {
    %c0_i32 = arith.constant 0 : i32
    %c0_i32_0 = arith.constant 0 : i32
    %c0_i32_1 = arith.constant 0 : i32
    return %arg1, %c0_i32, %c0_i32_0 : i32, i32, i32
  }
  func.func @transform_8(%arg0: i32, %arg1: i32) -> (i32, i32, i32) {
    %c0_i32 = arith.constant 0 : i32
    %c0_i32_0 = arith.constant 0 : i32
    %c0_i32_1 = arith.constant 0 : i32
    return %arg1, %c0_i32, %c0_i32_0 : i32, i32, i32
  }
  func.func @transform_9(%arg0: i32, %arg1: i32) -> (i32, i32, i32) {
    %c0_i32 = arith.constant 0 : i32
    %c0_i32_0 = arith.constant 0 : i32
    %c0_i32_1 = arith.constant 0 : i32
    return %arg1, %c0_i32, %c0_i32_0 : i32, i32, i32
  }
  func.func @transform_10(%arg0: i32, %arg1: i32) -> (i32, i32, i32) {
    %c0_i32 = arith.constant 0 : i32
    %c0_i32_0 = arith.constant 0 : i32
    %c0_i32_1 = arith.constant 0 : i32
    return %arg1, %c0_i32, %c0_i32_0 : i32, i32, i32
  }
  func.func @transform_11(%arg0: i32, %arg1: i32) -> (i32, i32, i32) {
    %c0_i32 = arith.constant 0 : i32
    %c0_i32_0 = arith.constant 0 : i32
    %c0_i32_1 = arith.constant 0 : i32
    return %arg1, %c0_i32, %c0_i32_0 : i32, i32, i32
  }
  func.func @transform_12(%arg0: i32, %arg1: i32) -> (i32, i32, i32) {
    %c0_i32 = arith.constant 0 : i32
    %c0_i32_0 = arith.constant 0 : i32
    %c0_i32_1 = arith.constant 0 : i32
    return %arg1, %c0_i32, %c0_i32_0 : i32, i32, i32
  }
  func.func @transform_13(%arg0: i32, %arg1: i32) -> (i32, i32) {
    %c0_i32 = arith.constant 0 : i32
    %c0_i32_0 = arith.constant 0 : i32
    %c0_i32_1 = arith.constant 0 : i32
    return %c0_i32, %c0_i32_0 : i32, i32
  }
  func.func @transform_14(%arg0: i32, %arg1: i32) -> (i32, i32) {
    %c0_i32 = arith.constant 0 : i32
    %c0_i32_0 = arith.constant 0 : i32
    %c0_i32_1 = arith.constant 0 : i32
    return %c0_i32, %c0_i32_0 : i32, i32
  }
  func.func @transform_15(%arg0: i32, %arg1: i32) -> (i32, i32) {
    %c0_i32 = arith.constant 0 : i32
    %c0_i32_0 = arith.constant 0 : i32
    %c0_i32_1 = arith.constant 0 : i32
    return %c0_i32, %c0_i32_0 : i32, i32
  }
  func.func @transform_16(%arg0: i32, %arg1: i32) -> (i32, i32) {
    %c0_i32 = arith.constant 0 : i32
    %c0_i32_0 = arith.constant 0 : i32
    %c0_i32_1 = arith.constant 0 : i32
    return %c0_i32, %c0_i32_0 : i32, i32
  }
  func.func @transform_17(%arg0: i32, %arg1: i32) -> (i32, i32, i32) {
    %c0_i32 = arith.constant 0 : i32
    %c0_i32_0 = arith.constant 0 : i32
    %c0_i32_1 = arith.constant 0 : i32
    return %arg0, %c0_i32, %c0_i32_0 : i32, i32, i32
  }
  func.func @transform_18(%arg0: i32, %arg1: i32) -> (i32, i32, i32) {
    %c0_i32 = arith.constant 0 : i32
    %c0_i32_0 = arith.constant 0 : i32
    %c0_i32_1 = arith.constant 0 : i32
    return %arg0, %c0_i32, %c0_i32_0 : i32, i32, i32
  }
}

</mosaic_0001>

<llo_original>
// kernel: tpu_custom_call.1
$region0: #{tpu_custom_call.1}
  #allocation0 [shape = 'u32[]', space=smem, size = 0x4, offset = 0x4, fixed_abs, tag = 'smem constant byte address 0x4 - core index']
  #allocation1 [shape = 'u32[144,128]{1,0:T(1,128)}', space=vmem, size = 0x12000, scoped, tag = 'internal scratch']
  #allocation2 [shape = 'f32[16,32]{1,0:T(8,128)}', space=vmem, size = 0x2000, scoped, tag = 'scratch operand']
  #allocation3 [shape = 'f32[16,32]{1,0:T(8,128)}', space=vmem, size = 0x2000, scoped, tag = 'scratch operand']
  #allocation4 [shape = 'f32[1,1]{1,0:T(1,128)S(1)}', space=vmem, size = 0x200, scoped, tag = 'scoped memory for tpu_custom_call.1']
  %s0 = inlined_call_operand.vmem [shape: f32[8], index: 0, kind: input, shape index: {}]
  %s1 = inlined_call_operand.vmem [shape: f32[2,16,32], index: 1, kind: input, shape index: {}]
  %s2 = inlined_call_operand.vmem [shape: f32[2,1,32], index: 2, kind: input, shape index: {}]
  %s3 = inlined_call_operand.vmem [shape: f32[2,1,32], index: 3, kind: input, shape index: {}]
  %s4 = inlined_call_operand.vmem [shape: bf16[2,32,96], index: 4, kind: input, shape index: {}]
  %s5 = inlined_call_operand.vmem [shape: bf16[2,32,32], index: 5, kind: input, shape index: {}]
  %s6 = inlined_call_operand.vmem [shape: f32[2,1,32], index: 6, kind: input, shape index: {}]
  %s7 = inlined_call_operand.vmem [shape: f32[2,1,32], index: 7, kind: input, shape index: {}]
  %s8 = inlined_call_operand.vmem [shape: f32[2,1,32], index: 8, kind: input, shape index: {}]
  %s9 = inlined_call_operand.hbm [shape: bf16[2,32,64], index: 9, kind: input, shape index: {}]
  %s10 = inlined_call_operand.vmem [shape: f32[2,1,64], index: 10, kind: input, shape index: {}]
  %s11 = inlined_call_operand.vmem [shape: bf16[2,64,32], index: 11, kind: input, shape index: {}]
  %s12 = inlined_call_operand.vmem [shape: f32[2,1,32], index: 12, kind: input, shape index: {}]
  %s13 = inlined_call_operand.vmem [shape: f32[1,32], index: 13, kind: input, shape index: {}]
  %s14 = inlined_call_operand.vmem [shape: f32[1,32], index: 14, kind: input, shape index: {}]
  %s15 = inlined_call_operand.vmem [shape: f32[1,32], index: 15, kind: input, shape index: {}]
  %s16 = inlined_call_operand.<no memory space> [shape: f32[1,1], index: 16, kind: input, shape index: {}]
  %s17 = inlined_call_operand.hbm [shape: f32[2,16,32], index: 17, kind: output, shape index: {0}]
  %s18 = inlined_call_operand.hbm [shape: f32[2,2,32], index: 18, kind: output, shape index: {1}]
  %19 = xla_tuple %s17, %s18
  %s20 = sld [smem:[#allocation0]]
  $region125: #{tpu_custom_call.1} parent=0
    _
  %s22 = ssub.s32 1, %s20
  %s23 = scalar_select 0, %s22, %s20
  %v24 = vstv %s16
  %25 = vst [vmem:[#allocation4] sm:$0x1] %v24
  $region1: #{tpu_custom_call.1} parent=0
    #allocation5 [shape = 'u8[512]{0}', space=smem, size = 0x200, scoped, tag = 'input window, operand 0, single buffered']
    #allocation6 [shape = 's32[2]{0}', space=sflag, size = 0x8, scoped, tag = 'scoped memory for tpu_custom_call.1']
    #allocation7 [shape = 's32[2]{0}', space=sflag, size = 0x8, scoped, tag = 'scoped memory for tpu_custom_call.1']
    #allocation8 [shape = 's32[2]{0}', space=sflag, size = 0x8, scoped, tag = 'scoped memory for tpu_custom_call.1']
    #allocation9 [shape = 'u8[16384]{0}', space=vmem, size = 0x4000, scoped, tag = 'input window, operand 9']
    #allocation10 [shape = 'u8[16384]{0}', space=vmem, size = 0x4000, scoped, tag = 'output window, operand 0']
    #allocation11 [shape = 'u8[2048]{0}', space=vmem, size = 0x800, scoped, tag = 'output window, operand 1']
    #allocation12 [shape = 's32[2]{0}', space=sflag, size = 0x8, scoped, tag = 'scoped memory for tpu_custom_call.1']
    %26 = vsyncpa [#allocation8], 0
    %27 = vsyncpa [#allocation6], 0
    %s28 = scalar_lea.sflag [#allocation6], 1
    %29 = vsyncpa %s28, 0
    %30 = vsyncpa [#allocation7], 0
    %s31 = scalar_lea.sflag [#allocation7], 1
    %32 = vsyncpa %s31, 0
    %33 = vsyncpa [#allocation12], 0
    %s34 = scalar_lea.sflag [#allocation12], 1
    %35 = vsyncpa %s34, 0
    loop: start=0, step=1, limit=6
    $region2: #{tpu_custom_call.1} parent=1 // loop_pre_header
      _
    $region3: #{tpu_custom_call.1} parent=1 // loop_header
      %s37 = sphi 0, %s41
      %p38 = scmp.ge.s32.totalorder %s37, 6
      %s44 = sphi 0, %s56
      %s45 = sphi 0, %s52
      %s46 = sphi 0, %s44
      %s47 = sphi 0, %s45
      %s48 = sphi 0, %s46
      %s49 = sphi 0, %s47
      %s57 = sphi 0, %s57
      %s59 = sphi 0, %s57
      %s60 = sphi 0, %s59
      %s74 = sphi 0, %s60
      %s80 = sphi 0, %s82
      %s83 = sphi 0, %s80
      %s84 = sphi 0, %s83
      %s100 = sphi 0, %s84
      %s106 = sphi 0, %s108
      %s109 = sphi 0, %s106
      %s110 = sphi 0, %s109
      %s126 = sphi 0, %s110
      %s132 = sphi 0, %s134
      %s135 = sphi 0, %s132
      %s136 = sphi 0, %s135
      %s152 = sphi 0, %s136
      %s158 = sphi 0, %s160
      %s161 = sphi 0, %s158
      %s162 = sphi 0, %s161
      %s178 = sphi 0, %s162
      %s184 = sphi 0, %s186
      %s187 = sphi 0, %s184
      %s188 = sphi 0, %s187
      %s204 = sphi 0, %s188
      %s210 = sphi 0, %s212
      %s213 = sphi 0, %s210
      %s214 = sphi 0, %s213
      %s230 = sphi 0, %s214
      %s236 = sphi 0, %s238
      %s239 = sphi 0, %s236
      %s240 = sphi 0, %s239
      %s256 = sphi 0, %s240
      %s262 = sphi 0, %s264
      %s265 = sphi 0, %s262
      %s266 = sphi 0, %s265
      %s282 = sphi 0, %s266
      %s288 = sphi 0, %s290
      %s291 = sphi 0, %s288
      %s292 = sphi 0, %s291
      %s308 = sphi 0, %s292
      %s314 = sphi 0, %s316
      %s317 = sphi 0, %s314
      %s318 = sphi 0, %s317
      %s334 = sphi 0, %s318
      %s340 = sphi 0, %s342
      %s343 = sphi 0, %s340
      %s344 = sphi 0, %s343
      %s360 = sphi 0, %s344
      %s366 = sphi 0, %s368
      %s369 = sphi 0, %s366
      %s370 = sphi 0, %s369
      %s386 = sphi 0, %s370
      %s390 = sphi 0, %s390
      %s392 = sphi 0, %s390
      %s393 = sphi 0, %s392
      %s407 = sphi 0, %s393
      %s411 = sphi 0, %s411
      %s413 = sphi 0, %s411
      %s414 = sphi 0, %s413
      %s428 = sphi 0, %s414
      %s432 = sphi 0, %s432
      %s434 = sphi 0, %s432
      %s435 = sphi 0, %s434
      %s449 = sphi 0, %s435
      %s453 = sphi 0, %s453
      %s455 = sphi 0, %s453
      %s456 = sphi 0, %s455
      %s470 = sphi 0, %s456
      %s476 = sphi 0, %s478
      %s479 = sphi 0, %s476
      %s480 = sphi 0, %s479
      %s496 = sphi 0, %s480
      %s502 = sphi 0, %s504
      %s505 = sphi 0, %s502
      %s506 = sphi 0, %s505
      %s522 = sphi 0, %s506
    $region4: #{tpu_custom_call.1} parent=1 // loop_header_branch
      %40 = sbr.rel (%p38) target = $region8
    $region5: #{tpu_custom_call.1} parent=1 // loop_body
      %s42 = ssub.s32 %s37, 1
      %s43 = ssub.s32 %s37, 2
      %s50 = sadd.s32 1, %s45
      %p51 = scmp.ge.s32.totalorder %s50, 2
      %s52 = scalar_select %p51, 0, %s50
      %s53 = sadd.s32 1, %s44
      %s54 = scalar_select %p51, %s53, %s44
      %p55 = scmp.ge.s32.totalorder %s54, 2
      %s56 = scalar_select %p55, 0, %s54
      %s58 = sadd.s32 %s57, 1
      %p61 = scmp.eq.s32.totalorder %s37, 3
      %p62 = scmp.ne.s32.totalorder %s57, %s59
      %p63 = scmp.eq.s32.totalorder %s37, 0
      %p64 = por %p62, %p63
      %p65 = scmp.ne.s32.totalorder %s57, %s59
      %p66 = scmp.eq.s32.totalorder %s42, 3
      %p67 = por %p65, %p66
      %p68 = scmp.ne.s32.totalorder %s59, %s60
      %p69 = scmp.eq.s32.totalorder %s42, 0
      %p70 = por %p68, %p69
      %p71 = scmp.ne.s32.totalorder %s59, %s60
      %p72 = scmp.eq.s32.totalorder %s43, 3
      %p73 = por %p71, %p72
      %p75 = scmp.ne.s32.totalorder %s60, %s74
      %p76 = scmp.eq.s32.totalorder %s43, 0
      %p77 = por %p75, %p76
      %s78 = ssub.s32 %s44, %s56
      %p79 = scmp.eq.s32.totalorder %s78, 0
      %s81 = sadd.s32 %s80, 1
      %s82 = scalar_select %p79, %s80, %s81
      %p85 = pneg %p79
      %p86 = scmp.eq.s32.totalorder %s37, 3
      %p87 = por %p85, %p86
      %p88 = scmp.ne.s32.totalorder %s80, %s83
      %p89 = scmp.eq.s32.totalorder %s37, 0
      %p90 = por %p88, %p89
      %p91 = scmp.ne.s32.totalorder %s80, %s83
      %p92 = scmp.eq.s32.totalorder %s42, 3
      %p93 = por %p91, %p92
      %p94 = scmp.ne.s32.totalorder %s83, %s84
      %p95 = scmp.eq.s32.totalorder %s42, 0
      %p96 = por %p94, %p95
      %p97 = scmp.ne.s32.totalorder %s83, %s84
      %p98 = scmp.eq.s32.totalorder %s43, 3
      %p99 = por %p97, %p98
      %p101 = scmp.ne.s32.totalorder %s84, %s100
      %p102 = scmp.eq.s32.totalorder %s43, 0
      %p103 = por %p101, %p102
      %s104 = ssub.s32 %s45, %s52
      %p105 = scmp.eq.s32.totalorder %s104, 0
      %s107 = sadd.s32 %s106, 1
      %s108 = scalar_select %p105, %s106, %s107
      %p111 = pneg %p105
      %p112 = scmp.eq.s32.totalorder %s37, 3
      %p113 = por %p111, %p112
      %p114 = scmp.ne.s32.totalorder %s106, %s109
      %p115 = scmp.eq.s32.totalorder %s37, 0
      %p116 = por %p114, %p115
      %p117 = scmp.ne.s32.totalorder %s106, %s109
      %p118 = scmp.eq.s32.totalorder %s42, 3
      %p119 = por %p117, %p118
      %p120 = scmp.ne.s32.totalorder %s109, %s110
      %p121 = scmp.eq.s32.totalorder %s42, 0
      %p122 = por %p120, %p121
      %p123 = scmp.ne.s32.totalorder %s109, %s110
      %p124 = scmp.eq.s32.totalorder %s43, 3
      %p125 = por %p123, %p124
      %p127 = scmp.ne.s32.totalorder %s110, %s126
      %p128 = scmp.eq.s32.totalorder %s43, 0
      %p129 = por %p127, %p128
      %s130 = ssub.s32 %s45, %s52
      %p131 = scmp.eq.s32.totalorder %s130, 0
      %s133 = sadd.s32 %s132, 1
      %s134 = scalar_select %p131, %s132, %s133
      %p137 = pneg %p131
      %p138 = scmp.eq.s32.totalorder %s37, 3
      %p139 = por %p137, %p138
      %p140 = scmp.ne.s32.totalorder %s132, %s135
      %p141 = scmp.eq.s32.totalorder %s37, 0
      %p142 = por %p140, %p141
      %p143 = scmp.ne.s32.totalorder %s132, %s135
      %p144 = scmp.eq.s32.totalorder %s42, 3
      %p145 = por %p143, %p144
      %p146 = scmp.ne.s32.totalorder %s135, %s136
      %p147 = scmp.eq.s32.totalorder %s42, 0
      %p148 = por %p146, %p147
      %p149 = scmp.ne.s32.totalorder %s135, %s136
      %p150 = scmp.eq.s32.totalorder %s43, 3
      %p151 = por %p149, %p150
      %p153 = scmp.ne.s32.totalorder %s136, %s152
      %p154 = scmp.eq.s32.totalorder %s43, 0
      %p155 = por %p153, %p154
      %s156 = ssub.s32 %s45, %s52
      %p157 = scmp.eq.s32.totalorder %s156, 0
      %s159 = sadd.s32 %s158, 1
      %s160 = scalar_select %p157, %s158, %s159
      %p163 = pneg %p157
      %p164 = scmp.eq.s32.totalorder %s37, 3
      %p165 = por %p163, %p164
      %p166 = scmp.ne.s32.totalorder %s158, %s161
      %p167 = scmp.eq.s32.totalorder %s37, 0
      %p168 = por %p166, %p167
      %p169 = scmp.ne.s32.totalorder %s158, %s161
      %p170 = scmp.eq.s32.totalorder %s42, 3
      %p171 = por %p169, %p170
      %p172 = scmp.ne.s32.totalorder %s161, %s162
      %p173 = scmp.eq.s32.totalorder %s42, 0
      %p174 = por %p172, %p173
      %p175 = scmp.ne.s32.totalorder %s161, %s162
      %p176 = scmp.eq.s32.totalorder %s43, 3
      %p177 = por %p175, %p176
      %p179 = scmp.ne.s32.totalorder %s162, %s178
      %p180 = scmp.eq.s32.totalorder %s43, 0
      %p181 = por %p179, %p180
      %s182 = ssub.s32 %s45, %s52
      %p183 = scmp.eq.s32.totalorder %s182, 0
      %s185 = sadd.s32 %s184, 1
      %s186 = scalar_select %p183, %s184, %s185
      %p189 = pneg %p183
      %p190 = scmp.eq.s32.totalorder %s37, 3
      %p191 = por %p189, %p190
      %p192 = scmp.ne.s32.totalorder %s184, %s187
      %p193 = scmp.eq.s32.totalorder %s37, 0
      %p194 = por %p192, %p193
      %p195 = scmp.ne.s32.totalorder %s184, %s187
      %p196 = scmp.eq.s32.totalorder %s42, 3
      %p197 = por %p195, %p196
      %p198 = scmp.ne.s32.totalorder %s187, %s188
      %p199 = scmp.eq.s32.totalorder %s42, 0
      %p200 = por %p198, %p199
      %p201 = scmp.ne.s32.totalorder %s187, %s188
      %p202 = scmp.eq.s32.totalorder %s43, 3
      %p203 = por %p201, %p202
      %p205 = scmp.ne.s32.totalorder %s188, %s204
      %p206 = scmp.eq.s32.totalorder %s43, 0
      %p207 = por %p205, %p206
      %s208 = ssub.s32 %s45, %s52
      %p209 = scmp.eq.s32.totalorder %s208, 0
      %s211 = sadd.s32 %s210, 1
      %s212 = scalar_select %p209, %s210, %s211
      %p215 = pneg %p209
      %p216 = scmp.eq.s32.totalorder %s37, 3
      %p217 = por %p215, %p216
      %p218 = scmp.ne.s32.totalorder %s210, %s213
      %p219 = scmp.eq.s32.totalorder %s37, 0
      %p220 = por %p218, %p219
      %p221 = scmp.ne.s32.totalorder %s210, %s213
      %p222 = scmp.eq.s32.totalorder %s42, 3
      %p223 = por %p221, %p222
      %p224 = scmp.ne.s32.totalorder %s213, %s214
      %p225 = scmp.eq.s32.totalorder %s42, 0
      %p226 = por %p224, %p225
      %p227 = scmp.ne.s32.totalorder %s213, %s214
      %p228 = scmp.eq.s32.totalorder %s43, 3
      %p229 = por %p227, %p228
      %p231 = scmp.ne.s32.totalorder %s214, %s230
      %p232 = scmp.eq.s32.totalorder %s43, 0
      %p233 = por %p231, %p232
      %s234 = ssub.s32 %s45, %s52
      %p235 = scmp.eq.s32.totalorder %s234, 0
      %s237 = sadd.s32 %s236, 1
      %s238 = scalar_select %p235, %s236, %s237
      %p241 = pneg %p235
      %p242 = scmp.eq.s32.totalorder %s37, 3
      %p243 = por %p241, %p242
      %p244 = scmp.ne.s32.totalorder %s236, %s239
      %p245 = scmp.eq.s32.totalorder %s37, 0
      %p246 = por %p244, %p245
      %p247 = scmp.ne.s32.totalorder %s236, %s239
      %p248 = scmp.eq.s32.totalorder %s42, 3
      %p249 = por %p247, %p248
      %p250 = scmp.ne.s32.totalorder %s239, %s240
      %p251 = scmp.eq.s32.totalorder %s42, 0
      %p252 = por %p250, %p251
      %p253 = scmp.ne.s32.totalorder %s239, %s240
      %p254 = scmp.eq.s32.totalorder %s43, 3
      %p255 = por %p253, %p254
      %p257 = scmp.ne.s32.totalorder %s240, %s256
      %p258 = scmp.eq.s32.totalorder %s43, 0
      %p259 = por %p257, %p258
      %s260 = ssub.s32 %s45, %s52
      %p261 = scmp.eq.s32.totalorder %s260, 0
      %s263 = sadd.s32 %s262, 1
      %s264 = scalar_select %p261, %s262, %s263
      %p267 = pneg %p261
      %p268 = scmp.eq.s32.totalorder %s37, 3
      %p269 = por %p267, %p268
      %p270 = scmp.ne.s32.totalorder %s262, %s265
      %p271 = scmp.eq.s32.totalorder %s37, 0
      %p272 = por %p270, %p271
      %p273 = scmp.ne.s32.totalorder %s262, %s265
      %p274 = scmp.eq.s32.totalorder %s42, 3
      %p275 = por %p273, %p274
      %p276 = scmp.ne.s32.totalorder %s265, %s266
      %p277 = scmp.eq.s32.totalorder %s42, 0
      %p278 = por %p276, %p277
      %p279 = scmp.ne.s32.totalorder %s265, %s266
      %p280 = scmp.eq.s32.totalorder %s43, 3
      %p281 = por %p279, %p280
      %p283 = scmp.ne.s32.totalorder %s266, %s282
      %p284 = scmp.eq.s32.totalorder %s43, 0
      %p285 = por %p283, %p284
      %s286 = ssub.s32 %s45, %s52
      %p287 = scmp.eq.s32.totalorder %s286, 0
      %s289 = sadd.s32 %s288, 1
      %s290 = scalar_select %p287, %s288, %s289
      %p293 = pneg %p287
      %p294 = scmp.eq.s32.totalorder %s37, 3
      %p295 = por %p293, %p294
      %p296 = scmp.ne.s32.totalorder %s288, %s291
      %p297 = scmp.eq.s32.totalorder %s37, 0
      %p298 = por %p296, %p297
      %p299 = scmp.ne.s32.totalorder %s288, %s291
      %p300 = scmp.eq.s32.totalorder %s42, 3
      %p301 = por %p299, %p300
      %p302 = scmp.ne.s32.totalorder %s291, %s292
      %p303 = scmp.eq.s32.totalorder %s42, 0
      %p304 = por %p302, %p303
      %p305 = scmp.ne.s32.totalorder %s291, %s292
      %p306 = scmp.eq.s32.totalorder %s43, 3
      %p307 = por %p305, %p306
      %p309 = scmp.ne.s32.totalorder %s292, %s308
      %p310 = scmp.eq.s32.totalorder %s43, 0
      %p311 = por %p309, %p310
      %s312 = ssub.s32 %s45, %s52
      %p313 = scmp.eq.s32.totalorder %s312, 0
      %s315 = sadd.s32 %s314, 1
      %s316 = scalar_select %p313, %s314, %s315
      %p319 = pneg %p313
      %p320 = scmp.eq.s32.totalorder %s37, 3
      %p321 = por %p319, %p320
      %p322 = scmp.ne.s32.totalorder %s314, %s317
      %p323 = scmp.eq.s32.totalorder %s37, 0
      %p324 = por %p322, %p323
      %p325 = scmp.ne.s32.totalorder %s314, %s317
      %p326 = scmp.eq.s32.totalorder %s42, 3
      %p327 = por %p325, %p326
      %p328 = scmp.ne.s32.totalorder %s317, %s318
      %p329 = scmp.eq.s32.totalorder %s42, 0
      %p330 = por %p328, %p329
      %p331 = scmp.ne.s32.totalorder %s317, %s318
      %p332 = scmp.eq.s32.totalorder %s43, 3
      %p333 = por %p331, %p332
      %p335 = scmp.ne.s32.totalorder %s318, %s334
      %p336 = scmp.eq.s32.totalorder %s43, 0
      %p337 = por %p335, %p336
      %s338 = ssub.s32 %s45, %s52
      %p339 = scmp.eq.s32.totalorder %s338, 0
      %s341 = sadd.s32 %s340, 1
      %s342 = scalar_select %p339, %s340, %s341
      %p345 = pneg %p339
      %p346 = scmp.eq.s32.totalorder %s37, 3
      %p347 = por %p345, %p346
      %p348 = scmp.ne.s32.totalorder %s340, %s343
      %p349 = scmp.eq.s32.totalorder %s37, 0
      %p350 = por %p348, %p349
      %p351 = scmp.ne.s32.totalorder %s340, %s343
      %p352 = scmp.eq.s32.totalorder %s42, 3
      %p353 = por %p351, %p352
      %p354 = scmp.ne.s32.totalorder %s343, %s344
      %p355 = scmp.eq.s32.totalorder %s42, 0
      %p356 = por %p354, %p355
      %p357 = scmp.ne.s32.totalorder %s343, %s344
      %p358 = scmp.eq.s32.totalorder %s43, 3
      %p359 = por %p357, %p358
      %p361 = scmp.ne.s32.totalorder %s344, %s360
      %p362 = scmp.eq.s32.totalorder %s43, 0
      %p363 = por %p361, %p362
      %s364 = ssub.s32 %s45, %s52
      %p365 = scmp.eq.s32.totalorder %s364, 0
      %s367 = sadd.s32 %s366, 1
      %s368 = scalar_select %p365, %s366, %s367
      %p371 = pneg %p365
      %p372 = scmp.eq.s32.totalorder %s37, 3
      %p373 = por %p371, %p372
      %p374 = scmp.ne.s32.totalorder %s366, %s369
      %p375 = scmp.eq.s32.totalorder %s37, 0
      %p376 = por %p374, %p375
      %p377 = scmp.ne.s32.totalorder %s366, %s369
      %p378 = scmp.eq.s32.totalorder %s42, 3
      %p379 = por %p377, %p378
      %p380 = scmp.ne.s32.totalorder %s369, %s370
      %p381 = scmp.eq.s32.totalorder %s42, 0
      %p382 = por %p380, %p381
      %p383 = scmp.ne.s32.totalorder %s369, %s370
      %p384 = scmp.eq.s32.totalorder %s43, 3
      %p385 = por %p383, %p384
      %p387 = scmp.ne.s32.totalorder %s370, %s386
      %p388 = scmp.eq.s32.totalorder %s43, 0
      %p389 = por %p387, %p388
      %s391 = sadd.s32 %s390, 1
      %p394 = scmp.eq.s32.totalorder %s37, 3
      %p395 = scmp.ne.s32.totalorder %s390, %s392
      %p396 = scmp.eq.s32.totalorder %s37, 0
      %p397 = por %p395, %p396
      %p398 = scmp.ne.s32.totalorder %s390, %s392
      %p399 = scmp.eq.s32.totalorder %s42, 3
      %p400 = por %p398, %p399
      %p401 = scmp.ne.s32.totalorder %s392, %s393
      %p402 = scmp.eq.s32.totalorder %s42, 0
      %p403 = por %p401, %p402
      %p404 = scmp.ne.s32.totalorder %s392, %s393
      %p405 = scmp.eq.s32.totalorder %s43, 3
      %p406 = por %p404, %p405
      %p408 = scmp.ne.s32.totalorder %s393, %s407
      %p409 = scmp.eq.s32.totalorder %s43, 0
      %p410 = por %p408, %p409
      %s412 = sadd.s32 %s411, 1
      %p415 = scmp.eq.s32.totalorder %s37, 3
      %p416 = scmp.ne.s32.totalorder %s411, %s413
      %p417 = scmp.eq.s32.totalorder %s37, 0
      %p418 = por %p416, %p417
      %p419 = scmp.ne.s32.totalorder %s411, %s413
      %p420 = scmp.eq.s32.totalorder %s42, 3
      %p421 = por %p419, %p420
      %p422 = scmp.ne.s32.totalorder %s413, %s414
      %p423 = scmp.eq.s32.totalorder %s42, 0
      %p424 = por %p422, %p423
      %p425 = scmp.ne.s32.totalorder %s413, %s414
      %p426 = scmp.eq.s32.totalorder %s43, 3
      %p427 = por %p425, %p426
      %p429 = scmp.ne.s32.totalorder %s414, %s428
      %p430 = scmp.eq.s32.totalorder %s43, 0
      %p431 = por %p429, %p430
      %s433 = sadd.s32 %s432, 1
      %p436 = scmp.eq.s32.totalorder %s37, 3
      %p437 = scmp.ne.s32.totalorder %s432, %s434
      %p438 = scmp.eq.s32.totalorder %s37, 0
      %p439 = por %p437, %p438
      %p440 = scmp.ne.s32.totalorder %s432, %s434
      %p441 = scmp.eq.s32.totalorder %s42, 3
      %p442 = por %p440, %p441
      %p443 = scmp.ne.s32.totalorder %s434, %s435
      %p444 = scmp.eq.s32.totalorder %s42, 0
      %p445 = por %p443, %p444
      %p446 = scmp.ne.s32.totalorder %s434, %s435
      %p447 = scmp.eq.s32.totalorder %s43, 3
      %p448 = por %p446, %p447
      %p450 = scmp.ne.s32.totalorder %s435, %s449
      %p451 = scmp.eq.s32.totalorder %s43, 0
      %p452 = por %p450, %p451
      %s454 = sadd.s32 %s453, 1
      %p457 = scmp.eq.s32.totalorder %s37, 3
      %p458 = scmp.ne.s32.totalorder %s453, %s455
      %p459 = scmp.eq.s32.totalorder %s37, 0
      %p460 = por %p458, %p459
      %p461 = scmp.ne.s32.totalorder %s453, %s455
      %p462 = scmp.eq.s32.totalorder %s42, 3
      %p463 = por %p461, %p462
      %p464 = scmp.ne.s32.totalorder %s455, %s456
      %p465 = scmp.eq.s32.totalorder %s42, 0
      %p466 = por %p464, %p465
      %p467 = scmp.ne.s32.totalorder %s455, %s456
      %p468 = scmp.eq.s32.totalorder %s43, 3
      %p469 = por %p467, %p468
      %p471 = scmp.ne.s32.totalorder %s456, %s470
      %p472 = scmp.eq.s32.totalorder %s43, 0
      %p473 = por %p471, %p472
      %s474 = ssub.s32 %s44, %s56
      %p475 = scmp.eq.s32.totalorder %s474, 0
      %s477 = sadd.s32 %s476, 1
      %s478 = scalar_select %p475, %s476, %s477
      %p481 = pneg %p475
      %p482 = scmp.eq.s32.totalorder %s37, 3
      %p483 = por %p481, %p482
      %p484 = scmp.ne.s32.totalorder %s476, %s479
      %p485 = scmp.eq.s32.totalorder %s37, 0
      %p486 = por %p484, %p485
      %p487 = scmp.ne.s32.totalorder %s476, %s479
      %p488 = scmp.eq.s32.totalorder %s42, 3
      %p489 = por %p487, %p488
      %p490 = scmp.ne.s32.totalorder %s479, %s480
      %p491 = scmp.eq.s32.totalorder %s42, 0
      %p492 = por %p490, %p491
      %p493 = scmp.ne.s32.totalorder %s479, %s480
      %p494 = scmp.eq.s32.totalorder %s43, 3
      %p495 = por %p493, %p494
      %p497 = scmp.ne.s32.totalorder %s480, %s496
      %p498 = scmp.eq.s32.totalorder %s43, 0
      %p499 = por %p497, %p498
      %s500 = ssub.s32 %s44, %s56
      %p501 = scmp.eq.s32.totalorder %s500, 0
      %s503 = sadd.s32 %s502, 1
      %s504 = scalar_select %p501, %s502, %s503
      %p507 = pneg %p501
      %p508 = scmp.eq.s32.totalorder %s37, 3
      %p509 = por %p507, %p508
      %p510 = scmp.ne.s32.totalorder %s502, %s505
      %p511 = scmp.eq.s32.totalorder %s37, 0
      %p512 = por %p510, %p511
      %p513 = scmp.ne.s32.totalorder %s502, %s505
      %p514 = scmp.eq.s32.totalorder %s42, 3
      %p515 = por %p513, %p514
      %p516 = scmp.ne.s32.totalorder %s505, %s506
      %p517 = scmp.eq.s32.totalorder %s42, 0
      %p518 = por %p516, %p517
      %p519 = scmp.ne.s32.totalorder %s505, %s506
      %p520 = scmp.eq.s32.totalorder %s43, 3
      %p521 = por %p519, %p520
      %p523 = scmp.ne.s32.totalorder %s506, %s522
      %p524 = scmp.eq.s32.totalorder %s43, 0
      %p525 = por %p523, %p524
      %p526 = scmp.le.s32.totalorder 1, %s37
      %p527 = scmp.lt.s32.totalorder %s37, 5
      %p528 = pnand %p526, %p527
      %p529 = pneg %p528
      // Predicated region
      $region9: #{tpu_custom_call.1} parent=5 // pred_check
        _
      $region10: #{tpu_custom_call.1} parent=5 // pred_check_branch
        %531 = sbr.rel (%p528) target = $region12
      $region11: #{tpu_custom_call.1} parent=5 // pred_region
        %s532 = ssub.s32 %s37, 1
        // Predicated region
        $region13: #{tpu_custom_call.1} parent=11 // pred_check
          %p533 = pneg %p70
        $region14: #{tpu_custom_call.1} parent=11 // pred_check_branch
          %535 = sbr.rel (%p533) target = $region16
        $region15: #{tpu_custom_call.1} parent=11 // pred_region
          %s537 = ssub.s32 16, 16
          %538 = vsyncadd [#allocation8], %s537
          %s540 = sshll.u32 %s0, 4
          %s541 = int_to_ptr.vmem [resolvable:$true] %s540
          %543 = dma.vmem_to_smem %s541, 16, [#allocation5], [#allocation8]
        $region16: #{tpu_custom_call.1} parent=11 // pred_fallthru
          _
        // Predicated region
        $region17: #{tpu_custom_call.1} parent=11 // pred_check
          %p544 = pneg %p403
        $region18: #{tpu_custom_call.1} parent=11 // pred_check_branch
          %546 = sbr.rel (%p544) target = $region20
        $region19: #{tpu_custom_call.1} parent=11 // pred_region
          _
        $region20: #{tpu_custom_call.1} parent=11 // pred_fallthru
          _
        // Predicated region
        $region21: #{tpu_custom_call.1} parent=11 // pred_check
          %p547 = pneg %p424
        $region22: #{tpu_custom_call.1} parent=11 // pred_check_branch
          %549 = sbr.rel (%p547) target = $region24
        $region23: #{tpu_custom_call.1} parent=11 // pred_region
          _
        $region24: #{tpu_custom_call.1} parent=11 // pred_fallthru
          _
        // Predicated region
        $region25: #{tpu_custom_call.1} parent=11 // pred_check
          %p550 = pneg %p445
        $region26: #{tpu_custom_call.1} parent=11 // pred_check_branch
          %552 = sbr.rel (%p550) target = $region28
        $region27: #{tpu_custom_call.1} parent=11 // pred_region
          _
        $region28: #{tpu_custom_call.1} parent=11 // pred_fallthru
          _
        // Predicated region
        $region29: #{tpu_custom_call.1} parent=11 // pred_check
          %p553 = pneg %p466
        $region30: #{tpu_custom_call.1} parent=11 // pred_check_branch
          %555 = sbr.rel (%p553) target = $region32
        $region31: #{tpu_custom_call.1} parent=11 // pred_region
          _
        $region32: #{tpu_custom_call.1} parent=11 // pred_fallthru
          _
      $region12: #{tpu_custom_call.1} parent=5 // pred_fallthru
        _
      %p556 = scmp.lt.s32.totalorder %s37, 4
      // Predicated region
      $region33: #{tpu_custom_call.1} parent=5 // pred_check
        %p557 = pneg %p556
      $region34: #{tpu_custom_call.1} parent=5 // pred_check_branch
        %559 = sbr.rel (%p557) target = $region36
      $region35: #{tpu_custom_call.1} parent=5 // pred_region
        // Predicated region
        $region37: #{tpu_custom_call.1} parent=35 // pred_check
          %p560 = pneg %p90
        $region38: #{tpu_custom_call.1} parent=35 // pred_check_branch
          %562 = sbr.rel (%p560) target = $region40
        $region39: #{tpu_custom_call.1} parent=35 // pred_region
          %p563 = scmp.lt.s32.totalorder %s44, 1
          %s564 = scalar_select %p563, %s44, 1
          %s565 = smul.addr %s564, 2
          %s566 = smul.addr %s565, 8
          %s567 = scalar_lea.vmem %s1, %s566
        $region40: #{tpu_custom_call.1} parent=35 // pred_fallthru
          _
        // Predicated region
        $region41: #{tpu_custom_call.1} parent=35 // pred_check
          %p568 = pneg %p116
        $region42: #{tpu_custom_call.1} parent=35 // pred_check_branch
          %570 = sbr.rel (%p568) target = $region44
        $region43: #{tpu_custom_call.1} parent=35 // pred_region
          %p571 = scmp.lt.s32.totalorder %s45, 1
          %s572 = scalar_select %p571, %s45, 1
          %s573 = scalar_lea.vmem %s2, %s572
        $region44: #{tpu_custom_call.1} parent=35 // pred_fallthru
          _
        // Predicated region
        $region45: #{tpu_custom_call.1} parent=35 // pred_check
          %p574 = pneg %p142
        $region46: #{tpu_custom_call.1} parent=35 // pred_check_branch
          %576 = sbr.rel (%p574) target = $region48
        $region47: #{tpu_custom_call.1} parent=35 // pred_region
          %p577 = scmp.lt.s32.totalorder %s45, 1
          %s578 = scalar_select %p577, %s45, 1
          %s579 = scalar_lea.vmem %s3, %s578
        $region48: #{tpu_custom_call.1} parent=35 // pred_fallthru
          _
        // Predicated region
        $region49: #{tpu_custom_call.1} parent=35 // pred_check
          %p580 = pneg %p168
        $region50: #{tpu_custom_call.1} parent=35 // pred_check_branch
          %582 = sbr.rel (%p580) target = $region52
        $region51: #{tpu_custom_call.1} parent=35 // pred_region
          %p583 = scmp.lt.s32.totalorder %s45, 1
          %s584 = scalar_select %p583, %s45, 1
          %s585 = smul.addr %s584, 4
          %s586 = smul.addr %s585, 4
          %s587 = scalar_lea.vmem %s4, %s586
        $region52: #{tpu_custom_call.1} parent=35 // pred_fallthru
          _
        // Predicated region
        $region53: #{tpu_custom_call.1} parent=35 // pred_check
          %p588 = pneg %p194
        $region54: #{tpu_custom_call.1} parent=35 // pred_check_branch
          %590 = sbr.rel (%p588) target = $region56
        $region55: #{tpu_custom_call.1} parent=35 // pred_region
          %p591 = scmp.lt.s32.totalorder %s45, 1
          %s592 = scalar_select %p591, %s45, 1
          %s593 = smul.addr %s592, 4
          %s594 = smul.addr %s593, 4
          %s595 = scalar_lea.vmem %s5, %s594
        $region56: #{tpu_custom_call.1} parent=35 // pred_fallthru
          _
        // Predicated region
        $region57: #{tpu_custom_call.1} parent=35 // pred_check
          %p596 = pneg %p220
        $region58: #{tpu_custom_call.1} parent=35 // pred_check_branch
          %598 = sbr.rel (%p596) target = $region60
        $region59: #{tpu_custom_call.1} parent=35 // pred_region
          %p599 = scmp.lt.s32.totalorder %s45, 1
          %s600 = scalar_select %p599, %s45, 1
          %s601 = scalar_lea.vmem %s6, %s600
        $region60: #{tpu_custom_call.1} parent=35 // pred_fallthru
          _
        // Predicated region
        $region61: #{tpu_custom_call.1} parent=35 // pred_check
          %p602 = pneg %p246
        $region62: #{tpu_custom_call.1} parent=35 // pred_check_branch
          %604 = sbr.rel (%p602) target = $region64
        $region63: #{tpu_custom_call.1} parent=35 // pred_region
          %p605 = scmp.lt.s32.totalorder %s45, 1
          %s606 = scalar_select %p605, %s45, 1
          %s607 = scalar_lea.vmem %s7, %s606
        $region64: #{tpu_custom_call.1} parent=35 // pred_fallthru
          _
        // Predicated region
        $region65: #{tpu_custom_call.1} parent=35 // pred_check
          %p608 = pneg %p272
        $region66: #{tpu_custom_call.1} parent=35 // pred_check_branch
          %610 = sbr.rel (%p608) target = $region68
        $region67: #{tpu_custom_call.1} parent=35 // pred_region
          %p611 = scmp.lt.s32.totalorder %s45, 1
          %s612 = scalar_select %p611, %s45, 1
          %s613 = scalar_lea.vmem %s8, %s612
        $region68: #{tpu_custom_call.1} parent=35 // pred_fallthru
          _
        // Predicated region
        $region69: #{tpu_custom_call.1} parent=35 // pred_check
          %p614 = pneg %p298
        $region70: #{tpu_custom_call.1} parent=35 // pred_check_branch
          %616 = sbr.rel (%p614) target = $region72
        $region71: #{tpu_custom_call.1} parent=35 // pred_region
          %s617 = sand.u32 %s288, 1
          %s618 = scalar_lea.sflag [#allocation6], %s617
          %s619 = sand.u32 %s288, 1
          %s620 = smul.addr %s619, 16
          %s621 = scalar_lea.vmem [#allocation9], %s620
          %s623 = ssub.s32 256, 256
          %624 = vsyncadd %s618, %s623
          %s625 = smul.addr %s45, 4
          %s626 = smul.addr %s625, 64
          %s627 = scalar_lea.hbm %s9, %s626
          %s628 = sshll.u32 %s621, 4
          %s629 = int_to_ptr.vmem [resolvable:$true] %s628
          %634 = dma.hbm_to_vmem [thread:$0]  %s627, 256, %s629, %s618, 64, 64, 4
        $region72: #{tpu_custom_call.1} parent=35 // pred_fallthru
          _
        // Predicated region
        $region73: #{tpu_custom_call.1} parent=35 // pred_check
          %p635 = pneg %p324
        $region74: #{tpu_custom_call.1} parent=35 // pred_check_branch
          %637 = sbr.rel (%p635) target = $region76
        $region75: #{tpu_custom_call.1} parent=35 // pred_region
          %p638 = scmp.lt.s32.totalorder %s45, 1
          %s639 = scalar_select %p638, %s45, 1
          %s640 = scalar_lea.vmem %s10, %s639
        $region76: #{tpu_custom_call.1} parent=35 // pred_fallthru
          _
        // Predicated region
        $region77: #{tpu_custom_call.1} parent=35 // pred_check
          %p641 = pneg %p350
        $region78: #{tpu_custom_call.1} parent=35 // pred_check_branch
          %643 = sbr.rel (%p641) target = $region80
        $region79: #{tpu_custom_call.1} parent=35 // pred_region
          %p644 = scmp.lt.s32.totalorder %s45, 1
          %s645 = scalar_select %p644, %s45, 1
          %s646 = smul.addr %s645, 8
          %s647 = smul.addr %s646, 4
          %s648 = scalar_lea.vmem %s11, %s647
        $region80: #{tpu_custom_call.1} parent=35 // pred_fallthru
          _
        // Predicated region
        $region81: #{tpu_custom_call.1} parent=35 // pred_check
          %p649 = pneg %p376
        $region82: #{tpu_custom_call.1} parent=35 // pred_check_branch
          %651 = sbr.rel (%p649) target = $region84
        $region83: #{tpu_custom_call.1} parent=35 // pred_region
          %p652 = scmp.lt.s32.totalorder %s45, 1
          %s653 = scalar_select %p652, %s45, 1
          %s654 = scalar_lea.vmem %s12, %s653
        $region84: #{tpu_custom_call.1} parent=35 // pred_fallthru
          _
      $region36: #{tpu_custom_call.1} parent=5 // pred_fallthru
        _
      %p655 = scmp.le.s32.totalorder 1, %s37
      %p656 = scmp.lt.s32.totalorder %s37, 5
      %p657 = pnand %p655, %p656
      %p658 = pneg %p657
      // Predicated region
      $region85: #{tpu_custom_call.1} parent=5 // pred_check
        _
      $region86: #{tpu_custom_call.1} parent=5 // pred_check_branch
        %660 = sbr.rel (%p657) target = $region88
      $region87: #{tpu_custom_call.1} parent=5 // pred_region
        %s661 = ssub.s32 %s37, 1
        // Predicated region
        $region89: #{tpu_custom_call.1} parent=87 // pred_check
          %p662 = pneg %p70
        $region90: #{tpu_custom_call.1} parent=87 // pred_check_branch
          %664 = sbr.rel (%p662) target = $region92
        $region91: #{tpu_custom_call.1} parent=87 // pred_region
          %665 = dma.done [#allocation8], 16
        $region92: #{tpu_custom_call.1} parent=87 // pred_fallthru
          _
        %s666 = sand.u32 %s291, 1
        %s667 = scalar_lea.sflag [#allocation6], %s666
        %s668 = sand.u32 %s291, 1
        %s669 = smul.addr %s668, 16
        %s670 = scalar_lea.vmem [#allocation9], %s669
        // Predicated region
        $region93: #{tpu_custom_call.1} parent=87 // pred_check
          %p671 = pneg %p304
        $region94: #{tpu_custom_call.1} parent=87 // pred_check_branch
          %673 = sbr.rel (%p671) target = $region96
        $region95: #{tpu_custom_call.1} parent=87 // pred_region
          %674 = dma.done %s667, 256
        $region96: #{tpu_custom_call.1} parent=87 // pred_fallthru
          _
        %675 = sfence
        %p676 = pneg %p70
        %p677 = pneg %p67
        %p678 = scmp.lt.s32.totalorder %s46, 1
        %s679 = scalar_select %p678, %s46, 1
        %s680 = smul.addr %s679, 2
        %s681 = smul.addr %s680, 8
        %s682 = scalar_lea.vmem %s1, %s681
        %p683 = pneg %p96
        %p684 = pneg %p93
        %p685 = scmp.lt.s32.totalorder %s47, 1
        %s686 = scalar_select %p685, %s47, 1
        %s687 = scalar_lea.vmem %s2, %s686
        %p688 = pneg %p122
        %p689 = pneg %p119
        %p690 = scmp.lt.s32.totalorder %s47, 1
        %s691 = scalar_select %p690, %s47, 1
        %s692 = scalar_lea.vmem %s3, %s691
        %p693 = pneg %p148
        %p694 = pneg %p145
        %p695 = scmp.lt.s32.totalorder %s47, 1
        %s696 = scalar_select %p695, %s47, 1
        %s697 = smul.addr %s696, 4
        %s698 = smul.addr %s697, 4
        %s699 = scalar_lea.vmem %s4, %s698
        %p700 = pneg %p174
        %p701 = pneg %p171
        %p702 = scmp.lt.s32.totalorder %s47, 1
        %s703 = scalar_select %p702, %s47, 1
        %s704 = smul.addr %s703, 4
        %s705 = smul.addr %s704, 4
        %s706 = scalar_lea.vmem %s5, %s705
        %p707 = pneg %p200
        %p708 = pneg %p197
        %p709 = scmp.lt.s32.totalorder %s47, 1
        %s710 = scalar_select %p709, %s47, 1
        %s711 = scalar_lea.vmem %s6, %s710
        %p712 = pneg %p226
        %p713 = pneg %p223
        %p714 = scmp.lt.s32.totalorder %s47, 1
        %s715 = scalar_select %p714, %s47, 1
        %s716 = scalar_lea.vmem %s7, %s715
        %p717 = pneg %p252
        %p718 = pneg %p249
        %p719 = scmp.lt.s32.totalorder %s47, 1
        %s720 = scalar_select %p719, %s47, 1
        %s721 = scalar_lea.vmem %s8, %s720
        %p722 = pneg %p278
        %p723 = pneg %p275
        %s724 = sand.u32 %s291, 1
        %s725 = scalar_lea.sflag [#allocation6], %s724
        %s726 = sand.u32 %s291, 1
        %s727 = smul.addr %s726, 16
        %s728 = scalar_lea.vmem [#allocation9], %s727
        %p729 = pneg %p304
        %p730 = pneg %p301
        %p731 = scmp.lt.s32.totalorder %s47, 1
        %s732 = scalar_select %p731, %s47, 1
        %s733 = scalar_lea.vmem %s10, %s732
        %p734 = pneg %p330
        %p735 = pneg %p327
        %p736 = scmp.lt.s32.totalorder %s47, 1
        %s737 = scalar_select %p736, %s47, 1
        %s738 = smul.addr %s737, 8
        %s739 = smul.addr %s738, 4
        %s740 = scalar_lea.vmem %s11, %s739
        %p741 = pneg %p356
        %p742 = pneg %p353
        %p743 = scmp.lt.s32.totalorder %s47, 1
        %s744 = scalar_select %p743, %s47, 1
        %s745 = scalar_lea.vmem %s12, %s744
        %p746 = pneg %p382
        %p747 = pneg %p379
        %p748 = pneg %p403
        %p749 = pneg %p400
        %p750 = pneg %p424
        %p751 = pneg %p421
        %p752 = pneg %p445
        %p753 = pneg %p442
        %p754 = pneg %p466
        %p755 = pneg %p463
        %p756 = pneg %p492
        %p757 = pneg %p489
        %s758 = sand.u32 %s479, 1
        %s759 = scalar_lea.sflag [#allocation7], %s758
        %s760 = sand.u32 %s479, 1
        %s761 = smul.addr %s760, 16
        %s762 = scalar_lea.vmem [#allocation10], %s761
        %p763 = pneg %p518
        %p764 = pneg %p515
        %s765 = sand.u32 %s505, 1
        %s766 = scalar_lea.sflag [#allocation12], %s765
        %s767 = sand.u32 %s505, 1
        %s768 = smul.addr %s767, 2
        %s769 = scalar_lea.vmem [#allocation11], %s768
        %p770 = scmp.lt.s32.totalorder %s46, 1
        %s771 = scalar_select %p770, %s46, 1
        %s772 = smul.addr %s771, 2
        %s773 = smul.addr %s772, 8
        %s774 = scalar_lea.vmem %s1, %s773
        %p775 = scmp.lt.s32.totalorder %s47, 1
        %s776 = scalar_select %p775, %s47, 1
        %s777 = scalar_lea.vmem %s2, %s776
        %p778 = scmp.lt.s32.totalorder %s47, 1
        %s779 = scalar_select %p778, %s47, 1
        %s780 = scalar_lea.vmem %s3, %s779
        %p781 = scmp.lt.s32.totalorder %s47, 1
        %s782 = scalar_select %p781, %s47, 1
        %s783 = smul.addr %s782, 4
        %s784 = smul.addr %s783, 4
        %s785 = scalar_lea.vmem %s4, %s784
        %p786 = scmp.lt.s32.totalorder %s47, 1
        %s787 = scalar_select %p786, %s47, 1
        %s788 = smul.addr %s787, 4
        %s789 = smul.addr %s788, 4
        %s790 = scalar_lea.vmem %s5, %s789
        %p791 = scmp.lt.s32.totalorder %s47, 1
        %s792 = scalar_select %p791, %s47, 1
        %s793 = scalar_lea.vmem %s6, %s792
        %p794 = scmp.lt.s32.totalorder %s47, 1
        %s795 = scalar_select %p794, %s47, 1
        %s796 = scalar_lea.vmem %s7, %s795
        %p797 = scmp.lt.s32.totalorder %s47, 1
        %s798 = scalar_select %p797, %s47, 1
        %s799 = scalar_lea.vmem %s8, %s798
        %p800 = scmp.lt.s32.totalorder %s47, 1
        %s801 = scalar_select %p800, %s47, 1
        %s802 = scalar_lea.vmem %s10, %s801
        %p803 = scmp.lt.s32.totalorder %s47, 1
        %s804 = scalar_select %p803, %s47, 1
        %s805 = smul.addr %s804, 8
        %s806 = smul.addr %s805, 4
        %s807 = scalar_lea.vmem %s11, %s806
        %p808 = scmp.lt.s32.totalorder %s47, 1
        %s809 = scalar_select %p808, %s47, 1
        %s810 = scalar_lea.vmem %s12, %s809
        %p812 = scmp.eq.s32.totalorder %s47, 0
        // Predicated region
        $region97: #{tpu_custom_call.1} parent=87 // pred_check
          %p813 = pneg %p812
        $region98: #{tpu_custom_call.1} parent=87 // pred_check_branch
          %815 = sbr.rel (%p813) target = $region100
        $region99: #{tpu_custom_call.1} parent=87 // pred_region
          %v816 = vld [vmem:[%s774] sm:$0xff]
          %v817 = vld [vmem:[%s774 + $0x8] sm:$0xff]
          %vm818 = vcmask 261120
          %819 = vst.msk [vmem:[#allocation2] sm:$0xff] %vm818, %v816
          %820 = vst.msk [vmem:[#allocation2 + $0x8] sm:$0xff] %vm818, %v817
        $region100: #{tpu_custom_call.1} parent=87 // pred_fallthru
          _
        %v821 = vld [vmem:[#allocation2] sm:$0xff]
        %v822 = vld [vmem:[#allocation2 + $0x8] sm:$0xff]
        %v823 = vld [vmem:[%s777] sm:$0x1]
        %v824 = vld [vmem:[%s780] sm:$0x1]
        %vm825 = vcmask 261120
        %v826 = vsel %vm825, %v821, 0.0
        %827 = vadd.xlane.f32.xlu0 %v826
        %v828 = vpop.xlane.xlu0 %827
        %v829 = vsel %vm825, %v822, 0.0
        %830 = vadd.xlane.f32.xlu0 %v829
        %v831 = vpop.xlane.xlu0 %830
        %v832 = vrcp.pop 32.0
        %v833 = vmul.f32 %v828, %v832
        %v834 = vmul.f32 %v831, %v832
        %v835 = vsub.f32 %v821, %v833
        %v836 = vsub.f32 %v822, %v834
        %v837 = vmul.f32 %v835, %v835
        %v838 = vmul.f32 %v836, %v836
        %v839 = vsel %vm825, %v837, 0.0
        %840 = vadd.xlane.f32.xlu0 %v839
        %v841 = vpop.xlane.xlu0 %840
        %v842 = vsel %vm825, %v838, 0.0
        %843 = vadd.xlane.f32.xlu0 %v842
        %v844 = vpop.xlane.xlu0 %843
        %v845 = vmul.f32 %v841, %v832
        %v846 = vmul.f32 %v844, %v832
        %v847 = vadd.f32 %v845, 1e-05
        %v848 = vadd.f32 %v846, 1e-05
        %v849 = vrsqrt.pop %v847
        %v850 = vrsqrt.pop %v848
        %v851 = vmul.f32 %v835, %v849
        %v852 = vmul.f32 %v836, %v850
        %v854 = vlaneseq
        %v855 = vshrl.u32 %v854, 7
        %v856 = vsub.s32 0, %v855
        %v857 = vrot.slane %v823, %v856
        %v859 = vmul.f32 %v851, %v857
        %v860 = vmul.f32 %v852, %v857
        %v862 = vlaneseq
        %v863 = vshrl.u32 %v862, 7
        %v864 = vsub.s32 0, %v863
        %v865 = vrot.slane %v824, %v864
        %v867 = vadd.f32 %v859, %v865
        %v868 = vadd.f32 %v860, %v865
        %v869 = vpack.c.bf16 %v868, %v867
        %v870 = vld [vmem:[%s785] sm:$0xf]
        %v871 = vld [vmem:[%s785 + $0x4] sm:$0xf]
        %v872 = vld [vmem:[%s785 + $0x8] sm:$0xf]
        %v873 = vld [vmem:[%s785 + $0xc] sm:$0xf]
        %v878 = vunpack.c.l.b16 %v870
        %v879 = vunpack.c.l.b16 %v871
        %v880 = vunpack.c.l.b16 %v872
        %v881 = vunpack.c.l.b16 %v873
        %v882 = vpack.c.b16 %v879, %v878
        %v883 = vpack.c.b16 %v881, %v880
        %v887 = vsel %vm825, %v869, 0
        %889 = vmatprep.subr.bf16.mxu0 0
        %890 = vmatpush1.bf16.msra.mxu0 %v882
        %891 = vmatprep.subr.bf16.mxu0 0
        %892 = vmatpush1.bf16.msra.mxu0 %v883
        %893 = vmatprep.subr.bf16.mxu0 0
        %894 = vmatpush1.bf16.msra.mxu0 0
        %895 = vmatprep.subr.bf16.mxu0 0
        %896 = vmatpush1.bf16.msra.mxu0 0
        %897 = vmatprep.subr.bf16.mxu0 0
        %898 = vmatpush1.bf16.msra.mxu0 0
        %899 = vmatprep.subr.bf16.mxu0 0
        %900 = vmatpush1.bf16.msra.mxu0 0
        %901 = vmatprep.subr.bf16.mxu0 0
        %902 = vmatpush1.bf16.msra.mxu0 0
        %903 = vmatprep.subr.bf16.mxu0 0
        %904 = vmatpush1.bf16.msra.mxu0 0
        %905 = vmatprep.subr.bf16.mxu0 0
        %906 = vmatpush1.bf16.msra.mxu0 0
        %907 = vmatprep.subr.bf16.mxu0 0
        %908 = vmatpush1.bf16.msra.mxu0 0
        %909 = vmatprep.subr.bf16.mxu0 0
        %910 = vmatpush1.bf16.msra.mxu0 0
        %911 = vmatprep.subr.bf16.mxu0 0
        %912 = vmatpush1.bf16.msra.mxu0 0
        %913 = vmatprep.subr.bf16.mxu0 0
        %914 = vmatpush1.bf16.msra.mxu0 0
        %915 = vmatprep.subr.bf16.mxu0 0
        %916 = vmatpush1.bf16.msra.mxu0 0
        %917 = vmatprep.subr.bf16.mxu0 0
        %918 = vmatpush1.bf16.msra.mxu0 0
        %919 = vmatprep.subr.bf16.mxu0 0
        %920 = vmatpush1.bf16.msra.mxu0 0
        %921 = vmatprep.mubr.bf16.mxu0 0
        %922 = vmatmul.mubr.bf16.gmra.mrb[0].mxu0 %v887
        %v923 = vpop.f32.mrb[0].mxu0
        %v924 = vadd.f32 0.0, %v923
        %v925 = vpop.f32.mrb[0].mxu0
        %v926 = vpop.f32.mrb[0].mxu0
        %v927 = vadd.f32 0.0, %v926
        %v928 = vpop.f32.mrb[0].mxu0
        %929 = vdwg.mxu0
        %v930 = vmul.f32 %v924, 0.35355338
        %v931 = vmul.f32 %v927, 0.35355338
        %v932 = vpack.c.bf16 %v930, %v930
        %v933 = vpack.c.bf16 %v931, %v931
        %v934 = vpack.c.bf16 %v924, %v924
        %v935 = vpack.c.bf16 %v927, %v927
        %937 = vrot.lane.b32.xlu0 %v934, 96
        %v938 = vpop.permute.xlu0 %937
        %vm939 = vcmask 64512
        %v941 = vsel %vm939, %v932, 0
        %v944 = vsel %vm939, %v938, 0
        %946 = vmatprep.subr.bf16.mxu0 0
        %947 = vmatpush1.bf16.xpose.msra.mxu0 %v944
        %948 = vmatprep.subr.bf16.mxu0 0
        %949 = vmatpush1.bf16.xpose.msra.mxu0 0
        %950 = vmatprep.subr.bf16.mxu0 0
        %951 = vmatpush1.bf16.xpose.msra.mxu0 0
        %952 = vmatprep.subr.bf16.mxu0 0
        %953 = vmatpush1.bf16.xpose.msra.mxu0 0
        %954 = vmatprep.subr.bf16.mxu0 0
        %955 = vmatpush1.bf16.xpose.msra.mxu0 0
        %956 = vmatprep.subr.bf16.mxu0 0
        %957 = vmatpush1.bf16.xpose.msra.mxu0 0
        %958 = vmatprep.subr.bf16.mxu0 0
        %959 = vmatpush1.bf16.xpose.msra.mxu0 0
        %960 = vmatprep.subr.bf16.mxu0 0
        %961 = vmatpush1.bf16.xpose.msra.mxu0 0
        %962 = vmatprep.subr.bf16.mxu0 0
        %963 = vmatpush1.bf16.xpose.msra.mxu0 0
        %964 = vmatprep.subr.bf16.mxu0 0
        %965 = vmatpush1.bf16.xpose.msra.mxu0 0
        %966 = vmatprep.subr.bf16.mxu0 0
        %967 = vmatpush1.bf16.xpose.msra.mxu0 0
        %968 = vmatprep.subr.bf16.mxu0 0
        %969 = vmatpush1.bf16.xpose.msra.mxu0 0
        %970 = vmatprep.subr.bf16.mxu0 0
        %971 = vmatpush1.bf16.xpose.msra.mxu0 0
        %972 = vmatprep.subr.bf16.mxu0 0
        %973 = vmatpush1.bf16.xpose.msra.mxu0 0
        %974 = vmatprep.subr.bf16.mxu0 0
        %975 = vmatpush1.bf16.xpose.msra.mxu0 0
        %976 = vmatprep.subr.bf16.mxu0 0
        %977 = vmatpush1.bf16.xpose.msra.mxu0 0
        %978 = vmatprep.mubr.bf16.mxu0 0
        %979 = vmatmul.mubr.bf16.gmra.mrb[0].mxu0 %v941
        %v980 = vpop.f32.mrb[0].mxu0
        %v981 = vadd.f32 0.0, %v980
        %v982 = vpop.f32.mrb[0].mxu0
        %v983 = vpop.f32.mrb[0].mxu0
        %v984 = vpop.f32.mrb[0].mxu0
        %985 = vdwg.mxu0
        %987 = vrot.lane.b32.xlu0 %v935, 96
        %v988 = vpop.permute.xlu0 %987
        %v990 = vsel %vm939, %v933, 0
        %v993 = vsel %vm939, %v988, 0
        %995 = vmatprep.subr.bf16.mxu0 0
        %996 = vmatpush1.bf16.xpose.msra.mxu0 %v993
        %997 = vmatprep.subr.bf16.mxu0 0
        %998 = vmatpush1.bf16.xpose.msra.mxu0 0
        %999 = vmatprep.subr.bf16.mxu0 0
        %1000 = vmatpush1.bf16.xpose.msra.mxu0 0
        %1001 = vmatprep.subr.bf16.mxu0 0
        %1002 = vmatpush1.bf16.xpose.msra.mxu0 0
        %1003 = vmatprep.subr.bf16.mxu0 0
        %1004 = vmatpush1.bf16.xpose.msra.mxu0 0
        %1005 = vmatprep.subr.bf16.mxu0 0
        %1006 = vmatpush1.bf16.xpose.msra.mxu0 0
        %1007 = vmatprep.subr.bf16.mxu0 0
        %1008 = vmatpush1.bf16.xpose.msra.mxu0 0
        %1009 = vmatprep.subr.bf16.mxu0 0
        %1010 = vmatpush1.bf16.xpose.msra.mxu0 0
        %1011 = vmatprep.subr.bf16.mxu0 0
        %1012 = vmatpush1.bf16.xpose.msra.mxu0 0
        %1013 = vmatprep.subr.bf16.mxu0 0
        %1014 = vmatpush1.bf16.xpose.msra.mxu0 0
        %1015 = vmatprep.subr.bf16.mxu0 0
        %1016 = vmatpush1.bf16.xpose.msra.mxu0 0
        %1017 = vmatprep.subr.bf16.mxu0 0
        %1018 = vmatpush1.bf16.xpose.msra.mxu0 0
        %1019 = vmatprep.subr.bf16.mxu0 0
        %1020 = vmatpush1.bf16.xpose.msra.mxu0 0
        %1021 = vmatprep.subr.bf16.mxu0 0
        %1022 = vmatpush1.bf16.xpose.msra.mxu0 0
        %1023 = vmatprep.subr.bf16.mxu0 0
        %1024 = vmatpush1.bf16.xpose.msra.mxu0 0
        %1025 = vmatprep.subr.bf16.mxu0 0
        %1026 = vmatpush1.bf16.xpose.msra.mxu0 0
        %1027 = vmatprep.mubr.bf16.mxu0 0
        %1028 = vmatmul.mubr.bf16.gmra.mrb[0].mxu0 %v990
        %v1029 = vpop.f32.mrb[0].mxu0
        %v1030 = vadd.f32 0.0, %v1029
        %v1031 = vpop.f32.mrb[0].mxu0
        %v1032 = vpop.f32.mrb[0].mxu0
        %v1033 = vpop.f32.mrb[0].mxu0
        %1034 = vdwg.mxu0
        %v1035 = vmul.f32 %v981, 0.125
        %v1036 = vmul.f32 %v1030, 0.125
        %v1037 = vmax.f32 %v981, 0.0
        %v1038 = vmax.f32 %v1030, 0.0
        %v1039 = vsel %vm939, %v1037, 0.0
        %1040 = vadd.xlane.f32.xlu0 %v1039
        %v1041 = vpop.xlane.xlu0 %1040
        %v1042 = vsel %vm939, %v1038, 0.0
        %1043 = vadd.xlane.f32.xlu0 %v1042
        %v1044 = vpop.xlane.xlu0 %1043
        %v1045 = vadd.f32 %v1041, 1e-08
        %v1046 = vadd.f32 %v1044, 1e-08
        %v1047 = vrcp.pop %v1045
        %v1048 = vmul.f32 %v1037, %v1047
        %v1049 = vrcp.pop %v1046
        %v1050 = vmul.f32 %v1038, %v1049
        %s1051 = smul.u32 %s47, 4
        %s1052 = sld [smem:[#allocation5 + %s1051]]
        %v1053 = vstv %s1052
        %v1054 = vmul.f32 %v1053, %v1048
        %v1055 = vmul.f32 %v1053, %v1050
        %s1056 = ssub.f32 1.0, %s1052
        %v1057 = vstv %s1056
        %v1058 = vmul.f32 %v1057, %v1035
        %v1059 = vmul.f32 %v1057, %v1036
        %v1060 = vadd.f32 %v1054, %v1058
        %v1061 = vadd.f32 %v1055, %v1059
        %v1062 = vpack.c.bf16 %v1060, %v1060
        %v1063 = vpack.c.bf16 %v1061, %v1061
        %1064 = vrot.lane.b32.xlu0 %v934, 64
        %v1065 = vpop.permute.xlu0 %1064
        %v1067 = vsel %vm939, %v1062, 0
        %vm1069 = vcmask 1043456
        %v1071 = vsel %vm1069, %v1065, 0
        %1073 = vmatprep.subr.bf16.mxu0 0
        %1074 = vmatpush1.bf16.msra.mxu0 %v1071
        %1075 = vmatprep.subr.bf16.mxu0 0
        %1076 = vmatpush1.bf16.msra.mxu0 0
        %1077 = vmatprep.subr.bf16.mxu0 0
        %1078 = vmatpush1.bf16.msra.mxu0 0
        %1079 = vmatprep.subr.bf16.mxu0 0
        %1080 = vmatpush1.bf16.msra.mxu0 0
        %1081 = vmatprep.subr.bf16.mxu0 0
        %1082 = vmatpush1.bf16.msra.mxu0 0
        %1083 = vmatprep.subr.bf16.mxu0 0
        %1084 = vmatpush1.bf16.msra.mxu0 0
        %1085 = vmatprep.subr.bf16.mxu0 0
        %1086 = vmatpush1.bf16.msra.mxu0 0
        %1087 = vmatprep.subr.bf16.mxu0 0
        %1088 = vmatpush1.bf16.msra.mxu0 0
        %1089 = vmatprep.subr.bf16.mxu0 0
        %1090 = vmatpush1.bf16.msra.mxu0 0
        %1091 = vmatprep.subr.bf16.mxu0 0
        %1092 = vmatpush1.bf16.msra.mxu0 0
        %1093 = vmatprep.subr.bf16.mxu0 0
        %1094 = vmatpush1.bf16.msra.mxu0 0
        %1095 = vmatprep.subr.bf16.mxu0 0
        %1096 = vmatpush1.bf16.msra.mxu0 0
        %1097 = vmatprep.subr.bf16.mxu0 0
        %1098 = vmatpush1.bf16.msra.mxu0 0
        %1099 = vmatprep.subr.bf16.mxu0 0
        %1100 = vmatpush1.bf16.msra.mxu0 0
        %1101 = vmatprep.subr.bf16.mxu0 0
        %1102 = vmatpush1.bf16.msra.mxu0 0
        %1103 = vmatprep.subr.bf16.mxu0 0
        %1104 = vmatpush1.bf16.msra.mxu0 0
        %1105 = vmatprep.mubr.bf16.mxu0 0
        %1106 = vmatmul.mubr.bf16.gmra.mrb[0].mxu0 %v1067
        %v1107 = vpop.f32.mrb[0].mxu0
        %v1108 = vadd.f32 0.0, %v1107
        %v1109 = vpop.f32.mrb[0].mxu0
        %v1110 = vpop.f32.mrb[0].mxu0
        %v1111 = vpop.f32.mrb[0].mxu0
        %1112 = vdwg.mxu0
        %1113 = vrot.lane.b32.xlu0 %v935, 64
        %v1114 = vpop.permute.xlu0 %1113
        %v1116 = vsel %vm939, %v1063, 0
        %v1119 = vsel %vm1069, %v1114, 0
        %1121 = vmatprep.subr.bf16.mxu0 0
        %1122 = vmatpush1.bf16.msra.mxu0 %v1119
        %1123 = vmatprep.subr.bf16.mxu0 0
        %1124 = vmatpush1.bf16.msra.mxu0 0
        %1125 = vmatprep.subr.bf16.mxu0 0
        %1126 = vmatpush1.bf16.msra.mxu0 0
        %1127 = vmatprep.subr.bf16.mxu0 0
        %1128 = vmatpush1.bf16.msra.mxu0 0
        %1129 = vmatprep.subr.bf16.mxu0 0
        %1130 = vmatpush1.bf16.msra.mxu0 0
        %1131 = vmatprep.subr.bf16.mxu0 0
        %1132 = vmatpush1.bf16.msra.mxu0 0
        %1133 = vmatprep.subr.bf16.mxu0 0
        %1134 = vmatpush1.bf16.msra.mxu0 0
        %1135 = vmatprep.subr.bf16.mxu0 0
        %1136 = vmatpush1.bf16.msra.mxu0 0
        %1137 = vmatprep.subr.bf16.mxu0 0
        %1138 = vmatpush1.bf16.msra.mxu0 0
        %1139 = vmatprep.subr.bf16.mxu0 0
        %1140 = vmatpush1.bf16.msra.mxu0 0
        %1141 = vmatprep.subr.bf16.mxu0 0
        %1142 = vmatpush1.bf16.msra.mxu0 0
        %1143 = vmatprep.subr.bf16.mxu0 0
        %1144 = vmatpush1.bf16.msra.mxu0 0
        %1145 = vmatprep.subr.bf16.mxu0 0
        %1146 = vmatpush1.bf16.msra.mxu0 0
        %1147 = vmatprep.subr.bf16.mxu0 0
        %1148 = vmatpush1.bf16.msra.mxu0 0
        %1149 = vmatprep.subr.bf16.mxu0 0
        %1150 = vmatpush1.bf16.msra.mxu0 0
        %1151 = vmatprep.subr.bf16.mxu0 0
        %1152 = vmatpush1.bf16.msra.mxu0 0
        %1153 = vmatprep.mubr.bf16.mxu0 0
        %1154 = vmatmul.mubr.bf16.gmra.mrb[0].mxu0 %v1116
        %v1155 = vpop.f32.mrb[0].mxu0
        %v1156 = vadd.f32 0.0, %v1155
        %v1157 = vpop.f32.mrb[0].mxu0
        %v1158 = vpop.f32.mrb[0].mxu0
        %v1159 = vpop.f32.mrb[0].mxu0
        %1160 = vdwg.mxu0
        %1161 = vst.msk [vmem:[#allocation3] sm:$0xff] %vm939, %v1108
        %1162 = vst.msk [vmem:[#allocation3 + $0x8] sm:$0xff] %vm939, %v1156
        %1164 = vrot.lane.b32.xlu0 %v932, 120
        %v1165 = vpop.permute.xlu0 %1164
        %1166 = vrot.lane.b32.xlu0 %v934, 88
        %v1167 = vpop.permute.xlu0 %1166
        %v1169 = vsel %vm939, %v1165, 0
        %v1172 = vsel %vm939, %v1167, 0
        %1174 = vmatprep.subr.bf16.mxu0 0
        %1175 = vmatpush1.bf16.xpose.msra.mxu0 %v1172
        %1176 = vmatprep.subr.bf16.mxu0 0
        %1177 = vmatpush1.bf16.xpose.msra.mxu0 0
        %1178 = vmatprep.subr.bf16.mxu0 0
        %1179 = vmatpush1.bf16.xpose.msra.mxu0 0
        %1180 = vmatprep.subr.bf16.mxu0 0
        %1181 = vmatpush1.bf16.xpose.msra.mxu0 0
        %1182 = vmatprep.subr.bf16.mxu0 0
        %1183 = vmatpush1.bf16.xpose.msra.mxu0 0
        %1184 = vmatprep.subr.bf16.mxu0 0
        %1185 = vmatpush1.bf16.xpose.msra.mxu0 0
        %1186 = vmatprep.subr.bf16.mxu0 0
        %1187 = vmatpush1.bf16.xpose.msra.mxu0 0
        %1188 = vmatprep.subr.bf16.mxu0 0
        %1189 = vmatpush1.bf16.xpose.msra.mxu0 0
        %1190 = vmatprep.subr.bf16.mxu0 0
        %1191 = vmatpush1.bf16.xpose.msra.mxu0 0
        %1192 = vmatprep.subr.bf16.mxu0 0
        %1193 = vmatpush1.bf16.xpose.msra.mxu0 0
        %1194 = vmatprep.subr.bf16.mxu0 0
        %1195 = vmatpush1.bf16.xpose.msra.mxu0 0
        %1196 = vmatprep.subr.bf16.mxu0 0
        %1197 = vmatpush1.bf16.xpose.msra.mxu0 0
        %1198 = vmatprep.subr.bf16.mxu0 0
        %1199 = vmatpush1.bf16.xpose.msra.mxu0 0
        %1200 = vmatprep.subr.bf16.mxu0 0
        %1201 = vmatpush1.bf16.xpose.msra.mxu0 0
        %1202 = vmatprep.subr.bf16.mxu0 0
        %1203 = vmatpush1.bf16.xpose.msra.mxu0 0
        %1204 = vmatprep.subr.bf16.mxu0 0
        %1205 = vmatpush1.bf16.xpose.msra.mxu0 0
        %1206 = vmatprep.mubr.bf16.mxu0 0
        %1207 = vmatmul.mubr.bf16.gmra.mrb[0].mxu0 %v1169
        %v1208 = vpop.f32.mrb[0].mxu0
        %v1209 = vadd.f32 0.0, %v1208
        %v1210 = vpop.f32.mrb[0].mxu0
        %v1211 = vpop.f32.mrb[0].mxu0
        %v1212 = vpop.f32.mrb[0].mxu0
        %1213 = vdwg.mxu0
        %1215 = vrot.lane.b32.xlu0 %v933, 120
        %v1216 = vpop.permute.xlu0 %1215
        %1217 = vrot.lane.b32.xlu0 %v935, 88
        %v1218 = vpop.permute.xlu0 %1217
        %v1220 = vsel %vm939, %v1216, 0
        %v1223 = vsel %vm939, %v1218, 0
        %1225 = vmatprep.subr.bf16.mxu0 0
        %1226 = vmatpush1.bf16.xpose.msra.mxu0 %v1223
        %1227 = vmatprep.subr.bf16.mxu0 0
        %1228 = vmatpush1.bf16.xpose.msra.mxu0 0
        %1229 = vmatprep.subr.bf16.mxu0 0
        %1230 = vmatpush1.bf16.xpose.msra.mxu0 0
        %1231 = vmatprep.subr.bf16.mxu0 0
        %1232 = vmatpush1.bf16.xpose.msra.mxu0 0
        %1233 = vmatprep.subr.bf16.mxu0 0
        %1234 = vmatpush1.bf16.xpose.msra.mxu0 0
        %1235 = vmatprep.subr.bf16.mxu0 0
        %1236 = vmatpush1.bf16.xpose.msra.mxu0 0
        %1237 = vmatprep.subr.bf16.mxu0 0
        %1238 = vmatpush1.bf16.xpose.msra.mxu0 0
        %1239 = vmatprep.subr.bf16.mxu0 0
        %1240 = vmatpush1.bf16.xpose.msra.mxu0 0
        %1241 = vmatprep.subr.bf16.mxu0 0
        %1242 = vmatpush1.bf16.xpose.msra.mxu0 0
        %1243 = vmatprep.subr.bf16.mxu0 0
        %1244 = vmatpush1.bf16.xpose.msra.mxu0 0
        %1245 = vmatprep.subr.bf16.mxu0 0
        %1246 = vmatpush1.bf16.xpose.msra.mxu0 0
        %1247 = vmatprep.subr.bf16.mxu0 0
        %1248 = vmatpush1.bf16.xpose.msra.mxu0 0
        %1249 = vmatprep.subr.bf16.mxu0 0
        %1250 = vmatpush1.bf16.xpose.msra.mxu0 0
        %1251 = vmatprep.subr.bf16.mxu0 0
        %1252 = vmatpush1.bf16.xpose.msra.mxu0 0
        %1253 = vmatprep.subr.bf16.mxu0 0
        %1254 = vmatpush1.bf16.xpose.msra.mxu0 0
        %1255 = vmatprep.subr.bf16.mxu0 0
        %1256 = vmatpush1.bf16.xpose.msra.mxu0 0
        %1257 = vmatprep.mubr.bf16.mxu0 0
        %1258 = vmatmul.mubr.bf16.gmra.mrb[0].mxu0 %v1220
        %v1259 = vpop.f32.mrb[0].mxu0
        %v1260 = vadd.f32 0.0, %v1259
        %v1261 = vpop.f32.mrb[0].mxu0
        %v1262 = vpop.f32.mrb[0].mxu0
        %v1263 = vpop.f32.mrb[0].mxu0
        %1264 = vdwg.mxu0
        %v1265 = vmul.f32 %v1209, 0.125
        %v1266 = vmul.f32 %v1260, 0.125
        %v1267 = vmax.f32 %v1209, 0.0
        %v1268 = vmax.f32 %v1260, 0.0
        %v1269 = vsel %vm939, %v1267, 0.0
        %1270 = vadd.xlane.f32.xlu0 %v1269
        %v1271 = vpop.xlane.xlu0 %1270
        %v1272 = vsel %vm939, %v1268, 0.0
        %1273 = vadd.xlane.f32.xlu0 %v1272
        %v1274 = vpop.xlane.xlu0 %1273
        %v1275 = vadd.f32 %v1271, 1e-08
        %v1276 = vadd.f32 %v1274, 1e-08
        %v1277 = vrcp.pop %v1275
        %v1278 = vmul.f32 %v1267, %v1277
        %v1279 = vrcp.pop %v1276
        %v1280 = vmul.f32 %v1268, %v1279
        %s1281 = sadd.s32 %s1051, 1
        %s1282 = sld [smem:[#allocation5 + %s1281]]
        %v1283 = vstv %s1282
        %v1284 = vmul.f32 %v1283, %v1278
        %v1285 = vmul.f32 %v1283, %v1280
        %s1286 = ssub.f32 1.0, %s1282
        %v1287 = vstv %s1286
        %v1288 = vmul.f32 %v1287, %v1265
        %v1289 = vmul.f32 %v1287, %v1266
        %v1290 = vadd.f32 %v1284, %v1288
        %v1291 = vadd.f32 %v1285, %v1289
        %v1292 = vpack.c.bf16 %v1290, %v1290
        %v1293 = vpack.c.bf16 %v1291, %v1291
        %1294 = vrot.lane.b32.xlu0 %v934, 56
        %v1295 = vpop.permute.xlu0 %1294
        %v1297 = vsel %vm939, %v1292, 0
        %v1300 = vsel %vm1069, %v1295, 0
        %1302 = vmatprep.subr.bf16.mxu0 0
        %1303 = vmatpush1.bf16.msra.mxu0 %v1300
        %1304 = vmatprep.subr.bf16.mxu0 0
        %1305 = vmatpush1.bf16.msra.mxu0 0
        %1306 = vmatprep.subr.bf16.mxu0 0
        %1307 = vmatpush1.bf16.msra.mxu0 0
        %1308 = vmatprep.subr.bf16.mxu0 0
        %1309 = vmatpush1.bf16.msra.mxu0 0
        %1310 = vmatprep.subr.bf16.mxu0 0
        %1311 = vmatpush1.bf16.msra.mxu0 0
        %1312 = vmatprep.subr.bf16.mxu0 0
        %1313 = vmatpush1.bf16.msra.mxu0 0
        %1314 = vmatprep.subr.bf16.mxu0 0
        %1315 = vmatpush1.bf16.msra.mxu0 0
        %1316 = vmatprep.subr.bf16.mxu0 0
        %1317 = vmatpush1.bf16.msra.mxu0 0
        %1318 = vmatprep.subr.bf16.mxu0 0
        %1319 = vmatpush1.bf16.msra.mxu0 0
        %1320 = vmatprep.subr.bf16.mxu0 0
        %1321 = vmatpush1.bf16.msra.mxu0 0
        %1322 = vmatprep.subr.bf16.mxu0 0
        %1323 = vmatpush1.bf16.msra.mxu0 0
        %1324 = vmatprep.subr.bf16.mxu0 0
        %1325 = vmatpush1.bf16.msra.mxu0 0
        %1326 = vmatprep.subr.bf16.mxu0 0
        %1327 = vmatpush1.bf16.msra.mxu0 0
        %1328 = vmatprep.subr.bf16.mxu0 0
        %1329 = vmatpush1.bf16.msra.mxu0 0
        %1330 = vmatprep.subr.bf16.mxu0 0
        %1331 = vmatpush1.bf16.msra.mxu0 0
        %1332 = vmatprep.subr.bf16.mxu0 0
        %1333 = vmatpush1.bf16.msra.mxu0 0
        %1334 = vmatprep.mubr.bf16.mxu0 0
        %1335 = vmatmul.mubr.bf16.gmra.mrb[0].mxu0 %v1297
        %v1336 = vpop.f32.mrb[0].mxu0
        %v1337 = vadd.f32 0.0, %v1336
        %v1338 = vpop.f32.mrb[0].mxu0
        %v1339 = vpop.f32.mrb[0].mxu0
        %v1340 = vpop.f32.mrb[0].mxu0
        %1341 = vdwg.mxu0
        %1342 = vrot.lane.b32.xlu0 %v935, 56
        %v1343 = vpop.permute.xlu0 %1342
        %v1345 = vsel %vm939, %v1293, 0
        %v1348 = vsel %vm1069, %v1343, 0
        %1350 = vmatprep.subr.bf16.mxu0 0
        %1351 = vmatpush1.bf16.msra.mxu0 %v1348
        %1352 = vmatprep.subr.bf16.mxu0 0
        %1353 = vmatpush1.bf16.msra.mxu0 0
        %1354 = vmatprep.subr.bf16.mxu0 0
        %1355 = vmatpush1.bf16.msra.mxu0 0
        %1356 = vmatprep.subr.bf16.mxu0 0
        %1357 = vmatpush1.bf16.msra.mxu0 0
        %1358 = vmatprep.subr.bf16.mxu0 0
        %1359 = vmatpush1.bf16.msra.mxu0 0
        %1360 = vmatprep.subr.bf16.mxu0 0
        %1361 = vmatpush1.bf16.msra.mxu0 0
        %1362 = vmatprep.subr.bf16.mxu0 0
        %1363 = vmatpush1.bf16.msra.mxu0 0
        %1364 = vmatprep.subr.bf16.mxu0 0
        %1365 = vmatpush1.bf16.msra.mxu0 0
        %1366 = vmatprep.subr.bf16.mxu0 0
        %1367 = vmatpush1.bf16.msra.mxu0 0
        %1368 = vmatprep.subr.bf16.mxu0 0
        %1369 = vmatpush1.bf16.msra.mxu0 0
        %1370 = vmatprep.subr.bf16.mxu0 0
        %1371 = vmatpush1.bf16.msra.mxu0 0
        %1372 = vmatprep.subr.bf16.mxu0 0
        %1373 = vmatpush1.bf16.msra.mxu0 0
        %1374 = vmatprep.subr.bf16.mxu0 0
        %1375 = vmatpush1.bf16.msra.mxu0 0
        %1376 = vmatprep.subr.bf16.mxu0 0
        %1377 = vmatpush1.bf16.msra.mxu0 0
        %1378 = vmatprep.subr.bf16.mxu0 0
        %1379 = vmatpush1.bf16.msra.mxu0 0
        %1380 = vmatprep.subr.bf16.mxu0 0
        %1381 = vmatpush1.bf16.msra.mxu0 0
        %1382 = vmatprep.mubr.bf16.mxu0 0
        %1383 = vmatmul.mubr.bf16.gmra.mrb[0].mxu0 %v1345
        %v1384 = vpop.f32.mrb[0].mxu0
        %v1385 = vadd.f32 0.0, %v1384
        %v1386 = vpop.f32.mrb[0].mxu0
        %v1387 = vpop.f32.mrb[0].mxu0
        %v1388 = vpop.f32.mrb[0].mxu0
        %1389 = vdwg.mxu0
        %1392 = vrot.lane.b32.xlu0 %v1337, 8
        %v1393 = vpop.permute.xlu0 %1392
        %1394 = vrot.lane.b32.xlu0 %v1385, 8
        %v1395 = vpop.permute.xlu0 %1394
        %vm1398 = vcmask 130112
        %1399 = vst.msk [vmem:[#allocation3] sm:$0xff] %vm1398, %v1393
        %1400 = vst.msk [vmem:[#allocation3 + $0x8] sm:$0xff] %vm1398, %v1395
        %1401 = vrot.lane.b32.xlu0 %v932, 112
        %v1402 = vpop.permute.xlu0 %1401
        %1403 = vrot.lane.b32.xlu0 %v934, 80
        %v1404 = vpop.permute.xlu0 %1403
        %v1406 = vsel %vm939, %v1402, 0
        %v1409 = vsel %vm939, %v1404, 0
        %1411 = vmatprep.subr.bf16.mxu0 0
        %1412 = vmatpush1.bf16.xpose.msra.mxu0 %v1409
        %1413 = vmatprep.subr.bf16.mxu0 0
        %1414 = vmatpush1.bf16.xpose.msra.mxu0 0
        %1415 = vmatprep.subr.bf16.mxu0 0
        %1416 = vmatpush1.bf16.xpose.msra.mxu0 0
        %1417 = vmatprep.subr.bf16.mxu0 0
        %1418 = vmatpush1.bf16.xpose.msra.mxu0 0
        %1419 = vmatprep.subr.bf16.mxu0 0
        %1420 = vmatpush1.bf16.xpose.msra.mxu0 0
        %1421 = vmatprep.subr.bf16.mxu0 0
        %1422 = vmatpush1.bf16.xpose.msra.mxu0 0
        %1423 = vmatprep.subr.bf16.mxu0 0
        %1424 = vmatpush1.bf16.xpose.msra.mxu0 0
        %1425 = vmatprep.subr.bf16.mxu0 0
        %1426 = vmatpush1.bf16.xpose.msra.mxu0 0
        %1427 = vmatprep.subr.bf16.mxu0 0
        %1428 = vmatpush1.bf16.xpose.msra.mxu0 0
        %1429 = vmatprep.subr.bf16.mxu0 0
        %1430 = vmatpush1.bf16.xpose.msra.mxu0 0
        %1431 = vmatprep.subr.bf16.mxu0 0
        %1432 = vmatpush1.bf16.xpose.msra.mxu0 0
        %1433 = vmatprep.subr.bf16.mxu0 0
        %1434 = vmatpush1.bf16.xpose.msra.mxu0 0
        %1435 = vmatprep.subr.bf16.mxu0 0
        %1436 = vmatpush1.bf16.xpose.msra.mxu0 0
        %1437 = vmatprep.subr.bf16.mxu0 0
        %1438 = vmatpush1.bf16.xpose.msra.mxu0 0
        %1439 = vmatprep.subr.bf16.mxu0 0
        %1440 = vmatpush1.bf16.xpose.msra.mxu0 0
        %1441 = vmatprep.subr.bf16.mxu0 0
        %1442 = vmatpush1.bf16.xpose.msra.mxu0 0
        %1443 = vmatprep.mubr.bf16.mxu0 0
        %1444 = vmatmul.mubr.bf16.gmra.mrb[0].mxu0 %v1406
        %v1445 = vpop.f32.mrb[0].mxu0
        %v1446 = vadd.f32 0.0, %v1445
        %v1447 = vpop.f32.mrb[0].mxu0
        %v1448 = vpop.f32.mrb[0].mxu0
        %v1449 = vpop.f32.mrb[0].mxu0
        %1450 = vdwg.mxu0
        %1451 = vrot.lane.b32.xlu0 %v933, 112
        %v1452 = vpop.permute.xlu0 %1451
        %1453 = vrot.lane.b32.xlu0 %v935, 80
        %v1454 = vpop.permute.xlu0 %1453
        %v1456 = vsel %vm939, %v1452, 0
        %v1459 = vsel %vm939, %v1454, 0
        %1461 = vmatprep.subr.bf16.mxu0 0
        %1462 = vmatpush1.bf16.xpose.msra.mxu0 %v1459
        %1463 = vmatprep.subr.bf16.mxu0 0
        %1464 = vmatpush1.bf16.xpose.msra.mxu0 0
        %1465 = vmatprep.subr.bf16.mxu0 0
        %1466 = vmatpush1.bf16.xpose.msra.mxu0 0
        %1467 = vmatprep.subr.bf16.mxu0 0
        %1468 = vmatpush1.bf16.xpose.msra.mxu0 0
        %1469 = vmatprep.subr.bf16.mxu0 0
        %1470 = vmatpush1.bf16.xpose.msra.mxu0 0
        %1471 = vmatprep.subr.bf16.mxu0 0
        %1472 = vmatpush1.bf16.xpose.msra.mxu0 0
        %1473 = vmatprep.subr.bf16.mxu0 0
        %1474 = vmatpush1.bf16.xpose.msra.mxu0 0
        %1475 = vmatprep.subr.bf16.mxu0 0
        %1476 = vmatpush1.bf16.xpose.msra.mxu0 0
        %1477 = vmatprep.subr.bf16.mxu0 0
        %1478 = vmatpush1.bf16.xpose.msra.mxu0 0
        %1479 = vmatprep.subr.bf16.mxu0 0
        %1480 = vmatpush1.bf16.xpose.msra.mxu0 0
        %1481 = vmatprep.subr.bf16.mxu0 0
        %1482 = vmatpush1.bf16.xpose.msra.mxu0 0
        %1483 = vmatprep.subr.bf16.mxu0 0
        %1484 = vmatpush1.bf16.xpose.msra.mxu0 0
        %1485 = vmatprep.subr.bf16.mxu0 0
        %1486 = vmatpush1.bf16.xpose.msra.mxu0 0
        %1487 = vmatprep.subr.bf16.mxu0 0
        %1488 = vmatpush1.bf16.xpose.msra.mxu0 0
        %1489 = vmatprep.subr.bf16.mxu0 0
        %1490 = vmatpush1.bf16.xpose.msra.mxu0 0
        %1491 = vmatprep.subr.bf16.mxu0 0
        %1492 = vmatpush1.bf16.xpose.msra.mxu0 0
        %1493 = vmatprep.mubr.bf16.mxu0 0
        %1494 = vmatmul.mubr.bf16.gmra.mrb[0].mxu0 %v1456
        %v1495 = vpop.f32.mrb[0].mxu0
        %v1496 = vadd.f32 0.0, %v1495
        %v1497 = vpop.f32.mrb[0].mxu0
        %v1498 = vpop.f32.mrb[0].mxu0
        %v1499 = vpop.f32.mrb[0].mxu0
        %1500 = vdwg.mxu0
        %v1501 = vmul.f32 %v1446, 0.125
        %v1502 = vmul.f32 %v1496, 0.125
        %v1503 = vmax.f32 %v1446, 0.0
        %v1504 = vmax.f32 %v1496, 0.0
        %v1505 = vsel %vm939, %v1503, 0.0
        %1506 = vadd.xlane.f32.xlu0 %v1505
        %v1507 = vpop.xlane.xlu0 %1506
        %v1508 = vsel %vm939, %v1504, 0.0
        %1509 = vadd.xlane.f32.xlu0 %v1508
        %v1510 = vpop.xlane.xlu0 %1509
        %v1511 = vadd.f32 %v1507, 1e-08
        %v1512 = vadd.f32 %v1510, 1e-08
        %v1513 = vrcp.pop %v1511
        %v1514 = vmul.f32 %v1503, %v1513
        %v1515 = vrcp.pop %v1512
        %v1516 = vmul.f32 %v1504, %v1515
        %s1517 = sadd.s32 %s1051, 2
        %s1518 = sld [smem:[#allocation5 + %s1517]]
        %v1519 = vstv %s1518
        %v1520 = vmul.f32 %v1519, %v1514
        %v1521 = vmul.f32 %v1519, %v1516
        %s1522 = ssub.f32 1.0, %s1518
        %v1523 = vstv %s1522
        %v1524 = vmul.f32 %v1523, %v1501
        %v1525 = vmul.f32 %v1523, %v1502
        %v1526 = vadd.f32 %v1520, %v1524
        %v1527 = vadd.f32 %v1521, %v1525
        %v1528 = vpack.c.bf16 %v1526, %v1526
        %v1529 = vpack.c.bf16 %v1527, %v1527
        %1530 = vrot.lane.b32.xlu0 %v934, 48
        %v1531 = vpop.permute.xlu0 %1530
        %v1533 = vsel %vm939, %v1528, 0
        %v1536 = vsel %vm1069, %v1531, 0
        %1538 = vmatprep.subr.bf16.mxu0 0
        %1539 = vmatpush1.bf16.msra.mxu0 %v1536
        %1540 = vmatprep.subr.bf16.mxu0 0
        %1541 = vmatpush1.bf16.msra.mxu0 0
        %1542 = vmatprep.subr.bf16.mxu0 0
        %1543 = vmatpush1.bf16.msra.mxu0 0
        %1544 = vmatprep.subr.bf16.mxu0 0
        %1545 = vmatpush1.bf16.msra.mxu0 0
        %1546 = vmatprep.subr.bf16.mxu0 0
        %1547 = vmatpush1.bf16.msra.mxu0 0
        %1548 = vmatprep.subr.bf16.mxu0 0
        %1549 = vmatpush1.bf16.msra.mxu0 0
        %1550 = vmatprep.subr.bf16.mxu0 0
        %1551 = vmatpush1.bf16.msra.mxu0 0
        %1552 = vmatprep.subr.bf16.mxu0 0
        %1553 = vmatpush1.bf16.msra.mxu0 0
        %1554 = vmatprep.subr.bf16.mxu0 0
        %1555 = vmatpush1.bf16.msra.mxu0 0
        %1556 = vmatprep.subr.bf16.mxu0 0
        %1557 = vmatpush1.bf16.msra.mxu0 0
        %1558 = vmatprep.subr.bf16.mxu0 0
        %1559 = vmatpush1.bf16.msra.mxu0 0
        %1560 = vmatprep.subr.bf16.mxu0 0
        %1561 = vmatpush1.bf16.msra.mxu0 0
        %1562 = vmatprep.subr.bf16.mxu0 0
        %1563 = vmatpush1.bf16.msra.mxu0 0
        %1564 = vmatprep.subr.bf16.mxu0 0
        %1565 = vmatpush1.bf16.msra.mxu0 0
        %1566 = vmatprep.subr.bf16.mxu0 0
        %1567 = vmatpush1.bf16.msra.mxu0 0
        %1568 = vmatprep.subr.bf16.mxu0 0
        %1569 = vmatpush1.bf16.msra.mxu0 0
        %1570 = vmatprep.mubr.bf16.mxu0 0
        %1571 = vmatmul.mubr.bf16.gmra.mrb[0].mxu0 %v1533
        %v1572 = vpop.f32.mrb[0].mxu0
        %v1573 = vadd.f32 0.0, %v1572
        %v1574 = vpop.f32.mrb[0].mxu0
        %v1575 = vpop.f32.mrb[0].mxu0
        %v1576 = vpop.f32.mrb[0].mxu0
        %1577 = vdwg.mxu0
        %1578 = vrot.lane.b32.xlu0 %v935, 48
        %v1579 = vpop.permute.xlu0 %1578
        %v1581 = vsel %vm939, %v1529, 0
        %v1584 = vsel %vm1069, %v1579, 0
        %1586 = vmatprep.subr.bf16.mxu0 0
        %1587 = vmatpush1.bf16.msra.mxu0 %v1584
        %1588 = vmatprep.subr.bf16.mxu0 0
        %1589 = vmatpush1.bf16.msra.mxu0 0
        %1590 = vmatprep.subr.bf16.mxu0 0
        %1591 = vmatpush1.bf16.msra.mxu0 0
        %1592 = vmatprep.subr.bf16.mxu0 0
        %1593 = vmatpush1.bf16.msra.mxu0 0
        %1594 = vmatprep.subr.bf16.mxu0 0
        %1595 = vmatpush1.bf16.msra.mxu0 0
        %1596 = vmatprep.subr.bf16.mxu0 0
        %1597 = vmatpush1.bf16.msra.mxu0 0
        %1598 = vmatprep.subr.bf16.mxu0 0
        %1599 = vmatpush1.bf16.msra.mxu0 0
        %1600 = vmatprep.subr.bf16.mxu0 0
        %1601 = vmatpush1.bf16.msra.mxu0 0
        %1602 = vmatprep.subr.bf16.mxu0 0
        %1603 = vmatpush1.bf16.msra.mxu0 0
        %1604 = vmatprep.subr.bf16.mxu0 0
        %1605 = vmatpush1.bf16.msra.mxu0 0
        %1606 = vmatprep.subr.bf16.mxu0 0
        %1607 = vmatpush1.bf16.msra.mxu0 0
        %1608 = vmatprep.subr.bf16.mxu0 0
        %1609 = vmatpush1.bf16.msra.mxu0 0
        %1610 = vmatprep.subr.bf16.mxu0 0
        %1611 = vmatpush1.bf16.msra.mxu0 0
        %1612 = vmatprep.subr.bf16.mxu0 0
        %1613 = vmatpush1.bf16.msra.mxu0 0
        %1614 = vmatprep.subr.bf16.mxu0 0
        %1615 = vmatpush1.bf16.msra.mxu0 0
        %1616 = vmatprep.subr.bf16.mxu0 0
        %1617 = vmatpush1.bf16.msra.mxu0 0
        %1618 = vmatprep.mubr.bf16.mxu0 0
        %1619 = vmatmul.mubr.bf16.gmra.mrb[0].mxu0 %v1581
        %v1620 = vpop.f32.mrb[0].mxu0
        %v1621 = vadd.f32 0.0, %v1620
        %v1622 = vpop.f32.mrb[0].mxu0
        %v1623 = vpop.f32.mrb[0].mxu0
        %v1624 = vpop.f32.mrb[0].mxu0
        %1625 = vdwg.mxu0
        %1628 = vrot.lane.b32.xlu0 %v1573, 16
        %v1629 = vpop.permute.xlu0 %1628
        %1630 = vrot.lane.b32.xlu0 %v1621, 16
        %v1631 = vpop.permute.xlu0 %1630
        %vm1634 = vcmask 195712
        %1635 = vst.msk [vmem:[#allocation3] sm:$0xff] %vm1634, %v1629
        %1636 = vst.msk [vmem:[#allocation3 + $0x8] sm:$0xff] %vm1634, %v1631
        %1637 = vrot.lane.b32.xlu0 %v932, 104
        %v1638 = vpop.permute.xlu0 %1637
        %1639 = vrot.lane.b32.xlu0 %v934, 72
        %v1640 = vpop.permute.xlu0 %1639
        %v1642 = vsel %vm939, %v1638, 0
        %v1645 = vsel %vm939, %v1640, 0
        %1647 = vmatprep.subr.bf16.mxu0 0
        %1648 = vmatpush1.bf16.xpose.msra.mxu0 %v1645
        %1649 = vmatprep.subr.bf16.mxu0 0
        %1650 = vmatpush1.bf16.xpose.msra.mxu0 0
        %1651 = vmatprep.subr.bf16.mxu0 0
        %1652 = vmatpush1.bf16.xpose.msra.mxu0 0
        %1653 = vmatprep.subr.bf16.mxu0 0
        %1654 = vmatpush1.bf16.xpose.msra.mxu0 0
        %1655 = vmatprep.subr.bf16.mxu0 0
        %1656 = vmatpush1.bf16.xpose.msra.mxu0 0
        %1657 = vmatprep.subr.bf16.mxu0 0
        %1658 = vmatpush1.bf16.xpose.msra.mxu0 0
        %1659 = vmatprep.subr.bf16.mxu0 0
        %1660 = vmatpush1.bf16.xpose.msra.mxu0 0
        %1661 = vmatprep.subr.bf16.mxu0 0
        %1662 = vmatpush1.bf16.xpose.msra.mxu0 0
        %1663 = vmatprep.subr.bf16.mxu0 0
        %1664 = vmatpush1.bf16.xpose.msra.mxu0 0
        %1665 = vmatprep.subr.bf16.mxu0 0
        %1666 = vmatpush1.bf16.xpose.msra.mxu0 0
        %1667 = vmatprep.subr.bf16.mxu0 0
        %1668 = vmatpush1.bf16.xpose.msra.mxu0 0
        %1669 = vmatprep.subr.bf16.mxu0 0
        %1670 = vmatpush1.bf16.xpose.msra.mxu0 0
        %1671 = vmatprep.subr.bf16.mxu0 0
        %1672 = vmatpush1.bf16.xpose.msra.mxu0 0
        %1673 = vmatprep.subr.bf16.mxu0 0
        %1674 = vmatpush1.bf16.xpose.msra.mxu0 0
        %1675 = vmatprep.subr.bf16.mxu0 0
        %1676 = vmatpush1.bf16.xpose.msra.mxu0 0
        %1677 = vmatprep.subr.bf16.mxu0 0
        %1678 = vmatpush1.bf16.xpose.msra.mxu0 0
        %1679 = vmatprep.mubr.bf16.mxu0 0
        %1680 = vmatmul.mubr.bf16.gmra.mrb[0].mxu0 %v1642
        %v1681 = vpop.f32.mrb[0].mxu0
        %v1682 = vadd.f32 0.0, %v1681
        %v1683 = vpop.f32.mrb[0].mxu0
        %v1684 = vpop.f32.mrb[0].mxu0
        %v1685 = vpop.f32.mrb[0].mxu0
        %1686 = vdwg.mxu0
        %1687 = vrot.lane.b32.xlu0 %v933, 104
        %v1688 = vpop.permute.xlu0 %1687
        %1689 = vrot.lane.b32.xlu0 %v935, 72
        %v1690 = vpop.permute.xlu0 %1689
        %v1692 = vsel %vm939, %v1688, 0
        %v1695 = vsel %vm939, %v1690, 0
        %1697 = vmatprep.subr.bf16.mxu0 0
        %1698 = vmatpush1.bf16.xpose.msra.mxu0 %v1695
        %1699 = vmatprep.subr.bf16.mxu0 0
        %1700 = vmatpush1.bf16.xpose.msra.mxu0 0
        %1701 = vmatprep.subr.bf16.mxu0 0
        %1702 = vmatpush1.bf16.xpose.msra.mxu0 0
        %1703 = vmatprep.subr.bf16.mxu0 0
        %1704 = vmatpush1.bf16.xpose.msra.mxu0 0
        %1705 = vmatprep.subr.bf16.mxu0 0
        %1706 = vmatpush1.bf16.xpose.msra.mxu0 0
        %1707 = vmatprep.subr.bf16.mxu0 0
        %1708 = vmatpush1.bf16.xpose.msra.mxu0 0
        %1709 = vmatprep.subr.bf16.mxu0 0
        %1710 = vmatpush1.bf16.xpose.msra.mxu0 0
        %1711 = vmatprep.subr.bf16.mxu0 0
        %1712 = vmatpush1.bf16.xpose.msra.mxu0 0
        %1713 = vmatprep.subr.bf16.mxu0 0
        %1714 = vmatpush1.bf16.xpose.msra.mxu0 0
        %1715 = vmatprep.subr.bf16.mxu0 0
        %1716 = vmatpush1.bf16.xpose.msra.mxu0 0
        %1717 = vmatprep.subr.bf16.mxu0 0
        %1718 = vmatpush1.bf16.xpose.msra.mxu0 0
        %1719 = vmatprep.subr.bf16.mxu0 0
        %1720 = vmatpush1.bf16.xpose.msra.mxu0 0
        %1721 = vmatprep.subr.bf16.mxu0 0
        %1722 = vmatpush1.bf16.xpose.msra.mxu0 0
        %1723 = vmatprep.subr.bf16.mxu0 0
        %1724 = vmatpush1.bf16.xpose.msra.mxu0 0
        %1725 = vmatprep.subr.bf16.mxu0 0
        %1726 = vmatpush1.bf16.xpose.msra.mxu0 0
        %1727 = vmatprep.subr.bf16.mxu0 0
        %1728 = vmatpush1.bf16.xpose.msra.mxu0 0
        %1729 = vmatprep.mubr.bf16.mxu0 0
        %1730 = vmatmul.mubr.bf16.gmra.mrb[0].mxu0 %v1692
        %v1731 = vpop.f32.mrb[0].mxu0
        %v1732 = vadd.f32 0.0, %v1731
        %v1733 = vpop.f32.mrb[0].mxu0
        %v1734 = vpop.f32.mrb[0].mxu0
        %v1735 = vpop.f32.mrb[0].mxu0
        %1736 = vdwg.mxu0
        %v1737 = vmul.f32 %v1682, 0.125
        %v1738 = vmul.f32 %v1732, 0.125
        %v1739 = vmax.f32 %v1682, 0.0
        %v1740 = vmax.f32 %v1732, 0.0
        %v1741 = vsel %vm939, %v1739, 0.0
        %1742 = vadd.xlane.f32.xlu0 %v1741
        %v1743 = vpop.xlane.xlu0 %1742
        %v1744 = vsel %vm939, %v1740, 0.0
        %1745 = vadd.xlane.f32.xlu0 %v1744
        %v1746 = vpop.xlane.xlu0 %1745
        %v1747 = vadd.f32 %v1743, 1e-08
        %v1748 = vadd.f32 %v1746, 1e-08
        %v1749 = vrcp.pop %v1747
        %v1750 = vmul.f32 %v1739, %v1749
        %v1751 = vrcp.pop %v1748
        %v1752 = vmul.f32 %v1740, %v1751
        %s1753 = sadd.s32 %s1051, 3
        %s1754 = sld [smem:[#allocation5 + %s1753]]
        %v1755 = vstv %s1754
        %v1756 = vmul.f32 %v1755, %v1750
        %v1757 = vmul.f32 %v1755, %v1752
        %s1758 = ssub.f32 1.0, %s1754
        %v1759 = vstv %s1758
        %v1760 = vmul.f32 %v1759, %v1737
        %v1761 = vmul.f32 %v1759, %v1738
        %v1762 = vadd.f32 %v1756, %v1760
        %v1763 = vadd.f32 %v1757, %v1761
        %v1764 = vpack.c.bf16 %v1762, %v1762
        %v1765 = vpack.c.bf16 %v1763, %v1763
        %1766 = vrot.lane.b32.xlu0 %v934, 40
        %v1767 = vpop.permute.xlu0 %1766
        %v1769 = vsel %vm939, %v1764, 0
        %v1772 = vsel %vm1069, %v1767, 0
        %1774 = vmatprep.subr.bf16.mxu0 0
        %1775 = vmatpush1.bf16.msra.mxu0 %v1772
        %1776 = vmatprep.subr.bf16.mxu0 0
        %1777 = vmatpush1.bf16.msra.mxu0 0
        %1778 = vmatprep.subr.bf16.mxu0 0
        %1779 = vmatpush1.bf16.msra.mxu0 0
        %1780 = vmatprep.subr.bf16.mxu0 0
        %1781 = vmatpush1.bf16.msra.mxu0 0
        %1782 = vmatprep.subr.bf16.mxu0 0
        %1783 = vmatpush1.bf16.msra.mxu0 0
        %1784 = vmatprep.subr.bf16.mxu0 0
        %1785 = vmatpush1.bf16.msra.mxu0 0
        %1786 = vmatprep.subr.bf16.mxu0 0
        %1787 = vmatpush1.bf16.msra.mxu0 0
        %1788 = vmatprep.subr.bf16.mxu0 0
        %1789 = vmatpush1.bf16.msra.mxu0 0
        %1790 = vmatprep.subr.bf16.mxu0 0
        %1791 = vmatpush1.bf16.msra.mxu0 0
        %1792 = vmatprep.subr.bf16.mxu0 0
        %1793 = vmatpush1.bf16.msra.mxu0 0
        %1794 = vmatprep.subr.bf16.mxu0 0
        %1795 = vmatpush1.bf16.msra.mxu0 0
        %1796 = vmatprep.subr.bf16.mxu0 0
        %1797 = vmatpush1.bf16.msra.mxu0 0
        %1798 = vmatprep.subr.bf16.mxu0 0
        %1799 = vmatpush1.bf16.msra.mxu0 0
        %1800 = vmatprep.subr.bf16.mxu0 0
        %1801 = vmatpush1.bf16.msra.mxu0 0
        %1802 = vmatprep.subr.bf16.mxu0 0
        %1803 = vmatpush1.bf16.msra.mxu0 0
        %1804 = vmatprep.subr.bf16.mxu0 0
        %1805 = vmatpush1.bf16.msra.mxu0 0
        %1806 = vmatprep.mubr.bf16.mxu0 0
        %1807 = vmatmul.mubr.bf16.gmra.mrb[0].mxu0 %v1769
        %v1808 = vpop.f32.mrb[0].mxu0
        %v1809 = vadd.f32 0.0, %v1808
        %v1810 = vpop.f32.mrb[0].mxu0
        %v1811 = vpop.f32.mrb[0].mxu0
        %v1812 = vpop.f32.mrb[0].mxu0
        %1813 = vdwg.mxu0
        %1814 = vrot.lane.b32.xlu0 %v935, 40
        %v1815 = vpop.permute.xlu0 %1814
        %v1817 = vsel %vm939, %v1765, 0
        %v1820 = vsel %vm1069, %v1815, 0
        %1822 = vmatprep.subr.bf16.mxu0 0
        %1823 = vmatpush1.bf16.msra.mxu0 %v1820
        %1824 = vmatprep.subr.bf16.mxu0 0
        %1825 = vmatpush1.bf16.msra.mxu0 0
        %1826 = vmatprep.subr.bf16.mxu0 0
        %1827 = vmatpush1.bf16.msra.mxu0 0
        %1828 = vmatprep.subr.bf16.mxu0 0
        %1829 = vmatpush1.bf16.msra.mxu0 0
        %1830 = vmatprep.subr.bf16.mxu0 0
        %1831 = vmatpush1.bf16.msra.mxu0 0
        %1832 = vmatprep.subr.bf16.mxu0 0
        %1833 = vmatpush1.bf16.msra.mxu0 0
        %1834 = vmatprep.subr.bf16.mxu0 0
        %1835 = vmatpush1.bf16.msra.mxu0 0
        %1836 = vmatprep.subr.bf16.mxu0 0
        %1837 = vmatpush1.bf16.msra.mxu0 0
        %1838 = vmatprep.subr.bf16.mxu0 0
        %1839 = vmatpush1.bf16.msra.mxu0 0
        %1840 = vmatprep.subr.bf16.mxu0 0
        %1841 = vmatpush1.bf16.msra.mxu0 0
        %1842 = vmatprep.subr.bf16.mxu0 0
        %1843 = vmatpush1.bf16.msra.mxu0 0
        %1844 = vmatprep.subr.bf16.mxu0 0
        %1845 = vmatpush1.bf16.msra.mxu0 0
        %1846 = vmatprep.subr.bf16.mxu0 0
        %1847 = vmatpush1.bf16.msra.mxu0 0
        %1848 = vmatprep.subr.bf16.mxu0 0
        %1849 = vmatpush1.bf16.msra.mxu0 0
        %1850 = vmatprep.subr.bf16.mxu0 0
        %1851 = vmatpush1.bf16.msra.mxu0 0
        %1852 = vmatprep.subr.bf16.mxu0 0
        %1853 = vmatpush1.bf16.msra.mxu0 0
        %1854 = vmatprep.mubr.bf16.mxu0 0
        %1855 = vmatmul.mubr.bf16.gmra.mrb[0].mxu0 %v1817
        %v1856 = vpop.f32.mrb[0].mxu0
        %v1857 = vadd.f32 0.0, %v1856
        %v1858 = vpop.f32.mrb[0].mxu0
        %v1859 = vpop.f32.mrb[0].mxu0
        %v1860 = vpop.f32.mrb[0].mxu0
        %1861 = vdwg.mxu0
        %1864 = vrot.lane.b32.xlu0 %v1809, 24
        %v1865 = vpop.permute.xlu0 %1864
        %1866 = vrot.lane.b32.xlu0 %v1857, 24
        %v1867 = vpop.permute.xlu0 %1866
        %vm1870 = vcmask 261312
        %1871 = vst.msk [vmem:[#allocation3] sm:$0xff] %vm1870, %v1865
        %1872 = vst.msk [vmem:[#allocation3 + $0x8] sm:$0xff] %vm1870, %v1867
        %v1873 = vld [vmem:[#allocation3] sm:$0xff]
        %v1874 = vld [vmem:[#allocation3 + $0x8] sm:$0xff]
        %v1875 = vpack.c.bf16 %v1874, %v1873
        %v1876 = vld [vmem:[%s790] sm:$0xf]
        %v1877 = vld [vmem:[%s790 + $0x4] sm:$0xf]
        %v1878 = vld [vmem:[%s790 + $0x8] sm:$0xf]
        %v1879 = vld [vmem:[%s790 + $0xc] sm:$0xf]
        %v1880 = vld [vmem:[%s793] sm:$0x1]
        %v1882 = vlaneseq
        %v1883 = vshrl.u32 %v1882, 7
        %v1884 = vsub.s32 0, %v1883
        %v1885 = vrot.slane %v1880, %v1884
        %v1891 = vunpack.c.l.b16 %v1876
        %v1892 = vunpack.c.l.b16 %v1877
        %v1893 = vunpack.c.l.b16 %v1878
        %v1894 = vunpack.c.l.b16 %v1879
        %v1895 = vpack.c.b16 %v1892, %v1891
        %v1896 = vpack.c.b16 %v1894, %v1893
        %v1900 = vsel %vm825, %v1875, 0
        %1902 = vmatprep.subr.bf16.mxu0 0
        %1903 = vmatpush1.bf16.msra.mxu0 %v1895
        %1904 = vmatprep.subr.bf16.mxu0 0
        %1905 = vmatpush1.bf16.msra.mxu0 %v1896
        %1906 = vmatprep.subr.bf16.mxu0 0
        %1907 = vmatpush1.bf16.msra.mxu0 0
        %1908 = vmatprep.subr.bf16.mxu0 0
        %1909 = vmatpush1.bf16.msra.mxu0 0
        %1910 = vmatprep.subr.bf16.mxu0 0
        %1911 = vmatpush1.bf16.msra.mxu0 0
        %1912 = vmatprep.subr.bf16.mxu0 0
        %1913 = vmatpush1.bf16.msra.mxu0 0
        %1914 = vmatprep.subr.bf16.mxu0 0
        %1915 = vmatpush1.bf16.msra.mxu0 0
        %1916 = vmatprep.subr.bf16.mxu0 0
        %1917 = vmatpush1.bf16.msra.mxu0 0
        %1918 = vmatprep.subr.bf16.mxu0 0
        %1919 = vmatpush1.bf16.msra.mxu0 0
        %1920 = vmatprep.subr.bf16.mxu0 0
        %1921 = vmatpush1.bf16.msra.mxu0 0
        %1922 = vmatprep.subr.bf16.mxu0 0
        %1923 = vmatpush1.bf16.msra.mxu0 0
        %1924 = vmatprep.subr.bf16.mxu0 0
        %1925 = vmatpush1.bf16.msra.mxu0 0
        %1926 = vmatprep.subr.bf16.mxu0 0
        %1927 = vmatpush1.bf16.msra.mxu0 0
        %1928 = vmatprep.subr.bf16.mxu0 0
        %1929 = vmatpush1.bf16.msra.mxu0 0
        %1930 = vmatprep.subr.bf16.mxu0 0
        %1931 = vmatpush1.bf16.msra.mxu0 0
        %1932 = vmatprep.subr.bf16.mxu0 0
        %1933 = vmatpush1.bf16.msra.mxu0 0
        %1934 = vmatprep.mubr.bf16.mxu0 0
        %1935 = vmatmul.mubr.bf16.gmra.mrb[0].mxu0 %v1900
        %v1936 = vpop.f32.mrb[0].mxu0
        %v1937 = vadd.f32 %v1885, %v1936
        %v1938 = vpop.f32.mrb[0].mxu0
        %v1939 = vpop.f32.mrb[0].mxu0
        %v1940 = vadd.f32 %v1885, %v1939
        %v1941 = vpop.f32.mrb[0].mxu0
        %1942 = vdwg.mxu0
        %v1943 = vadd.f32 %v821, %v1937
        %v1944 = vadd.f32 %v822, %v1940
        %v1945 = vld [vmem:[%s796] sm:$0x1]
        %v1946 = vld [vmem:[%s799] sm:$0x1]
        %v1947 = vsel %vm825, %v1943, 0.0
        %1948 = vadd.xlane.f32.xlu0 %v1947
        %v1949 = vpop.xlane.xlu0 %1948
        %v1950 = vsel %vm825, %v1944, 0.0
        %1951 = vadd.xlane.f32.xlu0 %v1950
        %v1952 = vpop.xlane.xlu0 %1951
        %v1953 = vmul.f32 %v1949, %v832
        %v1954 = vmul.f32 %v1952, %v832
        %v1955 = vsub.f32 %v1943, %v1953
        %v1956 = vsub.f32 %v1944, %v1954
        %v1957 = vmul.f32 %v1955, %v1955
        %v1958 = vmul.f32 %v1956, %v1956
        %v1959 = vsel %vm825, %v1957, 0.0
        %1960 = vadd.xlane.f32.xlu0 %v1959
        %v1961 = vpop.xlane.xlu0 %1960
        %v1962 = vsel %vm825, %v1958, 0.0
        %1963 = vadd.xlane.f32.xlu0 %v1962
        %v1964 = vpop.xlane.xlu0 %1963
        %v1965 = vmul.f32 %v1961, %v832
        %v1966 = vmul.f32 %v1964, %v832
        %v1967 = vadd.f32 %v1965, 1e-05
        %v1968 = vadd.f32 %v1966, 1e-05
        %v1969 = vrsqrt.pop %v1967
        %v1970 = vrsqrt.pop %v1968
        %v1971 = vmul.f32 %v1955, %v1969
        %v1972 = vmul.f32 %v1956, %v1970
        %v1974 = vlaneseq
        %v1975 = vshrl.u32 %v1974, 7
        %v1976 = vsub.s32 0, %v1975
        %v1977 = vrot.slane %v1945, %v1976
        %v1979 = vmul.f32 %v1971, %v1977
        %v1980 = vmul.f32 %v1972, %v1977
        %v1982 = vlaneseq
        %v1983 = vshrl.u32 %v1982, 7
        %v1984 = vsub.s32 0, %v1983
        %v1985 = vrot.slane %v1946, %v1984
        %v1987 = vadd.f32 %v1979, %v1985
        %v1988 = vadd.f32 %v1980, %v1985
        %v1989 = vpack.c.bf16 %v1988, %v1987
        %v1990 = vld [vmem:[%s670] sm:$0xf]
        %v1991 = vld [vmem:[%s670 + $0x4] sm:$0xf]
        %v1992 = vld [vmem:[%s670 + $0x8] sm:$0xf]
        %v1993 = vld [vmem:[%s670 + $0xc] sm:$0xf]
        %v1994 = vld [vmem:[%s802] sm:$0x1]
        %v1996 = vlaneseq
        %v1997 = vshrl.u32 %v1996, 7
        %v1998 = vsub.s32 0, %v1997
        %v1999 = vrot.slane %v1994, %v1998
        %v2005 = vunpack.c.l.b16 %v1990
        %v2006 = vunpack.c.l.b16 %v1991
        %v2007 = vunpack.c.l.b16 %v1992
        %v2008 = vunpack.c.l.b16 %v1993
        %v2009 = vpack.c.b16 %v2006, %v2005
        %v2010 = vpack.c.b16 %v2008, %v2007
        %v2014 = vsel %vm825, %v1989, 0
        %2016 = vmatprep.subr.bf16.mxu0 0
        %2017 = vmatpush1.bf16.msra.mxu0 %v2009
        %2018 = vmatprep.subr.bf16.mxu0 0
        %2019 = vmatpush1.bf16.msra.mxu0 %v2010
        %2020 = vmatprep.subr.bf16.mxu0 0
        %2021 = vmatpush1.bf16.msra.mxu0 0
        %2022 = vmatprep.subr.bf16.mxu0 0
        %2023 = vmatpush1.bf16.msra.mxu0 0
        %2024 = vmatprep.subr.bf16.mxu0 0
        %2025 = vmatpush1.bf16.msra.mxu0 0
        %2026 = vmatprep.subr.bf16.mxu0 0
        %2027 = vmatpush1.bf16.msra.mxu0 0
        %2028 = vmatprep.subr.bf16.mxu0 0
        %2029 = vmatpush1.bf16.msra.mxu0 0
        %2030 = vmatprep.subr.bf16.mxu0 0
        %2031 = vmatpush1.bf16.msra.mxu0 0
        %2032 = vmatprep.subr.bf16.mxu0 0
        %2033 = vmatpush1.bf16.msra.mxu0 0
        %2034 = vmatprep.subr.bf16.mxu0 0
        %2035 = vmatpush1.bf16.msra.mxu0 0
        %2036 = vmatprep.subr.bf16.mxu0 0
        %2037 = vmatpush1.bf16.msra.mxu0 0
        %2038 = vmatprep.subr.bf16.mxu0 0
        %2039 = vmatpush1.bf16.msra.mxu0 0
        %2040 = vmatprep.subr.bf16.mxu0 0
        %2041 = vmatpush1.bf16.msra.mxu0 0
        %2042 = vmatprep.subr.bf16.mxu0 0
        %2043 = vmatpush1.bf16.msra.mxu0 0
        %2044 = vmatprep.subr.bf16.mxu0 0
        %2045 = vmatpush1.bf16.msra.mxu0 0
        %2046 = vmatprep.subr.bf16.mxu0 0
        %2047 = vmatpush1.bf16.msra.mxu0 0
        %2048 = vmatprep.mubr.bf16.mxu0 0
        %2049 = vmatmul.mubr.bf16.gmra.mrb[0].mxu0 %v2014
        %v2050 = vpop.f32.mrb[0].mxu0
        %v2051 = vadd.f32 %v1999, %v2050
        %v2052 = vpop.f32.mrb[0].mxu0
        %v2053 = vpop.f32.mrb[0].mxu0
        %v2054 = vadd.f32 %v1999, %v2053
        %v2055 = vpop.f32.mrb[0].mxu0
        %2056 = vdwg.mxu0
        %v2057 = vmul.f32 %v2051, 0.5
        %v2058 = vmul.f32 %v2054, 0.5
        %v2059 = vmul.f32 %v2051, 0.70710677
        %v2060 = vmul.f32 %v2054, 0.70710677
        %v2061 = verf.f32.pop %v2059
        %v2062 = verf.f32.pop %v2060
        %v2063 = vadd.f32 %v2061, 1.0
        %v2064 = vadd.f32 %v2062, 1.0
        %v2065 = vmul.f32 %v2057, %v2063
        %v2066 = vmul.f32 %v2058, %v2064
        %v2067 = vpack.c.bf16 %v2066, %v2065
        %v2068 = vld [vmem:[%s807] sm:$0xf]
        %v2069 = vld [vmem:[%s807 + $0x4] sm:$0xf]
        %v2070 = vld [vmem:[%s807 + $0x8] sm:$0xf]
        %v2071 = vld [vmem:[%s807 + $0xc] sm:$0xf]
        %v2072 = vld [vmem:[%s807 + $0x10] sm:$0xf]
        %v2073 = vld [vmem:[%s807 + $0x14] sm:$0xf]
        %v2074 = vld [vmem:[%s807 + $0x18] sm:$0xf]
        %v2075 = vld [vmem:[%s807 + $0x1c] sm:$0xf]
        %v2076 = vld [vmem:[%s810] sm:$0x1]
        %v2078 = vlaneseq
        %v2079 = vshrl.u32 %v2078, 7
        %v2080 = vsub.s32 0, %v2079
        %v2081 = vrot.slane %v2076, %v2080
        %v2091 = vunpack.c.l.b16 %v2068
        %v2092 = vunpack.c.l.b16 %v2069
        %v2093 = vunpack.c.l.b16 %v2070
        %v2094 = vunpack.c.l.b16 %v2071
        %v2095 = vunpack.c.l.b16 %v2072
        %v2096 = vunpack.c.l.b16 %v2073
        %v2097 = vunpack.c.l.b16 %v2074
        %v2098 = vunpack.c.l.b16 %v2075
        %v2099 = vpack.c.b16 %v2092, %v2091
        %v2100 = vpack.c.b16 %v2094, %v2093
        %v2101 = vpack.c.b16 %v2096, %v2095
        %v2102 = vpack.c.b16 %v2098, %v2097
        %vm2107 = vcmask 523264
        %v2109 = vsel %vm2107, %v2067, 0
        %2111 = vmatprep.subr.bf16.mxu0 0
        %2112 = vmatpush1.bf16.msra.mxu0 %v2099
        %2113 = vmatprep.subr.bf16.mxu0 0
        %2114 = vmatpush1.bf16.msra.mxu0 %v2100
        %2115 = vmatprep.subr.bf16.mxu0 0
        %2116 = vmatpush1.bf16.msra.mxu0 %v2101
        %2117 = vmatprep.subr.bf16.mxu0 0
        %2118 = vmatpush1.bf16.msra.mxu0 %v2102
        %2119 = vmatprep.subr.bf16.mxu0 0
        %2120 = vmatpush1.bf16.msra.mxu0 0
        %2121 = vmatprep.subr.bf16.mxu0 0
        %2122 = vmatpush1.bf16.msra.mxu0 0
        %2123 = vmatprep.subr.bf16.mxu0 0
        %2124 = vmatpush1.bf16.msra.mxu0 0
        %2125 = vmatprep.subr.bf16.mxu0 0
        %2126 = vmatpush1.bf16.msra.mxu0 0
        %2127 = vmatprep.subr.bf16.mxu0 0
        %2128 = vmatpush1.bf16.msra.mxu0 0
        %2129 = vmatprep.subr.bf16.mxu0 0
        %2130 = vmatpush1.bf16.msra.mxu0 0
        %2131 = vmatprep.subr.bf16.mxu0 0
        %2132 = vmatpush1.bf16.msra.mxu0 0
        %2133 = vmatprep.subr.bf16.mxu0 0
        %2134 = vmatpush1.bf16.msra.mxu0 0
        %2135 = vmatprep.subr.bf16.mxu0 0
        %2136 = vmatpush1.bf16.msra.mxu0 0
        %2137 = vmatprep.subr.bf16.mxu0 0
        %2138 = vmatpush1.bf16.msra.mxu0 0
        %2139 = vmatprep.subr.bf16.mxu0 0
        %2140 = vmatpush1.bf16.msra.mxu0 0
        %2141 = vmatprep.subr.bf16.mxu0 0
        %2142 = vmatpush1.bf16.msra.mxu0 0
        %2143 = vmatprep.mubr.bf16.mxu0 0
        %2144 = vmatmul.mubr.bf16.gmra.mrb[0].mxu0 %v2109
        %v2145 = vpop.f32.mrb[0].mxu0
        %v2146 = vadd.f32 %v2081, %v2145
        %v2147 = vpop.f32.mrb[0].mxu0
        %v2148 = vpop.f32.mrb[0].mxu0
        %v2149 = vadd.f32 %v2081, %v2148
        %v2150 = vpop.f32.mrb[0].mxu0
        %2151 = vdwg.mxu0
        %v2152 = vadd.f32 %v1987, %v2146
        %v2153 = vadd.f32 %v1988, %v2149
        %2154 = vst.msk [vmem:[#allocation2] sm:$0xff] %vm825, %v2152
        %2155 = vst.msk [vmem:[#allocation2 + $0x8] sm:$0xff] %vm825, %v2153
        %p2156 = scmp.eq.s32.totalorder %s47, 1
        // Predicated region
        $region101: #{tpu_custom_call.1} parent=87 // pred_check
          %p2157 = pneg %p2156
        $region102: #{tpu_custom_call.1} parent=87 // pred_check_branch
          %2159 = sbr.rel (%p2157) target = $region104
        $region103: #{tpu_custom_call.1} parent=87 // pred_region
          %v2160 = vld [vmem:[#allocation2] sm:$0xff]
          %v2161 = vld [vmem:[#allocation2 + $0x8] sm:$0xff]
          %v2162 = vld [vmem:[%s13] sm:$0x1]
          %v2163 = vld [vmem:[%s14] sm:$0x1]
          %v2164 = vsel %vm825, %v2160, 0.0
          %2165 = vadd.xlane.f32.xlu0 %v2164
          %v2166 = vpop.xlane.xlu0 %2165
          %v2167 = vsel %vm825, %v2161, 0.0
          %2168 = vadd.xlane.f32.xlu0 %v2167
          %v2169 = vpop.xlane.xlu0 %2168
          %v2170 = vmul.f32 %v2166, %v832
          %v2171 = vmul.f32 %v2169, %v832
          %v2172 = vsub.f32 %v2160, %v2170
          %v2173 = vsub.f32 %v2161, %v2171
          %v2174 = vmul.f32 %v2172, %v2172
          %v2175 = vmul.f32 %v2173, %v2173
          %v2176 = vsel %vm825, %v2174, 0.0
          %2177 = vadd.xlane.f32.xlu0 %v2176
          %v2178 = vpop.xlane.xlu0 %2177
          %v2179 = vsel %vm825, %v2175, 0.0
          %2180 = vadd.xlane.f32.xlu0 %v2179
          %v2181 = vpop.xlane.xlu0 %2180
          %v2182 = vmul.f32 %v2178, %v832
          %v2183 = vmul.f32 %v2181, %v832
          %v2184 = vadd.f32 %v2182, 1e-05
          %v2185 = vadd.f32 %v2183, 1e-05
          %v2186 = vrsqrt.pop %v2184
          %v2187 = vrsqrt.pop %v2185
          %v2188 = vmul.f32 %v2172, %v2186
          %v2189 = vmul.f32 %v2173, %v2187
          %v2191 = vlaneseq
          %v2192 = vshrl.u32 %v2191, 7
          %v2193 = vsub.s32 0, %v2192
          %v2194 = vrot.slane %v2162, %v2193
          %v2196 = vmul.f32 %v2188, %v2194
          %v2197 = vmul.f32 %v2189, %v2194
          %v2199 = vlaneseq
          %v2200 = vshrl.u32 %v2199, 7
          %v2201 = vsub.s32 0, %v2200
          %v2202 = vrot.slane %v2163, %v2201
          %v2204 = vadd.f32 %v2196, %v2202
          %v2205 = vadd.f32 %v2197, %v2202
          %2206 = vst.msk [vmem:[%s762] sm:$0xff] %vm825, %v2204
          %2207 = vst.msk [vmem:[%s762 + $0x8] sm:$0xff] %vm825, %v2205
          %v2208 = vld [vmem:[%s15] sm:$0x1]
          %v2210 = vlaneseq
          %v2211 = vshrl.u32 %v2210, 7
          %v2212 = vsub.s32 0, %v2211
          %v2213 = vrot.slane %v2208, %v2212
          %v2215 = vmul.f32 %v2204, %v2213
          %v2216 = vmul.f32 %v2205, %v2213
          %v2217 = vsel %vm825, %v2215, 0.0
          %2218 = vadd.xlane.f32.xlu0 %v2217
          %v2219 = vpop.xlane.xlu0 %2218
          %v2220 = vsel %vm825, %v2216, 0.0
          %2221 = vadd.xlane.f32.xlu0 %v2220
          %v2222 = vpop.xlane.xlu0 %2221
          %v2223 = vld [vmem:[#allocation4] sm:$0x1]
          %s2224 = vtos %v2223
          %v2225 = vstv %s2224
          %v2226 = vadd.f32 %v2219, %v2225
          %v2227 = vadd.f32 %v2222, %v2225
          %v2228 = vrot.slane %v2226, 4
          %v2229 = vmax.f32 %v2226, %v2228
          %v2230 = vrot.slane %v2229, 2
          %v2231 = vmax.f32 %v2229, %v2230
          %v2232 = vrot.slane %v2231, 1
          %v2233 = vmax.f32 %v2231, %v2232
          %v2234 = vrot.slane %v2227, 4
          %v2235 = vmax.f32 %v2227, %v2234
          %v2236 = vrot.slane %v2235, 2
          %v2237 = vmax.f32 %v2235, %v2236
          %v2238 = vrot.slane %v2237, 1
          %v2239 = vmax.f32 %v2237, %v2238
          %v2240 = vsub.f32 %v2226, %v2233
          %v2241 = vsub.f32 %v2227, %v2239
          %v2242 = vmul.f32 %v2240, 1.442695
          %v2243 = vpow.pop %v2242
          %v2244 = vmul.f32 %v2241, 1.442695
          %v2245 = vpow.pop %v2244
          %v2246 = vrot.slane %v2243, 4
          %v2247 = vadd.f32 %v2243, %v2246
          %v2248 = vrot.slane %v2247, 2
          %v2249 = vadd.f32 %v2247, %v2248
          %v2250 = vrot.slane %v2249, 1
          %v2251 = vadd.f32 %v2249, %v2250
          %v2252 = vrot.slane %v2245, 4
          %v2253 = vadd.f32 %v2245, %v2252
          %v2254 = vrot.slane %v2253, 2
          %v2255 = vadd.f32 %v2253, %v2254
          %v2256 = vrot.slane %v2255, 1
          %v2257 = vadd.f32 %v2255, %v2256
          %v2258 = vrcp.pop %v2251
          %v2259 = vmul.f32 %v2243, %v2258
          %v2260 = vrcp.pop %v2257
          %v2261 = vmul.f32 %v2245, %v2260
          %v2262 = vmul.f32 %v2259, %v2204
          %v2263 = vmul.f32 %v2261, %v2205
          %v2264 = vsel %vm825, %v2262, 0.0
          %v2265 = vrot.slane %v2264, 4
          %v2266 = vadd.f32 %v2264, %v2265
          %v2267 = vrot.slane %v2266, 2
          %v2268 = vadd.f32 %v2266, %v2267
          %v2269 = vrot.slane %v2268, 1
          %v2270 = vadd.f32 %v2268, %v2269
          %v2271 = vsel %vm825, %v2263, 0.0
          %v2272 = vrot.slane %v2271, 4
          %v2273 = vadd.f32 %v2271, %v2272
          %v2274 = vrot.slane %v2273, 2
          %v2275 = vadd.f32 %v2273, %v2274
          %v2276 = vrot.slane %v2275, 1
          %v2277 = vadd.f32 %v2275, %v2276
          %vm2280 = vcmask 1041409
          %v2281 = vsel %vm2280, %v2277, %v2270
          %vm2283 = vcmask 254976
          %2284 = vst.msk [vmem:[%s769] sm:$0x3] %vm2283, %v2281
        $region104: #{tpu_custom_call.1} parent=87 // pred_fallthru
          _
        %s2285 = sand.u32 %s479, 1
        %s2286 = scalar_lea.sflag [#allocation7], %s2285
        %s2287 = sand.u32 %s479, 1
        %s2288 = smul.addr %s2287, 16
        %s2289 = scalar_lea.vmem [#allocation10], %s2288
        %s2290 = sand.u32 %s505, 1
        %s2291 = scalar_lea.sflag [#allocation12], %s2290
        %s2292 = sand.u32 %s505, 1
        %s2293 = smul.addr %s2292, 2
        %s2294 = scalar_lea.vmem [#allocation11], %s2293
        // Predicated region
        $region105: #{tpu_custom_call.1} parent=87 // pred_check
          %p2295 = pneg %p489
        $region106: #{tpu_custom_call.1} parent=87 // pred_check_branch
          %2297 = sbr.rel (%p2295) target = $region108
        $region107: #{tpu_custom_call.1} parent=87 // pred_region
          %s2299 = ssub.s32 256, 256
          %2300 = vsyncadd %s2286, %s2299
          %s2301 = smul.addr %s46, 2
          %s2302 = smul.addr %s2301, 128
          %s2303 = scalar_lea.hbm %s17, %s2302
          %s2304 = sshll.u32 %s2289, 4
          %s2305 = int_to_ptr.vmem [resolvable:$true] %s2304
          %2310 = dma.vmem_to_hbm [thread:$0]  %s2305, 256, %s2303, %s2286, 128, 128, 8
        $region108: #{tpu_custom_call.1} parent=87 // pred_fallthru
          _
        // Predicated region
        $region109: #{tpu_custom_call.1} parent=87 // pred_check
          %p2311 = pneg %p515
        $region110: #{tpu_custom_call.1} parent=87 // pred_check_branch
          %2313 = sbr.rel (%p2311) target = $region112
        $region111: #{tpu_custom_call.1} parent=87 // pred_region
          %s2315 = ssub.s32 32, 32
          %2316 = vsyncadd %s2291, %s2315
          %s2317 = smul.addr %s46, 32
          %s2318 = scalar_lea.hbm %s18, %s2317
          %s2320 = sshll.u32 %s2294, 4
          %s2321 = int_to_ptr.vmem [resolvable:$true] %s2320
          %2323 = dma.vmem_to_hbm [thread:$0]  %s2321, 32, %s2318, %s2291
        $region112: #{tpu_custom_call.1} parent=87 // pred_fallthru
          _
      $region88: #{tpu_custom_call.1} parent=5 // pred_fallthru
        _
      %p2324 = scmp.le.s32.totalorder 2, %s37
      // Predicated region
      $region113: #{tpu_custom_call.1} parent=5 // pred_check
        %p2325 = pneg %p2324
      $region114: #{tpu_custom_call.1} parent=5 // pred_check_branch
        %2327 = sbr.rel (%p2325) target = $region116
      $region115: #{tpu_custom_call.1} parent=5 // pred_region
        %s2328 = ssub.s32 %s37, 2
        // Predicated region
        $region117: #{tpu_custom_call.1} parent=115 // pred_check
          %p2329 = pneg %p495
        $region118: #{tpu_custom_call.1} parent=115 // pred_check_branch
          %2331 = sbr.rel (%p2329) target = $region120
        $region119: #{tpu_custom_call.1} parent=115 // pred_region
          %s2332 = sand.u32 %s480, 1
          %s2333 = scalar_lea.sflag [#allocation7], %s2332
          %s2334 = sand.u32 %s480, 1
          %s2335 = smul.addr %s2334, 16
          %s2336 = scalar_lea.vmem [#allocation10], %s2335
          %2337 = dma.done %s2333, 256
        $region120: #{tpu_custom_call.1} parent=115 // pred_fallthru
          _
        // Predicated region
        $region121: #{tpu_custom_call.1} parent=115 // pred_check
          %p2338 = pneg %p521
        $region122: #{tpu_custom_call.1} parent=115 // pred_check_branch
          %2340 = sbr.rel (%p2338) target = $region124
        $region123: #{tpu_custom_call.1} parent=115 // pred_region
          %s2341 = sand.u32 %s506, 1
          %s2342 = scalar_lea.sflag [#allocation12], %s2341
          %s2343 = sand.u32 %s506, 1
          %s2344 = smul.addr %s2343, 2
          %s2345 = scalar_lea.vmem [#allocation11], %s2344
          %2346 = dma.done %s2342, 32
        $region124: #{tpu_custom_call.1} parent=115 // pred_fallthru
          _
      $region116: #{tpu_custom_call.1} parent=5 // pred_fallthru
        _
    $region6: #{tpu_custom_call.1} parent=1 // loop_footer
      %s41 = sadd.s32 1, %s37
    $region7: #{tpu_custom_call.1} parent=1 // loop_footer_branch
      %36 = sbr.rel target = $region3
    $region8: #{tpu_custom_call.1} parent=1 // loop_exit
      _
    %2347 = vsyncpa [#allocation6], 1
    %s2348 = scalar_lea.sflag [#allocation6], 1
    %2349 = vsyncpa %s2348, 1
    %2350 = vsyncpa [#allocation7], 1
    %s2351 = scalar_lea.sflag [#allocation7], 1
    %2352 = vsyncpa %s2351, 1
    %2353 = vsyncpa [#allocation12], 1
    %s2354 = scalar_lea.sflag [#allocation12], 1
    %2355 = vsyncpa %s2354, 1
    %2356 = vsyncpa [#allocation8], 1
    %s2357 = scalar_lea.sflag [#allocation8], 1
    %2358 = vsyncpa %s2357, 1

</llo_original>
